<compile_context>
chip_gen: v5e
topology: v5e:2x2
jax: 0.10.0
libtpu: 0.0.40
codegen_flags: <defaults>
</compile_context>

<pallas_src>
import functools
import math

import jax
import jax.numpy as jnp
from jax import lax
from jax.experimental import pallas as pl
from jax.experimental.pallas import tpu as pltpu

_LN_EPS = 1e-6          # timm ViT uses nn.LayerNorm(eps=1e-6)
_NORM_EPS = 1e-12       # F.normalize default eps
_NEG_INF = -1e30        # mask value for padded key columns


# ----------------------------- in-kernel math helpers -----------------------------

def _erf(x):
    # Abramowitz & Stegun 7.1.26, |error| <= 1.5e-7 (matches torch's exact-erf GELU at
    # f32). Exact divide here (NOT the approximate EUP reciprocal) so the polynomial's
    # accuracy claim actually holds.
    p = 0.3275911
    a1, a2, a3, a4, a5 = 0.254829592, -0.284496736, 1.421413741, -1.453152027, 1.061405429
    sgn = jnp.where(x >= 0.0, 1.0, -1.0)
    ax = jnp.abs(x)
    t = 1.0 / (1.0 + p * ax)
    poly = ((((a5 * t + a4) * t + a3) * t + a2) * t + a1) * t
    return sgn * (1.0 - poly * jnp.exp(-ax * ax))


def _gelu(x):
    # exact (erf-based) GELU — torch nn.GELU() default
    return 0.5 * x * (1.0 + _erf(x * 0.7071067811865476))


def _layernorm(x, gamma, beta):
    mean = jnp.mean(x, axis=-1, keepdims=True)
    var = jnp.mean(jnp.square(x - mean), axis=-1, keepdims=True)
    return (x - mean) * lax.rsqrt(var + _LN_EPS) * gamma + beta


def _bf16(x):
    return x.astype(jnp.bfloat16)


# ------------------------------------ kernel --------------------------------------

def _vit_encoder_kernel(
    patches_ref,                       # (bb, N, Cin*p*p)   bf16
    cls_ref, pos_ref,                  # (1, D) f32, (T, D) f32
    pe_wT_ref, pe_b_ref,               # (Cin*p*p, D) bf16, (1, D) f32
    ln1_g_ref, ln1_b_ref,              # (1, 1, D) f32      (layer-d slice)
    qkv_wT_ref, qkv_b_ref,             # (1, D, 3D) bf16, (1, 1, 3D) f32
    attn_wT_ref, attn_b_ref,           # (1, D, D) bf16, (1, 1, D) f32
    ln2_g_ref, ln2_b_ref,              # (1, 1, D) f32
    fc1_wT_ref, fc1_b_ref,             # (1, D, Dmlp) bf16, (1, 1, Dmlp) f32
    fc2_wT_ref, fc2_b_ref,             # (1, Dmlp, D) bf16, (1, 1, D) f32
    lnf_g_ref, lnf_b_ref,              # (1, D) f32
    head_wT_ref,                       # (D, Pp) bf16       (zero-padded columns)
    o_ref,                             # (1, bb, Pp) f32
    x_ref,                             # VMEM scratch (bb*Tp, D) f32, carried over d
    *, depth, num_heads, seq_len, seq_pad, block_batch):
    d = pl.program_id(1)
    bb, T, Tp = block_batch, seq_len, seq_pad
    N = patches_ref.shape[1]
    D = pos_ref.shape[1]
    hd = D // num_heads
    scale = 1.0 / math.sqrt(hd)

    # ---- d == 0: patch embed + [cls] token + positional embedding ----------------
    @pl.when(d == 0)
    def _init():
        pos = pos_ref[...]                                       # (T, D) f32
        pe_b = pe_b_ref[...]
        pad = jnp.zeros((Tp - T, D), jnp.float32) if Tp > T else None
        toks = []
        for i in range(bb):
            emb = jnp.dot(patches_ref[i], pe_wT_ref[...],
                          preferred_element_type=jnp.float32) + pe_b      # (N, D)
            pieces = [cls_ref[...] + pos[0:1, :], emb + pos[1:1 + N, :]]
            if pad is not None:
                pieces.append(pad)
            toks.append(jnp.concatenate(pieces, axis=0))                  # (Tp, D)
        x_ref[...] = jnp.concatenate(toks, axis=0)                        # (bb*Tp, D)

    # ---- one pre-norm transformer block, layer-d weights streamed this step ------
    x = x_ref[...]                                                        # (bb*Tp, D)

    # --- multi-head self-attention branch ---
    h = _layernorm(x, ln1_g_ref[0], ln1_b_ref[0])
    qkv = jnp.dot(_bf16(h), qkv_wT_ref[0],
                  preferred_element_type=jnp.float32) + qkv_b_ref[0]      # (bb*Tp, 3D)
    key_valid = lax.broadcasted_iota(jnp.int32, (Tp, Tp), 1) < T          # mask pad keys
    img_outs = []
    for i in range(bb):                                                   # per image
        rows = qkv[i * Tp:(i + 1) * Tp, :]                                # (Tp, 3D)
        head_outs = []
        for hh in range(num_heads):                                       # per head
            lo = hh * hd
            q = _bf16(rows[:, lo:lo + hd])
            k = _bf16(rows[:, D + lo:D + lo + hd])
            v = _bf16(rows[:, 2 * D + lo:2 * D + lo + hd])
            # q @ k^T without an explicit transpose (transposed-RHS MXU matmul)
            s = lax.dot_general(q, k, (((1,), (1,)), ((), ())),
                                preferred_element_type=jnp.float32) * scale
            s = jnp.where(key_valid, s, _NEG_INF)
            s = s - jnp.max(s, axis=-1, keepdims=True)
            e = jnp.exp(s)
            p = e * pl.reciprocal(jnp.sum(e, axis=-1, keepdims=True), approx=True)
            head_outs.append(jnp.dot(_bf16(p), v,
                                     preferred_element_type=jnp.float32))  # (Tp, hd)
        img_outs.append(jnp.concatenate(head_outs, axis=-1))              # (Tp, D)
    attn = jnp.concatenate(img_outs, axis=0)                              # (bb*Tp, D)
    x = x + jnp.dot(_bf16(attn), attn_wT_ref[0],
                    preferred_element_type=jnp.float32) + attn_b_ref[0]

    # --- MLP branch ---
    h = _layernorm(x, ln2_g_ref[0], ln2_b_ref[0])
    h = _gelu(jnp.dot(_bf16(h), fc1_wT_ref[0],
                      preferred_element_type=jnp.float32) + fc1_b_ref[0])
    x = x + jnp.dot(_bf16(h), fc2_wT_ref[0],
                    preferred_element_type=jnp.float32) + fc2_b_ref[0]
    x_ref[...] = x

    # ---- d == depth-1: final LN -> CLS -> Linear(no bias) -> L2 normalize --------
    @pl.when(d == depth - 1)
    def _finalize():
        hf = _layernorm(x, lnf_g_ref[...], lnf_b_ref[...])
        cls_rows = jnp.concatenate(
            [hf[i * Tp:i * Tp + 1, :] for i in range(bb)], axis=0)        # (bb, D)
        z = jnp.dot(_bf16(cls_rows), head_wT_ref[...],
                    preferred_element_type=jnp.float32)                   # (bb, Pp)
        nrm = jnp.sqrt(jnp.sum(z * z, axis=-1, keepdims=True))
        o_ref[0] = z / jnp.maximum(nrm, _NORM_EPS)


# ------------------------------- pallas_call wrapper -------------------------------

def vision_encoder_forward(images, params, *, block_batch=None):
    """images: (B, C, H, W) float32  ->  (B, proj_dim) L2-normalized embeddings."""
    B, C, H, W = images.shape
    p = params["patch_size"]
    Hp, Wp = H // p, W // p
    # non-overlapping patchify == Conv2d(C, D, kernel=p, stride=p): pure
    # reshape/transpose in glue (no im2col expansion); the matmul happens in-kernel.
    x = images.reshape(B, C, Hp, p, Wp, p)
    x = jnp.transpose(x, (0, 2, 4, 1, 3, 5))                     # (B, Hp, Wp, C, p, p)
    patches = x.reshape(B, Hp * Wp, C * p * p).astype(jnp.bfloat16)

    blk = params["blocks"]
    depth = blk["qkv_wT"].shape[0]
    num_heads = params["num_heads"]
    N, Cp = patches.shape[1], patches.shape[2]
    T, D = params["pos"].shape
    Pp = params["head_wT"].shape[1]                              # lane-padded (>=128)
    proj_dim = params["proj_dim"]

    Tp = ((T + 7) // 8) * 8                                      # sublane-aligned tokens
    if block_batch is None:
        # aim for ~256 matmul rows per step; cap (per-image attention loop is unrolled)
        block_batch = max(1, min(8, 256 // Tp))
    bb = max(1, min(block_batch, B))
    B_pad = ((B + bb - 1) // bb) * bb
    if B_pad != B:
        patches = jnp.concatenate(
            [patches, jnp.zeros((B_pad - B, N, Cp), patches.dtype)], axis=0)
    G = B_pad // bb

    inputs = [
        patches, params["cls"], params["pos"], params["pe_wT"], params["pe_b"],
        blk["ln1_g"], blk["ln1_b"], blk["qkv_wT"], blk["qkv_b"],
        blk["attn_wT"], blk["attn_b"], blk["ln2_g"], blk["ln2_b"],
        blk["fc1_wT"], blk["fc1_b"], blk["fc2_wT"], blk["fc2_b"],
        params["lnf_g"], params["lnf_b"], params["head_wT"],
    ]

    def _const2d(a):     # fetched once (block index constant over the whole grid)
        return pl.BlockSpec(a.shape, lambda g, d: (0, 0))

    def _layer(a):       # streamed per layer along the inner (depth) grid axis
        return pl.BlockSpec((1,) + a.shape[1:], lambda g, d: (d, 0, 0))

    in_specs = [pl.BlockSpec((bb, N, Cp), lambda g, d: (g, 0, 0))]   # patches
    in_specs += [_const2d(a) for a in inputs[1:5]]                    # cls/pos/patch-embed
    in_specs += [_layer(a) for a in inputs[5:17]]                     # per-layer weights
    in_specs += [_const2d(a) for a in inputs[17:20]]                  # final LN + head

    kernel = functools.partial(
        _vit_encoder_kernel, depth=depth, num_heads=num_heads,
        seq_len=T, seq_pad=Tp, block_batch=bb)

    out = pl.pallas_call(
        kernel,
        out_shape=jax.ShapeDtypeStruct((G, bb, Pp), jnp.float32),
        grid_spec=pltpu.PrefetchScalarGridSpec(
            num_scalar_prefetch=0,
            grid=(G, depth),
            in_specs=in_specs,
            out_specs=pl.BlockSpec((1, bb, Pp), lambda g, d: (g, 0, 0)),
            scratch_shapes=[pltpu.VMEM((bb * Tp, D), jnp.float32)],   # token state
        ),
        compiler_params=pltpu.CompilerParams(
            dimension_semantics=("parallel", "arbitrary"),
            vmem_limit_bytes=32 * 1024 * 1024,
        ),
    )(*inputs)
    return out.reshape(B_pad, Pp)[:B, :proj_dim]


# -------------------------------- parameter init -----------------------------------

def init_params(key, *, img_size, patch_size, in_chans, embed_dim, depth,
                num_heads, mlp_ratio, proj_dim):
    D = embed_dim
    n_patches = (img_size // patch_size) ** 2
    T = n_patches + 1
    hidden = int(D * mlp_ratio)
    Cp = in_chans * patch_size * patch_size
    Pp = max(128, ((proj_dim + 127) // 128) * 128)     # lane-dense output

    def nrm(k, shape, scale, dtype=jnp.float32):
        return (jax.random.normal(k, shape, jnp.float32) * scale).astype(dtype)

    bf16 = jnp.bfloat16
    # TODO(synk): pretrained DINO backbone weights cannot be loaded here (no timm /
    # no network in-sandbox); the architecture uses deterministic random init instead.
    key, k_cls, k_pos, k_pew, k_peb, k_head = jax.random.split(key, 6)
    head = nrm(k_head, (D, proj_dim), 1.0 / math.sqrt(D))
    head_pad = jnp.zeros((D, Pp), jnp.float32).at[:, :proj_dim].set(head).astype(bf16)
    params = {
        "patch_size": patch_size,
        "num_heads": num_heads,
        "proj_dim": proj_dim,
        "cls": nrm(k_cls, (1, D), 0.02),
        "pos": nrm(k_pos, (T, D), 0.02),
        "pe_wT": nrm(k_pew, (Cp, D), 1.0 / math.sqrt(Cp), bf16),   # (in, out) == x @ W.T
        "pe_b": nrm(k_peb, (1, D), 0.02),
        "lnf_g": jnp.ones((1, D), jnp.float32),
        "lnf_b": jnp.zeros((1, D), jnp.float32),
        "head_wT": head_pad,                                        # no bias
    }

    blocks = []
    for _ in range(depth):
        key, kq, kqb, ko, kob, k1, k1b, k2, k2b = jax.random.split(key, 9)
        blocks.append({
            "ln1_g": jnp.ones((1, D), jnp.float32),
            "ln1_b": jnp.zeros((1, D), jnp.float32),
            "qkv_wT": nrm(kq, (D, 3 * D), 1.0 / math.sqrt(D), bf16),
            "qkv_b": nrm(kqb, (1, 3 * D), 0.02),
            "attn_wT": nrm(ko, (D, D), 1.0 / math.sqrt(D), bf16),
            "attn_b": nrm(kob, (1, D), 0.02),
            "ln2_g": jnp.ones((1, D), jnp.float32),
            "ln2_b": jnp.zeros((1, D), jnp.float32),
            "fc1_wT": nrm(k1, (D, hidden), 1.0 / math.sqrt(D), bf16),
            "fc1_b": nrm(k1b, (1, hidden), 0.02),
            "fc2_wT": nrm(k2, (hidden, D), 1.0 / math.sqrt(hidden), bf16),
            "fc2_b": nrm(k2b, (1, D), 0.02),
        })
    # stack per-block params along a leading depth axis (streamed via BlockSpec)
    params["blocks"] = {k: jnp.stack([b[k] for b in blocks]) for k in blocks[0]}
    return params


# --------------------------------------- main ---------------------------------------

if __name__ == "__main__":
    key = jax.random.PRNGKey(0)
    k_param, k_img = jax.random.split(key)

    # Small ViT config consistent with the module (patch-16 ViT + Linear proj head):
    # 32x32 image, patch 16 -> 4 patches + CLS = 5 tokens (padded to 8); embed_dim 128
    # (lane-dense), 2 transformer blocks, 4 heads, MLP ratio 4, proj_dim 16.
    cfg = dict(img_size=32, patch_size=16, in_chans=3, embed_dim=128,
               depth=2, num_heads=4, mlp_ratio=4, proj_dim=16)
    params = init_params(k_param, **cfg)

    B = 2
    images = jax.random.normal(
        k_img, (B, cfg["in_chans"], cfg["img_size"], cfg["img_size"]), jnp.float32)

    z = vision_encoder_forward(images, params)
    z = jax.block_until_ready(z)

    assert z.shape == (B, cfg["proj_dim"]), z.shape
    assert bool(jnp.all(jnp.isfinite(z)))
    # output rows must be L2-normalized (F.normalize(dim=-1))
    assert bool(jnp.allclose(jnp.linalg.norm(z, axis=-1), 1.0, atol=1e-4))
    print("KERNEL_OK")
</pallas_src>

<mosaic_0001>
module attributes {stable_mosaic.version = 11 : i64} {
  func.func @_vit_encoder_kernel(%arg0: i32, %arg1: i32, %arg2: memref<2x4x768xbf16, #tpu.memory_space<vmem>>, %arg3: memref<1x128xf32, #tpu.memory_space<vmem>>, %arg4: memref<5x128xf32, #tpu.memory_space<vmem>>, %arg5: memref<768x128xbf16, #tpu.memory_space<vmem>>, %arg6: memref<1x128xf32, #tpu.memory_space<vmem>>, %arg7: memref<1x1x128xf32, #tpu.memory_space<vmem>>, %arg8: memref<1x1x128xf32, #tpu.memory_space<vmem>>, %arg9: memref<1x128x384xbf16, #tpu.memory_space<vmem>>, %arg10: memref<1x1x384xf32, #tpu.memory_space<vmem>>, %arg11: memref<1x128x128xbf16, #tpu.memory_space<vmem>>, %arg12: memref<1x1x128xf32, #tpu.memory_space<vmem>>, %arg13: memref<1x1x128xf32, #tpu.memory_space<vmem>>, %arg14: memref<1x1x128xf32, #tpu.memory_space<vmem>>, %arg15: memref<1x128x512xbf16, #tpu.memory_space<vmem>>, %arg16: memref<1x1x512xf32, #tpu.memory_space<vmem>>, %arg17: memref<1x512x128xbf16, #tpu.memory_space<vmem>>, %arg18: memref<1x1x128xf32, #tpu.memory_space<vmem>>, %arg19: memref<1x128xf32, #tpu.memory_space<vmem>>, %arg20: memref<1x128xf32, #tpu.memory_space<vmem>>, %arg21: memref<128x128xbf16, #tpu.memory_space<vmem>>, %arg22: memref<1x2x128xf32, #tpu.memory_space<vmem>>, %arg23: memref<16x128xf32, #tpu.memory_space<vmem>>) attributes {dimension_semantics = [#tpu.dimension_semantics<parallel>, #tpu.dimension_semantics<arbitrary>], iteration_bounds = array<i64: 1, 2>, scalar_prefetch = 0 : i64, scratch_operands = 1 : i64, tpu.core_type = #tpu.core_type<tc>, window_params = [{transform_indices = @transform_0, window_bounds = array<i64: 2, 4, 768>}, {pipeline_mode = #tpu.pipeline_mode<synchronous>, transform_indices = @transform_1, window_bounds = array<i64: 1, 128>}, {pipeline_mode = #tpu.pipeline_mode<synchronous>, transform_indices = @transform_2, window_bounds = array<i64: 5, 128>}, {pipeline_mode = #tpu.pipeline_mode<synchronous>, transform_indices = @transform_3, window_bounds = array<i64: 768, 128>}, {pipeline_mode = #tpu.pipeline_mode<synchronous>, transform_indices = @transform_4, window_bounds = array<i64: 1, 128>}, {transform_indices = @transform_5, window_bounds = array<i64: 1, 1, 128>}, {transform_indices = @transform_6, window_bounds = array<i64: 1, 1, 128>}, {transform_indices = @transform_7, window_bounds = array<i64: 1, 128, 384>}, {transform_indices = @transform_8, window_bounds = array<i64: 1, 1, 384>}, {transform_indices = @transform_9, window_bounds = array<i64: 1, 128, 128>}, {transform_indices = @transform_10, window_bounds = array<i64: 1, 1, 128>}, {transform_indices = @transform_11, window_bounds = array<i64: 1, 1, 128>}, {transform_indices = @transform_12, window_bounds = array<i64: 1, 1, 128>}, {transform_indices = @transform_13, window_bounds = array<i64: 1, 128, 512>}, {transform_indices = @transform_14, window_bounds = array<i64: 1, 1, 512>}, {transform_indices = @transform_15, window_bounds = array<i64: 1, 512, 128>}, {transform_indices = @transform_16, window_bounds = array<i64: 1, 1, 128>}, {pipeline_mode = #tpu.pipeline_mode<synchronous>, transform_indices = @transform_17, window_bounds = array<i64: 1, 128>}, {pipeline_mode = #tpu.pipeline_mode<synchronous>, transform_indices = @transform_18, window_bounds = array<i64: 1, 128>}, {pipeline_mode = #tpu.pipeline_mode<synchronous>, transform_indices = @transform_19, window_bounds = array<i64: 128, 128>}, {transform_indices = @transform_20, window_bounds = array<i64: 1, 2, 128>}]} {
    %c0_i32 = arith.constant 0 : i32
    %0 = arith.cmpi eq, %arg1, %c0_i32 : i32
    %1 = arith.extui %0 : i1 to i32
    %c0_i32_0 = arith.constant 0 : i32
    %2 = arith.cmpi ne, %1, %c0_i32_0 : i32
    scf.if %2 {
      %c0_118 = arith.constant 0 : index
      %c0_119 = arith.constant 0 : index
      %327 = vector.load %arg4[%c0_118, %c0_119] : memref<5x128xf32, #tpu.memory_space<vmem>>, vector<5x128xf32>
      %c0_120 = arith.constant 0 : index
      %c0_121 = arith.constant 0 : index
      %328 = vector.load %arg6[%c0_120, %c0_121] : memref<1x128xf32, #tpu.memory_space<vmem>>, vector<1x128xf32>
      %cst_122 = arith.constant 0.000000e+00 : f32
      %329 = vector.broadcast %cst_122 : f32 to vector<3x128xf32>
      %c0_123 = arith.constant 0 : index
      %c0_124 = arith.constant 0 : index
      %c0_125 = arith.constant 0 : index
      %330 = vector.load %arg2[%c0_123, %c0_124, %c0_125] : memref<2x4x768xbf16, #tpu.memory_space<vmem>>, vector<1x4x768xbf16>
      %331 = vector.shape_cast %330 : vector<1x4x768xbf16> to vector<4x768xbf16>
      %c0_126 = arith.constant 0 : index
      %c0_127 = arith.constant 0 : index
      %332 = vector.load %arg5[%c0_126, %c0_127] : memref<768x128xbf16, #tpu.memory_space<vmem>>, vector<768x128xbf16>
      %cst_128 = arith.constant dense<0.000000e+00> : vector<4x128xf32>
      %333 = tpu.matmul %331, %332, %cst_128 {dimension_numbers = #tpu.dot_dimension_numbers<[1], [0], [0], [1], [0, 0, 1, 1], [], []>} : vector<4x768xbf16>, vector<768x128xbf16>, vector<4x128xf32> -> vector<4x128xf32>
      %334 = vector.broadcast %328 : vector<1x128xf32> to vector<4x128xf32>
      %335 = arith.addf %333, %334 : vector<4x128xf32>
      %c0_129 = arith.constant 0 : index
      %c0_130 = arith.constant 0 : index
      %336 = vector.load %arg3[%c0_129, %c0_130] : memref<1x128xf32, #tpu.memory_space<vmem>>, vector<1x128xf32>
      %337 = vector.extract_strided_slice %327 {offsets = [0, 0], sizes = [1, 128], strides = [1, 1]} : vector<5x128xf32> to vector<1x128xf32>
      %338 = arith.addf %336, %337 : vector<1x128xf32>
      %339 = vector.extract_strided_slice %327 {offsets = [1, 0], sizes = [4, 128], strides = [1, 1]} : vector<5x128xf32> to vector<4x128xf32>
      %340 = arith.addf %335, %339 : vector<4x128xf32>
      %341 = tpu.concatenate %338, %340, %329 in 0 : vector<1x128xf32>, vector<4x128xf32>, vector<3x128xf32> -> vector<8x128xf32>
      %c1 = arith.constant 1 : index
      %c0_131 = arith.constant 0 : index
      %c0_132 = arith.constant 0 : index
      %342 = vector.load %arg2[%c1, %c0_131, %c0_132] : memref<2x4x768xbf16, #tpu.memory_space<vmem>>, vector<1x4x768xbf16>
      %343 = vector.shape_cast %342 : vector<1x4x768xbf16> to vector<4x768xbf16>
      %c0_133 = arith.constant 0 : index
      %c0_134 = arith.constant 0 : index
      %344 = vector.load %arg5[%c0_133, %c0_134] : memref<768x128xbf16, #tpu.memory_space<vmem>>, vector<768x128xbf16>
      %cst_135 = arith.constant dense<0.000000e+00> : vector<4x128xf32>
      %345 = tpu.matmul %343, %344, %cst_135 {dimension_numbers = #tpu.dot_dimension_numbers<[1], [0], [0], [1], [0, 0, 1, 1], [], []>} : vector<4x768xbf16>, vector<768x128xbf16>, vector<4x128xf32> -> vector<4x128xf32>
      %346 = vector.broadcast %328 : vector<1x128xf32> to vector<4x128xf32>
      %347 = arith.addf %345, %346 : vector<4x128xf32>
      %c0_136 = arith.constant 0 : index
      %c0_137 = arith.constant 0 : index
      %348 = vector.load %arg3[%c0_136, %c0_137] : memref<1x128xf32, #tpu.memory_space<vmem>>, vector<1x128xf32>
      %349 = vector.extract_strided_slice %327 {offsets = [0, 0], sizes = [1, 128], strides = [1, 1]} : vector<5x128xf32> to vector<1x128xf32>
      %350 = arith.addf %348, %349 : vector<1x128xf32>
      %351 = vector.extract_strided_slice %327 {offsets = [1, 0], sizes = [4, 128], strides = [1, 1]} : vector<5x128xf32> to vector<4x128xf32>
      %352 = arith.addf %347, %351 : vector<4x128xf32>
      %353 = tpu.concatenate %350, %352, %329 in 0 : vector<1x128xf32>, vector<4x128xf32>, vector<3x128xf32> -> vector<8x128xf32>
      %354 = tpu.concatenate %341, %353 in 0 : vector<8x128xf32>, vector<8x128xf32> -> vector<16x128xf32>
      %c0_138 = arith.constant 0 : index
      %c0_139 = arith.constant 0 : index
      %355 = vector.load %arg23[%c0_138, %c0_139] : memref<16x128xf32, #tpu.memory_space<vmem>>, vector<16x128xf32>
      tpu.vector_store %arg23[%c0_138, %c0_139], %354 {strides = array<i32>} : memref<16x128xf32, #tpu.memory_space<vmem>>, vector<16x128xf32>,
    } else {
    }
    %c0 = arith.constant 0 : index
    %c0_1 = arith.constant 0 : index
    %3 = vector.load %arg23[%c0, %c0_1] : memref<16x128xf32, #tpu.memory_space<vmem>>, vector<16x128xf32>
    %c0_2 = arith.constant 0 : index
    %c0_3 = arith.constant 0 : index
    %c0_4 = arith.constant 0 : index
    %4 = vector.load %arg7[%c0_2, %c0_3, %c0_4] : memref<1x1x128xf32, #tpu.memory_space<vmem>>, vector<1x1x128xf32>
    %5 = vector.shape_cast %4 : vector<1x1x128xf32> to vector<1x128xf32>
    %c0_5 = arith.constant 0 : index
    %c0_6 = arith.constant 0 : index
    %c0_7 = arith.constant 0 : index
    %6 = vector.load %arg8[%c0_5, %c0_6, %c0_7] : memref<1x1x128xf32, #tpu.memory_space<vmem>>, vector<1x1x128xf32>
    %7 = vector.shape_cast %6 : vector<1x1x128xf32> to vector<1x128xf32>
    %cst = arith.constant dense<0.000000e+00> : vector<16xf32>
    %8 = vector.multi_reduction <add>, %3, %cst [1] : vector<16x128xf32> to vector<16xf32>
    %9 = vector.shape_cast %8 : vector<16xf32> to vector<16x1xf32>
    %cst_8 = arith.constant 1.280000e+02 : f32
    %10 = vector.broadcast %cst_8 : f32 to vector<16x1xf32>
    %11 = arith.divf %9, %10 : vector<16x1xf32>
    %12 = vector.broadcast %11 : vector<16x1xf32> to vector<16x128xf32>
    %13 = arith.subf %3, %12 : vector<16x128xf32>
    %14 = arith.mulf %13, %13 : vector<16x128xf32>
    %cst_9 = arith.constant dense<0.000000e+00> : vector<16xf32>
    %15 = vector.multi_reduction <add>, %14, %cst_9 [1] : vector<16x128xf32> to vector<16xf32>
    %16 = vector.shape_cast %15 : vector<16xf32> to vector<16x1xf32>
    %cst_10 = arith.constant 1.280000e+02 : f32
    %17 = vector.broadcast %cst_10 : f32 to vector<16x1xf32>
    %18 = arith.divf %16, %17 : vector<16x1xf32>
    %19 = vector.broadcast %11 : vector<16x1xf32> to vector<16x128xf32>
    %20 = arith.subf %3, %19 : vector<16x128xf32>
    %cst_11 = arith.constant 9.99999997E-7 : f32
    %21 = vector.broadcast %cst_11 : f32 to vector<16x1xf32>
    %22 = arith.addf %18, %21 : vector<16x1xf32>
    %23 = math.rsqrt %22 : vector<16x1xf32>
    %24 = vector.broadcast %23 : vector<16x1xf32> to vector<16x128xf32>
    %25 = arith.mulf %20, %24 : vector<16x128xf32>
    %26 = vector.broadcast %5 : vector<1x128xf32> to vector<16x128xf32>
    %27 = arith.mulf %25, %26 : vector<16x128xf32>
    %28 = vector.broadcast %7 : vector<1x128xf32> to vector<16x128xf32>
    %29 = arith.addf %27, %28 : vector<16x128xf32>
    %30 = arith.truncf %29 : vector<16x128xf32> to vector<16x128xbf16>
    %c0_12 = arith.constant 0 : index
    %c0_13 = arith.constant 0 : index
    %c0_14 = arith.constant 0 : index
    %31 = vector.load %arg9[%c0_12, %c0_13, %c0_14] : memref<1x128x384xbf16, #tpu.memory_space<vmem>>, vector<1x128x384xbf16>
    %32 = vector.shape_cast %31 : vector<1x128x384xbf16> to vector<128x384xbf16>
    %cst_15 = arith.constant dense<0.000000e+00> : vector<16x384xf32>
    %33 = tpu.matmul %30, %32, %cst_15 {dimension_numbers = #tpu.dot_dimension_numbers<[1], [0], [0], [1], [0, 0, 1, 1], [], []>} : vector<16x128xbf16>, vector<128x384xbf16>, vector<16x384xf32> -> vector<16x384xf32>
    %c0_16 = arith.constant 0 : index
    %c0_17 = arith.constant 0 : index
    %c0_18 = arith.constant 0 : index
    %34 = vector.load %arg10[%c0_16, %c0_17, %c0_18] : memref<1x1x384xf32, #tpu.memory_space<vmem>>, vector<1x1x384xf32>
    %35 = vector.shape_cast %34 : vector<1x1x384xf32> to vector<1x384xf32>
    %36 = vector.broadcast %35 : vector<1x384xf32> to vector<16x384xf32>
    %37 = arith.addf %33, %36 : vector<16x384xf32>
    %38 = tpu.iota {dimensions = array<i32: 1>} : vector<8x8xi32>
    %c5_i32 = arith.constant 5 : i32
    %39 = vector.broadcast %c5_i32 : i32 to vector<8x8xi32>
    %40 = arith.cmpi slt, %38, %39 : vector<8x8xi32>
    %41 = vector.extract_strided_slice %37 {offsets = [0, 0], sizes = [8, 384], strides = [1, 1]} : vector<16x384xf32> to vector<8x384xf32>
    %42 = vector.extract_strided_slice %41 {offsets = [0, 0], sizes = [8, 32], strides = [1, 1]} : vector<8x384xf32> to vector<8x32xf32>
    %43 = arith.truncf %42 : vector<8x32xf32> to vector<8x32xbf16>
    %44 = vector.extract_strided_slice %41 {offsets = [0, 128], sizes = [8, 32], strides = [1, 1]} : vector<8x384xf32> to vector<8x32xf32>
    %45 = arith.truncf %44 : vector<8x32xf32> to vector<8x32xbf16>
    %46 = vector.extract_strided_slice %41 {offsets = [0, 256], sizes = [8, 32], strides = [1, 1]} : vector<8x384xf32> to vector<8x32xf32>
    %47 = arith.truncf %46 : vector<8x32xf32> to vector<8x32xbf16>
    %cst_19 = arith.constant dense<0.000000e+00> : vector<8x8xf32>
    %48 = tpu.matmul %43, %45, %cst_19 {dimension_numbers = #tpu.dot_dimension_numbers<[1], [1], [0], [0], [0, 0, 1, 0], [], []>} : vector<8x32xbf16>, vector<8x32xbf16>, vector<8x8xf32> -> vector<8x8xf32>
    %cst_20 = arith.constant 0.176776692 : f32
    %49 = vector.broadcast %cst_20 : f32 to vector<8x8xf32>
    %50 = arith.mulf %48, %49 : vector<8x8xf32>
    %cst_21 = arith.constant -1.000000e+30 : f32
    %51 = vector.broadcast %cst_21 : f32 to vector<8x8xf32>
    %52 = arith.select %40, %50, %51 : vector<8x8xi1>, vector<8x8xf32>
    %cst_22 = arith.constant dense<0xFF800000> : vector<8xf32>
    %53 = vector.multi_reduction <maximumf>, %52, %cst_22 [1] : vector<8x8xf32> to vector<8xf32>
    %54 = vector.shape_cast %53 : vector<8xf32> to vector<8x1xf32>
    %55 = vector.broadcast %54 : vector<8x1xf32> to vector<8x8xf32>
    %56 = arith.subf %52, %55 : vector<8x8xf32>
    %57 = math.exp %56 : vector<8x8xf32>
    %cst_23 = arith.constant dense<0.000000e+00> : vector<8xf32>
    %58 = vector.multi_reduction <add>, %57, %cst_23 [1] : vector<8x8xf32> to vector<8xf32>
    %59 = vector.shape_cast %58 : vector<8xf32> to vector<8x1xf32>
    %60 = tpu.reciprocal %59 {approx = true} : vector<8x1xf32> -> vector<8x1xf32>
    %61 = vector.broadcast %60 : vector<8x1xf32> to vector<8x8xf32>
    %62 = arith.mulf %57, %61 : vector<8x8xf32>
    %63 = arith.truncf %62 : vector<8x8xf32> to vector<8x8xbf16>
    %cst_24 = arith.constant dense<0.000000e+00> : vector<8x32xf32>
    %64 = tpu.matmul %63, %47, %cst_24 {dimension_numbers = #tpu.dot_dimension_numbers<[1], [0], [0], [1], [0, 0, 1, 1], [], []>} : vector<8x8xbf16>, vector<8x32xbf16>, vector<8x32xf32> -> vector<8x32xf32>
    %65 = vector.extract_strided_slice %41 {offsets = [0, 32], sizes = [8, 32], strides = [1, 1]} : vector<8x384xf32> to vector<8x32xf32>
    %66 = arith.truncf %65 : vector<8x32xf32> to vector<8x32xbf16>
    %67 = vector.extract_strided_slice %41 {offsets = [0, 160], sizes = [8, 32], strides = [1, 1]} : vector<8x384xf32> to vector<8x32xf32>
    %68 = arith.truncf %67 : vector<8x32xf32> to vector<8x32xbf16>
    %69 = vector.extract_strided_slice %41 {offsets = [0, 288], sizes = [8, 32], strides = [1, 1]} : vector<8x384xf32> to vector<8x32xf32>
    %70 = arith.truncf %69 : vector<8x32xf32> to vector<8x32xbf16>
    %cst_25 = arith.constant dense<0.000000e+00> : vector<8x8xf32>
    %71 = tpu.matmul %66, %68, %cst_25 {dimension_numbers = #tpu.dot_dimension_numbers<[1], [1], [0], [0], [0, 0, 1, 0], [], []>} : vector<8x32xbf16>, vector<8x32xbf16>, vector<8x8xf32> -> vector<8x8xf32>
    %cst_26 = arith.constant 0.176776692 : f32
    %72 = vector.broadcast %cst_26 : f32 to vector<8x8xf32>
    %73 = arith.mulf %71, %72 : vector<8x8xf32>
    %cst_27 = arith.constant -1.000000e+30 : f32
    %74 = vector.broadcast %cst_27 : f32 to vector<8x8xf32>
    %75 = arith.select %40, %73, %74 : vector<8x8xi1>, vector<8x8xf32>
    %cst_28 = arith.constant dense<0xFF800000> : vector<8xf32>
    %76 = vector.multi_reduction <maximumf>, %75, %cst_28 [1] : vector<8x8xf32> to vector<8xf32>
    %77 = vector.shape_cast %76 : vector<8xf32> to vector<8x1xf32>
    %78 = vector.broadcast %77 : vector<8x1xf32> to vector<8x8xf32>
    %79 = arith.subf %75, %78 : vector<8x8xf32>
    %80 = math.exp %79 : vector<8x8xf32>
    %cst_29 = arith.constant dense<0.000000e+00> : vector<8xf32>
    %81 = vector.multi_reduction <add>, %80, %cst_29 [1] : vector<8x8xf32> to vector<8xf32>
    %82 = vector.shape_cast %81 : vector<8xf32> to vector<8x1xf32>
    %83 = tpu.reciprocal %82 {approx = true} : vector<8x1xf32> -> vector<8x1xf32>
    %84 = vector.broadcast %83 : vector<8x1xf32> to vector<8x8xf32>
    %85 = arith.mulf %80, %84 : vector<8x8xf32>
    %86 = arith.truncf %85 : vector<8x8xf32> to vector<8x8xbf16>
    %cst_30 = arith.constant dense<0.000000e+00> : vector<8x32xf32>
    %87 = tpu.matmul %86, %70, %cst_30 {dimension_numbers = #tpu.dot_dimension_numbers<[1], [0], [0], [1], [0, 0, 1, 1], [], []>} : vector<8x8xbf16>, vector<8x32xbf16>, vector<8x32xf32> -> vector<8x32xf32>
    %88 = vector.extract_strided_slice %41 {offsets = [0, 64], sizes = [8, 32], strides = [1, 1]} : vector<8x384xf32> to vector<8x32xf32>
    %89 = arith.truncf %88 : vector<8x32xf32> to vector<8x32xbf16>
    %90 = vector.extract_strided_slice %41 {offsets = [0, 192], sizes = [8, 32], strides = [1, 1]} : vector<8x384xf32> to vector<8x32xf32>
    %91 = arith.truncf %90 : vector<8x32xf32> to vector<8x32xbf16>
    %92 = vector.extract_strided_slice %41 {offsets = [0, 320], sizes = [8, 32], strides = [1, 1]} : vector<8x384xf32> to vector<8x32xf32>
    %93 = arith.truncf %92 : vector<8x32xf32> to vector<8x32xbf16>
    %cst_31 = arith.constant dense<0.000000e+00> : vector<8x8xf32>
    %94 = tpu.matmul %89, %91, %cst_31 {dimension_numbers = #tpu.dot_dimension_numbers<[1], [1], [0], [0], [0, 0, 1, 0], [], []>} : vector<8x32xbf16>, vector<8x32xbf16>, vector<8x8xf32> -> vector<8x8xf32>
    %cst_32 = arith.constant 0.176776692 : f32
    %95 = vector.broadcast %cst_32 : f32 to vector<8x8xf32>
    %96 = arith.mulf %94, %95 : vector<8x8xf32>
    %cst_33 = arith.constant -1.000000e+30 : f32
    %97 = vector.broadcast %cst_33 : f32 to vector<8x8xf32>
    %98 = arith.select %40, %96, %97 : vector<8x8xi1>, vector<8x8xf32>
    %cst_34 = arith.constant dense<0xFF800000> : vector<8xf32>
    %99 = vector.multi_reduction <maximumf>, %98, %cst_34 [1] : vector<8x8xf32> to vector<8xf32>
    %100 = vector.shape_cast %99 : vector<8xf32> to vector<8x1xf32>
    %101 = vector.broadcast %100 : vector<8x1xf32> to vector<8x8xf32>
    %102 = arith.subf %98, %101 : vector<8x8xf32>
    %103 = math.exp %102 : vector<8x8xf32>
    %cst_35 = arith.constant dense<0.000000e+00> : vector<8xf32>
    %104 = vector.multi_reduction <add>, %103, %cst_35 [1] : vector<8x8xf32> to vector<8xf32>
    %105 = vector.shape_cast %104 : vector<8xf32> to vector<8x1xf32>
    %106 = tpu.reciprocal %105 {approx = true} : vector<8x1xf32> -> vector<8x1xf32>
    %107 = vector.broadcast %106 : vector<8x1xf32> to vector<8x8xf32>
    %108 = arith.mulf %103, %107 : vector<8x8xf32>
    %109 = arith.truncf %108 : vector<8x8xf32> to vector<8x8xbf16>
    %cst_36 = arith.constant dense<0.000000e+00> : vector<8x32xf32>
    %110 = tpu.matmul %109, %93, %cst_36 {dimension_numbers = #tpu.dot_dimension_numbers<[1], [0], [0], [1], [0, 0, 1, 1], [], []>} : vector<8x8xbf16>, vector<8x32xbf16>, vector<8x32xf32> -> vector<8x32xf32>
    %111 = vector.extract_strided_slice %41 {offsets = [0, 96], sizes = [8, 32], strides = [1, 1]} : vector<8x384xf32> to vector<8x32xf32>
    %112 = arith.truncf %111 : vector<8x32xf32> to vector<8x32xbf16>
    %113 = vector.extract_strided_slice %41 {offsets = [0, 224], sizes = [8, 32], strides = [1, 1]} : vector<8x384xf32> to vector<8x32xf32>
    %114 = arith.truncf %113 : vector<8x32xf32> to vector<8x32xbf16>
    %115 = vector.extract_strided_slice %41 {offsets = [0, 352], sizes = [8, 32], strides = [1, 1]} : vector<8x384xf32> to vector<8x32xf32>
    %116 = arith.truncf %115 : vector<8x32xf32> to vector<8x32xbf16>
    %cst_37 = arith.constant dense<0.000000e+00> : vector<8x8xf32>
    %117 = tpu.matmul %112, %114, %cst_37 {dimension_numbers = #tpu.dot_dimension_numbers<[1], [1], [0], [0], [0, 0, 1, 0], [], []>} : vector<8x32xbf16>, vector<8x32xbf16>, vector<8x8xf32> -> vector<8x8xf32>
    %cst_38 = arith.constant 0.176776692 : f32
    %118 = vector.broadcast %cst_38 : f32 to vector<8x8xf32>
    %119 = arith.mulf %117, %118 : vector<8x8xf32>
    %cst_39 = arith.constant -1.000000e+30 : f32
    %120 = vector.broadcast %cst_39 : f32 to vector<8x8xf32>
    %121 = arith.select %40, %119, %120 : vector<8x8xi1>, vector<8x8xf32>
    %cst_40 = arith.constant dense<0xFF800000> : vector<8xf32>
    %122 = vector.multi_reduction <maximumf>, %121, %cst_40 [1] : vector<8x8xf32> to vector<8xf32>
    %123 = vector.shape_cast %122 : vector<8xf32> to vector<8x1xf32>
    %124 = vector.broadcast %123 : vector<8x1xf32> to vector<8x8xf32>
    %125 = arith.subf %121, %124 : vector<8x8xf32>
    %126 = math.exp %125 : vector<8x8xf32>
    %cst_41 = arith.constant dense<0.000000e+00> : vector<8xf32>
    %127 = vector.multi_reduction <add>, %126, %cst_41 [1] : vector<8x8xf32> to vector<8xf32>
    %128 = vector.shape_cast %127 : vector<8xf32> to vector<8x1xf32>
    %129 = tpu.reciprocal %128 {approx = true} : vector<8x1xf32> -> vector<8x1xf32>
    %130 = vector.broadcast %129 : vector<8x1xf32> to vector<8x8xf32>
    %131 = arith.mulf %126, %130 : vector<8x8xf32>
    %132 = arith.truncf %131 : vector<8x8xf32> to vector<8x8xbf16>
    %cst_42 = arith.constant dense<0.000000e+00> : vector<8x32xf32>
    %133 = tpu.matmul %132, %116, %cst_42 {dimension_numbers = #tpu.dot_dimension_numbers<[1], [0], [0], [1], [0, 0, 1, 1], [], []>} : vector<8x8xbf16>, vector<8x32xbf16>, vector<8x32xf32> -> vector<8x32xf32>
    %134 = tpu.concatenate %64, %87, %110, %133 in 1 : vector<8x32xf32>, vector<8x32xf32>, vector<8x32xf32>, vector<8x32xf32> -> vector<8x128xf32>
    %135 = vector.extract_strided_slice %37 {offsets = [8, 0], sizes = [8, 384], strides = [1, 1]} : vector<16x384xf32> to vector<8x384xf32>
    %136 = vector.extract_strided_slice %135 {offsets = [0, 0], sizes = [8, 32], strides = [1, 1]} : vector<8x384xf32> to vector<8x32xf32>
    %137 = arith.truncf %136 : vector<8x32xf32> to vector<8x32xbf16>
    %138 = vector.extract_strided_slice %135 {offsets = [0, 128], sizes = [8, 32], strides = [1, 1]} : vector<8x384xf32> to vector<8x32xf32>
    %139 = arith.truncf %138 : vector<8x32xf32> to vector<8x32xbf16>
    %140 = vector.extract_strided_slice %135 {offsets = [0, 256], sizes = [8, 32], strides = [1, 1]} : vector<8x384xf32> to vector<8x32xf32>
    %141 = arith.truncf %140 : vector<8x32xf32> to vector<8x32xbf16>
    %cst_43 = arith.constant dense<0.000000e+00> : vector<8x8xf32>
    %142 = tpu.matmul %137, %139, %cst_43 {dimension_numbers = #tpu.dot_dimension_numbers<[1], [1], [0], [0], [0, 0, 1, 0], [], []>} : vector<8x32xbf16>, vector<8x32xbf16>, vector<8x8xf32> -> vector<8x8xf32>
    %cst_44 = arith.constant 0.176776692 : f32
    %143 = vector.broadcast %cst_44 : f32 to vector<8x8xf32>
    %144 = arith.mulf %142, %143 : vector<8x8xf32>
    %cst_45 = arith.constant -1.000000e+30 : f32
    %145 = vector.broadcast %cst_45 : f32 to vector<8x8xf32>
    %146 = arith.select %40, %144, %145 : vector<8x8xi1>, vector<8x8xf32>
    %cst_46 = arith.constant dense<0xFF800000> : vector<8xf32>
    %147 = vector.multi_reduction <maximumf>, %146, %cst_46 [1] : vector<8x8xf32> to vector<8xf32>
    %148 = vector.shape_cast %147 : vector<8xf32> to vector<8x1xf32>
    %149 = vector.broadcast %148 : vector<8x1xf32> to vector<8x8xf32>
    %150 = arith.subf %146, %149 : vector<8x8xf32>
    %151 = math.exp %150 : vector<8x8xf32>
    %cst_47 = arith.constant dense<0.000000e+00> : vector<8xf32>
    %152 = vector.multi_reduction <add>, %151, %cst_47 [1] : vector<8x8xf32> to vector<8xf32>
    %153 = vector.shape_cast %152 : vector<8xf32> to vector<8x1xf32>
    %154 = tpu.reciprocal %153 {approx = true} : vector<8x1xf32> -> vector<8x1xf32>
    %155 = vector.broadcast %154 : vector<8x1xf32> to vector<8x8xf32>
    %156 = arith.mulf %151, %155 : vector<8x8xf32>
    %157 = arith.truncf %156 : vector<8x8xf32> to vector<8x8xbf16>
    %cst_48 = arith.constant dense<0.000000e+00> : vector<8x32xf32>
    %158 = tpu.matmul %157, %141, %cst_48 {dimension_numbers = #tpu.dot_dimension_numbers<[1], [0], [0], [1], [0, 0, 1, 1], [], []>} : vector<8x8xbf16>, vector<8x32xbf16>, vector<8x32xf32> -> vector<8x32xf32>
    %159 = vector.extract_strided_slice %135 {offsets = [0, 32], sizes = [8, 32], strides = [1, 1]} : vector<8x384xf32> to vector<8x32xf32>
    %160 = arith.truncf %159 : vector<8x32xf32> to vector<8x32xbf16>
    %161 = vector.extract_strided_slice %135 {offsets = [0, 160], sizes = [8, 32], strides = [1, 1]} : vector<8x384xf32> to vector<8x32xf32>
    %162 = arith.truncf %161 : vector<8x32xf32> to vector<8x32xbf16>
    %163 = vector.extract_strided_slice %135 {offsets = [0, 288], sizes = [8, 32], strides = [1, 1]} : vector<8x384xf32> to vector<8x32xf32>
    %164 = arith.truncf %163 : vector<8x32xf32> to vector<8x32xbf16>
    %cst_49 = arith.constant dense<0.000000e+00> : vector<8x8xf32>
    %165 = tpu.matmul %160, %162, %cst_49 {dimension_numbers = #tpu.dot_dimension_numbers<[1], [1], [0], [0], [0, 0, 1, 0], [], []>} : vector<8x32xbf16>, vector<8x32xbf16>, vector<8x8xf32> -> vector<8x8xf32>
    %cst_50 = arith.constant 0.176776692 : f32
    %166 = vector.broadcast %cst_50 : f32 to vector<8x8xf32>
    %167 = arith.mulf %165, %166 : vector<8x8xf32>
    %cst_51 = arith.constant -1.000000e+30 : f32
    %168 = vector.broadcast %cst_51 : f32 to vector<8x8xf32>
    %169 = arith.select %40, %167, %168 : vector<8x8xi1>, vector<8x8xf32>
    %cst_52 = arith.constant dense<0xFF800000> : vector<8xf32>
    %170 = vector.multi_reduction <maximumf>, %169, %cst_52 [1] : vector<8x8xf32> to vector<8xf32>
    %171 = vector.shape_cast %170 : vector<8xf32> to vector<8x1xf32>
    %172 = vector.broadcast %171 : vector<8x1xf32> to vector<8x8xf32>
    %173 = arith.subf %169, %172 : vector<8x8xf32>
    %174 = math.exp %173 : vector<8x8xf32>
    %cst_53 = arith.constant dense<0.000000e+00> : vector<8xf32>
    %175 = vector.multi_reduction <add>, %174, %cst_53 [1] : vector<8x8xf32> to vector<8xf32>
    %176 = vector.shape_cast %175 : vector<8xf32> to vector<8x1xf32>
    %177 = tpu.reciprocal %176 {approx = true} : vector<8x1xf32> -> vector<8x1xf32>
    %178 = vector.broadcast %177 : vector<8x1xf32> to vector<8x8xf32>
    %179 = arith.mulf %174, %178 : vector<8x8xf32>
    %180 = arith.truncf %179 : vector<8x8xf32> to vector<8x8xbf16>
    %cst_54 = arith.constant dense<0.000000e+00> : vector<8x32xf32>
    %181 = tpu.matmul %180, %164, %cst_54 {dimension_numbers = #tpu.dot_dimension_numbers<[1], [0], [0], [1], [0, 0, 1, 1], [], []>} : vector<8x8xbf16>, vector<8x32xbf16>, vector<8x32xf32> -> vector<8x32xf32>
    %182 = vector.extract_strided_slice %135 {offsets = [0, 64], sizes = [8, 32], strides = [1, 1]} : vector<8x384xf32> to vector<8x32xf32>
    %183 = arith.truncf %182 : vector<8x32xf32> to vector<8x32xbf16>
    %184 = vector.extract_strided_slice %135 {offsets = [0, 192], sizes = [8, 32], strides = [1, 1]} : vector<8x384xf32> to vector<8x32xf32>
    %185 = arith.truncf %184 : vector<8x32xf32> to vector<8x32xbf16>
    %186 = vector.extract_strided_slice %135 {offsets = [0, 320], sizes = [8, 32], strides = [1, 1]} : vector<8x384xf32> to vector<8x32xf32>
    %187 = arith.truncf %186 : vector<8x32xf32> to vector<8x32xbf16>
    %cst_55 = arith.constant dense<0.000000e+00> : vector<8x8xf32>
    %188 = tpu.matmul %183, %185, %cst_55 {dimension_numbers = #tpu.dot_dimension_numbers<[1], [1], [0], [0], [0, 0, 1, 0], [], []>} : vector<8x32xbf16>, vector<8x32xbf16>, vector<8x8xf32> -> vector<8x8xf32>
    %cst_56 = arith.constant 0.176776692 : f32
    %189 = vector.broadcast %cst_56 : f32 to vector<8x8xf32>
    %190 = arith.mulf %188, %189 : vector<8x8xf32>
    %cst_57 = arith.constant -1.000000e+30 : f32
    %191 = vector.broadcast %cst_57 : f32 to vector<8x8xf32>
    %192 = arith.select %40, %190, %191 : vector<8x8xi1>, vector<8x8xf32>
    %cst_58 = arith.constant dense<0xFF800000> : vector<8xf32>
    %193 = vector.multi_reduction <maximumf>, %192, %cst_58 [1] : vector<8x8xf32> to vector<8xf32>
    %194 = vector.shape_cast %193 : vector<8xf32> to vector<8x1xf32>
    %195 = vector.broadcast %194 : vector<8x1xf32> to vector<8x8xf32>
    %196 = arith.subf %192, %195 : vector<8x8xf32>
    %197 = math.exp %196 : vector<8x8xf32>
    %cst_59 = arith.constant dense<0.000000e+00> : vector<8xf32>
    %198 = vector.multi_reduction <add>, %197, %cst_59 [1] : vector<8x8xf32> to vector<8xf32>
    %199 = vector.shape_cast %198 : vector<8xf32> to vector<8x1xf32>
    %200 = tpu.reciprocal %199 {approx = true} : vector<8x1xf32> -> vector<8x1xf32>
    %201 = vector.broadcast %200 : vector<8x1xf32> to vector<8x8xf32>
    %202 = arith.mulf %197, %201 : vector<8x8xf32>
    %203 = arith.truncf %202 : vector<8x8xf32> to vector<8x8xbf16>
    %cst_60 = arith.constant dense<0.000000e+00> : vector<8x32xf32>
    %204 = tpu.matmul %203, %187, %cst_60 {dimension_numbers = #tpu.dot_dimension_numbers<[1], [0], [0], [1], [0, 0, 1, 1], [], []>} : vector<8x8xbf16>, vector<8x32xbf16>, vector<8x32xf32> -> vector<8x32xf32>
    %205 = vector.extract_strided_slice %135 {offsets = [0, 96], sizes = [8, 32], strides = [1, 1]} : vector<8x384xf32> to vector<8x32xf32>
    %206 = arith.truncf %205 : vector<8x32xf32> to vector<8x32xbf16>
    %207 = vector.extract_strided_slice %135 {offsets = [0, 224], sizes = [8, 32], strides = [1, 1]} : vector<8x384xf32> to vector<8x32xf32>
    %208 = arith.truncf %207 : vector<8x32xf32> to vector<8x32xbf16>
    %209 = vector.extract_strided_slice %135 {offsets = [0, 352], sizes = [8, 32], strides = [1, 1]} : vector<8x384xf32> to vector<8x32xf32>
    %210 = arith.truncf %209 : vector<8x32xf32> to vector<8x32xbf16>
    %cst_61 = arith.constant dense<0.000000e+00> : vector<8x8xf32>
    %211 = tpu.matmul %206, %208, %cst_61 {dimension_numbers = #tpu.dot_dimension_numbers<[1], [1], [0], [0], [0, 0, 1, 0], [], []>} : vector<8x32xbf16>, vector<8x32xbf16>, vector<8x8xf32> -> vector<8x8xf32>
    %cst_62 = arith.constant 0.176776692 : f32
    %212 = vector.broadcast %cst_62 : f32 to vector<8x8xf32>
    %213 = arith.mulf %211, %212 : vector<8x8xf32>
    %cst_63 = arith.constant -1.000000e+30 : f32
    %214 = vector.broadcast %cst_63 : f32 to vector<8x8xf32>
    %215 = arith.select %40, %213, %214 : vector<8x8xi1>, vector<8x8xf32>
    %cst_64 = arith.constant dense<0xFF800000> : vector<8xf32>
    %216 = vector.multi_reduction <maximumf>, %215, %cst_64 [1] : vector<8x8xf32> to vector<8xf32>
    %217 = vector.shape_cast %216 : vector<8xf32> to vector<8x1xf32>
    %218 = vector.broadcast %217 : vector<8x1xf32> to vector<8x8xf32>
    %219 = arith.subf %215, %218 : vector<8x8xf32>
    %220 = math.exp %219 : vector<8x8xf32>
    %cst_65 = arith.constant dense<0.000000e+00> : vector<8xf32>
    %221 = vector.multi_reduction <add>, %220, %cst_65 [1] : vector<8x8xf32> to vector<8xf32>
    %222 = vector.shape_cast %221 : vector<8xf32> to vector<8x1xf32>
    %223 = tpu.reciprocal %222 {approx = true} : vector<8x1xf32> -> vector<8x1xf32>
    %224 = vector.broadcast %223 : vector<8x1xf32> to vector<8x8xf32>
    %225 = arith.mulf %220, %224 : vector<8x8xf32>
    %226 = arith.truncf %225 : vector<8x8xf32> to vector<8x8xbf16>
    %cst_66 = arith.constant dense<0.000000e+00> : vector<8x32xf32>
    %227 = tpu.matmul %226, %210, %cst_66 {dimension_numbers = #tpu.dot_dimension_numbers<[1], [0], [0], [1], [0, 0, 1, 1], [], []>} : vector<8x8xbf16>, vector<8x32xbf16>, vector<8x32xf32> -> vector<8x32xf32>
    %228 = tpu.concatenate %158, %181, %204, %227 in 1 : vector<8x32xf32>, vector<8x32xf32>, vector<8x32xf32>, vector<8x32xf32> -> vector<8x128xf32>
    %229 = tpu.concatenate %134, %228 in 0 : vector<8x128xf32>, vector<8x128xf32> -> vector<16x128xf32>
    %230 = arith.truncf %229 : vector<16x128xf32> to vector<16x128xbf16>
    %c0_67 = arith.constant 0 : index
    %c0_68 = arith.constant 0 : index
    %c0_69 = arith.constant 0 : index
    %231 = vector.load %arg11[%c0_67, %c0_68, %c0_69] : memref<1x128x128xbf16, #tpu.memory_space<vmem>>, vector<1x128x128xbf16>
    %232 = vector.shape_cast %231 : vector<1x128x128xbf16> to vector<128x128xbf16>
    %cst_70 = arith.constant dense<0.000000e+00> : vector<16x128xf32>
    %233 = tpu.matmul %230, %232, %cst_70 {dimension_numbers = #tpu.dot_dimension_numbers<[1], [0], [0], [1], [0, 0, 1, 1], [], []>} : vector<16x128xbf16>, vector<128x128xbf16>, vector<16x128xf32> -> vector<16x128xf32>
    %234 = arith.addf %3, %233 : vector<16x128xf32>
    %c0_71 = arith.constant 0 : index
    %c0_72 = arith.constant 0 : index
    %c0_73 = arith.constant 0 : index
    %235 = vector.load %arg12[%c0_71, %c0_72, %c0_73] : memref<1x1x128xf32, #tpu.memory_space<vmem>>, vector<1x1x128xf32>
    %236 = vector.shape_cast %235 : vector<1x1x128xf32> to vector<1x128xf32>
    %237 = vector.broadcast %236 : vector<1x128xf32> to vector<16x128xf32>
    %238 = arith.addf %234, %237 : vector<16x128xf32>
    %c0_74 = arith.constant 0 : index
    %c0_75 = arith.constant 0 : index
    %c0_76 = arith.constant 0 : index
    %239 = vector.load %arg13[%c0_74, %c0_75, %c0_76] : memref<1x1x128xf32, #tpu.memory_space<vmem>>, vector<1x1x128xf32>
    %240 = vector.shape_cast %239 : vector<1x1x128xf32> to vector<1x128xf32>
    %c0_77 = arith.constant 0 : index
    %c0_78 = arith.constant 0 : index
    %c0_79 = arith.constant 0 : index
    %241 = vector.load %arg14[%c0_77, %c0_78, %c0_79] : memref<1x1x128xf32, #tpu.memory_space<vmem>>, vector<1x1x128xf32>
    %242 = vector.shape_cast %241 : vector<1x1x128xf32> to vector<1x128xf32>
    %cst_80 = arith.constant dense<0.000000e+00> : vector<16xf32>
    %243 = vector.multi_reduction <add>, %238, %cst_80 [1] : vector<16x128xf32> to vector<16xf32>
    %244 = vector.shape_cast %243 : vector<16xf32> to vector<16x1xf32>
    %cst_81 = arith.constant 1.280000e+02 : f32
    %245 = vector.broadcast %cst_81 : f32 to vector<16x1xf32>
    %246 = arith.divf %244, %245 : vector<16x1xf32>
    %247 = vector.broadcast %246 : vector<16x1xf32> to vector<16x128xf32>
    %248 = arith.subf %238, %247 : vector<16x128xf32>
    %249 = arith.mulf %248, %248 : vector<16x128xf32>
    %cst_82 = arith.constant dense<0.000000e+00> : vector<16xf32>
    %250 = vector.multi_reduction <add>, %249, %cst_82 [1] : vector<16x128xf32> to vector<16xf32>
    %251 = vector.shape_cast %250 : vector<16xf32> to vector<16x1xf32>
    %cst_83 = arith.constant 1.280000e+02 : f32
    %252 = vector.broadcast %cst_83 : f32 to vector<16x1xf32>
    %253 = arith.divf %251, %252 : vector<16x1xf32>
    %254 = vector.broadcast %246 : vector<16x1xf32> to vector<16x128xf32>
    %255 = arith.subf %238, %254 : vector<16x128xf32>
    %cst_84 = arith.constant 9.99999997E-7 : f32
    %256 = vector.broadcast %cst_84 : f32 to vector<16x1xf32>
    %257 = arith.addf %253, %256 : vector<16x1xf32>
    %258 = math.rsqrt %257 : vector<16x1xf32>
    %259 = vector.broadcast %258 : vector<16x1xf32> to vector<16x128xf32>
    %260 = arith.mulf %255, %259 : vector<16x128xf32>
    %261 = vector.broadcast %240 : vector<1x128xf32> to vector<16x128xf32>
    %262 = arith.mulf %260, %261 : vector<16x128xf32>
    %263 = vector.broadcast %242 : vector<1x128xf32> to vector<16x128xf32>
    %264 = arith.addf %262, %263 : vector<16x128xf32>
    %265 = arith.truncf %264 : vector<16x128xf32> to vector<16x128xbf16>
    %c0_85 = arith.constant 0 : index
    %c0_86 = arith.constant 0 : index
    %c0_87 = arith.constant 0 : index
    %266 = vector.load %arg15[%c0_85, %c0_86, %c0_87] : memref<1x128x512xbf16, #tpu.memory_space<vmem>>, vector<1x128x512xbf16>
    %267 = vector.shape_cast %266 : vector<1x128x512xbf16> to vector<128x512xbf16>
    %cst_88 = arith.constant dense<0.000000e+00> : vector<16x512xf32>
    %268 = tpu.matmul %265, %267, %cst_88 {dimension_numbers = #tpu.dot_dimension_numbers<[1], [0], [0], [1], [0, 0, 1, 1], [], []>} : vector<16x128xbf16>, vector<128x512xbf16>, vector<16x512xf32> -> vector<16x512xf32>
    %c0_89 = arith.constant 0 : index
    %c0_90 = arith.constant 0 : index
    %c0_91 = arith.constant 0 : index
    %269 = vector.load %arg16[%c0_89, %c0_90, %c0_91] : memref<1x1x512xf32, #tpu.memory_space<vmem>>, vector<1x1x512xf32>
    %270 = vector.shape_cast %269 : vector<1x1x512xf32> to vector<1x512xf32>
    %271 = vector.broadcast %270 : vector<1x512xf32> to vector<16x512xf32>
    %272 = arith.addf %268, %271 : vector<16x512xf32>
    %cst_92 = arith.constant 5.000000e-01 : f32
    %273 = vector.broadcast %cst_92 : f32 to vector<16x512xf32>
    %274 = arith.mulf %273, %272 : vector<16x512xf32>
    %cst_93 = arith.constant 0.707106769 : f32
    %275 = vector.broadcast %cst_93 : f32 to vector<16x512xf32>
    %276 = arith.mulf %272, %275 : vector<16x512xf32>
    %cst_94 = arith.constant 0.000000e+00 : f32
    %277 = vector.broadcast %cst_94 : f32 to vector<16x512xf32>
    %278 = arith.cmpf oge, %276, %277 : vector<16x512xf32>
    %cst_95 = arith.constant 1.000000e+00 : f32
    %cst_96 = arith.constant -1.000000e+00 : f32
    %279 = vector.broadcast %cst_95 : f32 to vector<16x512xf32>
    %280 = vector.broadcast %cst_96 : f32 to vector<16x512xf32>
    %281 = arith.select %278, %279, %280 : vector<16x512xi1>, vector<16x512xf32>
    %282 = math.absf %276 : vector<16x512xf32>
    %cst_97 = arith.constant 0.327591091 : f32
    %283 = vector.broadcast %cst_97 : f32 to vector<16x512xf32>
    %284 = arith.mulf %283, %282 : vector<16x512xf32>
    %cst_98 = arith.constant 1.000000e+00 : f32
    %285 = vector.broadcast %cst_98 : f32 to vector<16x512xf32>
    %286 = arith.addf %285, %284 : vector<16x512xf32>
    %cst_99 = arith.constant 1.000000e+00 : f32
    %287 = vector.broadcast %cst_99 : f32 to vector<16x512xf32>
    %288 = arith.divf %287, %286 : vector<16x512xf32>
    %cst_100 = arith.constant 1.06140542 : f32
    %289 = vector.broadcast %cst_100 : f32 to vector<16x512xf32>
    %290 = arith.mulf %289, %288 : vector<16x512xf32>
    %cst_101 = arith.constant -1.45315206 : f32
    %291 = vector.broadcast %cst_101 : f32 to vector<16x512xf32>
    %292 = arith.addf %290, %291 : vector<16x512xf32>
    %293 = arith.mulf %292, %288 : vector<16x512xf32>
    %cst_102 = arith.constant 1.42141378 : f32
    %294 = vector.broadcast %cst_102 : f32 to vector<16x512xf32>
    %295 = arith.addf %293, %294 : vector<16x512xf32>
    %296 = arith.mulf %295, %288 : vector<16x512xf32>
    %cst_103 = arith.constant -0.284496725 : f32
    %297 = vector.broadcast %cst_103 : f32 to vector<16x512xf32>
    %298 = arith.addf %296, %297 : vector<16x512xf32>
    %299 = arith.mulf %298, %288 : vector<16x512xf32>
    %cst_104 = arith.constant 0.254829586 : f32
    %300 = vector.broadcast %cst_104 : f32 to vector<16x512xf32>
    %301 = arith.addf %299, %300 : vector<16x512xf32>
    %302 = arith.mulf %301, %288 : vector<16x512xf32>
    %cst_105 = arith.constant 0.000000e+00 : f32
    %303 = vector.broadcast %cst_105 : f32 to vector<16x512xf32>
    %304 = arith.subf %303, %282 : vector<16x512xf32>
    %305 = arith.mulf %304, %282 : vector<16x512xf32>
    %306 = math.exp %305 : vector<16x512xf32>
    %307 = arith.mulf %302, %306 : vector<16x512xf32>
    %cst_106 = arith.constant 1.000000e+00 : f32
    %308 = vector.broadcast %cst_106 : f32 to vector<16x512xf32>
    %309 = arith.subf %308, %307 : vector<16x512xf32>
    %310 = arith.mulf %281, %309 : vector<16x512xf32>
    %cst_107 = arith.constant 1.000000e+00 : f32
    %311 = vector.broadcast %cst_107 : f32 to vector<16x512xf32>
    %312 = arith.addf %311, %310 : vector<16x512xf32>
    %313 = arith.mulf %274, %312 : vector<16x512xf32>
    %314 = arith.truncf %313 : vector<16x512xf32> to vector<16x512xbf16>
    %c0_108 = arith.constant 0 : index
    %c0_109 = arith.constant 0 : index
    %c0_110 = arith.constant 0 : index
    %315 = vector.load %arg17[%c0_108, %c0_109, %c0_110] : memref<1x512x128xbf16, #tpu.memory_space<vmem>>, vector<1x512x128xbf16>
    %316 = vector.shape_cast %315 : vector<1x512x128xbf16> to vector<512x128xbf16>
    %cst_111 = arith.constant dense<0.000000e+00> : vector<16x128xf32>
    %317 = tpu.matmul %314, %316, %cst_111 {dimension_numbers = #tpu.dot_dimension_numbers<[1], [0], [0], [1], [0, 0, 1, 1], [], []>} : vector<16x512xbf16>, vector<512x128xbf16>, vector<16x128xf32> -> vector<16x128xf32>
    %318 = arith.addf %238, %317 : vector<16x128xf32>
    %c0_112 = arith.constant 0 : index
    %c0_113 = arith.constant 0 : index
    %c0_114 = arith.constant 0 : index
    %319 = vector.load %arg18[%c0_112, %c0_113, %c0_114] : memref<1x1x128xf32, #tpu.memory_space<vmem>>, vector<1x1x128xf32>
    %320 = vector.shape_cast %319 : vector<1x1x128xf32> to vector<1x128xf32>
    %321 = vector.broadcast %320 : vector<1x128xf32> to vector<16x128xf32>
    %322 = arith.addf %318, %321 : vector<16x128xf32>
    %c0_115 = arith.constant 0 : index
    %c0_116 = arith.constant 0 : index
    %323 = vector.load %arg23[%c0_115, %c0_116] : memref<16x128xf32, #tpu.memory_space<vmem>>, vector<16x128xf32>
    tpu.vector_store %arg23[%c0_115, %c0_116], %322 {strides = array<i32>} : memref<16x128xf32, #tpu.memory_space<vmem>>, vector<16x128xf32>,
    %c1_i32 = arith.constant 1 : i32
    %324 = arith.cmpi eq, %arg1, %c1_i32 : i32
    %325 = arith.extui %324 : i1 to i32
    %c0_i32_117 = arith.constant 0 : i32
    %326 = arith.cmpi ne, %325, %c0_i32_117 : i32
    scf.if %326 {
      %c0_118 = arith.constant 0 : index
      %c0_119 = arith.constant 0 : index
      %327 = vector.load %arg19[%c0_118, %c0_119] : memref<1x128xf32, #tpu.memory_space<vmem>>, vector<1x128xf32>
      %c0_120 = arith.constant 0 : index
      %c0_121 = arith.constant 0 : index
      %328 = vector.load %arg20[%c0_120, %c0_121] : memref<1x128xf32, #tpu.memory_space<vmem>>, vector<1x128xf32>
      %cst_122 = arith.constant dense<0.000000e+00> : vector<16xf32>
      %329 = vector.multi_reduction <add>, %322, %cst_122 [1] : vector<16x128xf32> to vector<16xf32>
      %330 = vector.shape_cast %329 : vector<16xf32> to vector<16x1xf32>
      %cst_123 = arith.constant 1.280000e+02 : f32
      %331 = vector.broadcast %cst_123 : f32 to vector<16x1xf32>
      %332 = arith.divf %330, %331 : vector<16x1xf32>
      %333 = vector.broadcast %332 : vector<16x1xf32> to vector<16x128xf32>
      %334 = arith.subf %322, %333 : vector<16x128xf32>
      %335 = arith.mulf %334, %334 : vector<16x128xf32>
      %cst_124 = arith.constant dense<0.000000e+00> : vector<16xf32>
      %336 = vector.multi_reduction <add>, %335, %cst_124 [1] : vector<16x128xf32> to vector<16xf32>
      %337 = vector.shape_cast %336 : vector<16xf32> to vector<16x1xf32>
      %cst_125 = arith.constant 1.280000e+02 : f32
      %338 = vector.broadcast %cst_125 : f32 to vector<16x1xf32>
      %339 = arith.divf %337, %338 : vector<16x1xf32>
      %340 = vector.broadcast %332 : vector<16x1xf32> to vector<16x128xf32>
      %341 = arith.subf %322, %340 : vector<16x128xf32>
      %cst_126 = arith.constant 9.99999997E-7 : f32
      %342 = vector.broadcast %cst_126 : f32 to vector<16x1xf32>
      %343 = arith.addf %339, %342 : vector<16x1xf32>
      %344 = math.rsqrt %343 : vector<16x1xf32>
      %345 = vector.broadcast %344 : vector<16x1xf32> to vector<16x128xf32>
      %346 = arith.mulf %341, %345 : vector<16x128xf32>
      %347 = vector.broadcast %327 : vector<1x128xf32> to vector<16x128xf32>
      %348 = arith.mulf %346, %347 : vector<16x128xf32>
      %349 = vector.broadcast %328 : vector<1x128xf32> to vector<16x128xf32>
      %350 = arith.addf %348, %349 : vector<16x128xf32>
      %351 = vector.extract_strided_slice %350 {offsets = [0, 0], sizes = [1, 128], strides = [1, 1]} : vector<16x128xf32> to vector<1x128xf32>
      %352 = vector.extract_strided_slice %350 {offsets = [8, 0], sizes = [1, 128], strides = [1, 1]} : vector<16x128xf32> to vector<1x128xf32>
      %353 = tpu.concatenate %351, %352 in 0 : vector<1x128xf32>, vector<1x128xf32> -> vector<2x128xf32>
      %354 = arith.truncf %353 : vector<2x128xf32> to vector<2x128xbf16>
      %c0_127 = arith.constant 0 : index
      %c0_128 = arith.constant 0 : index
      %355 = vector.load %arg21[%c0_127, %c0_128] : memref<128x128xbf16, #tpu.memory_space<vmem>>, vector<128x128xbf16>
      %cst_129 = arith.constant dense<0.000000e+00> : vector<2x128xf32>
      %356 = tpu.matmul %354, %355, %cst_129 {dimension_numbers = #tpu.dot_dimension_numbers<[1], [0], [0], [1], [0, 0, 1, 1], [], []>} : vector<2x128xbf16>, vector<128x128xbf16>, vector<2x128xf32> -> vector<2x128xf32>
      %357 = arith.mulf %356, %356 : vector<2x128xf32>
      %cst_130 = arith.constant dense<0.000000e+00> : vector<2xf32>
      %358 = vector.multi_reduction <add>, %357, %cst_130 [1] : vector<2x128xf32> to vector<2xf32>
      %359 = vector.shape_cast %358 : vector<2xf32> to vector<2x1xf32>
      %360 = math.sqrt %359 : vector<2x1xf32>
      %cst_131 = arith.constant 9.99999996E-13 : f32
      %361 = vector.broadcast %cst_131 : f32 to vector<2x1xf32>
      %362 = arith.maximumf %360, %361 : vector<2x1xf32>
      %363 = vector.broadcast %362 : vector<2x1xf32> to vector<2x128xf32>
      %364 = arith.divf %356, %363 : vector<2x128xf32>
      %c0_132 = arith.constant 0 : index
      %c0_133 = arith.constant 0 : index
      %c0_134 = arith.constant 0 : index
      %365 = vector.load %arg22[%c0_132, %c0_133, %c0_134] : memref<1x2x128xf32, #tpu.memory_space<vmem>>, vector<1x2x128xf32>
      %366 = vector.shape_cast %365 : vector<1x2x128xf32> to vector<2x128xf32>
      %367 = vector.shape_cast %364 : vector<2x128xf32> to vector<1x2x128xf32>
      tpu.vector_store %arg22[%c0_132, %c0_133, %c0_134], %367 {strides = array<i32>} : memref<1x2x128xf32, #tpu.memory_space<vmem>>, vector<1x2x128xf32>,
    } else {
    }
    return
  }
  func.func @transform_0(%arg0: i32, %arg1: i32) -> (i32, i32, i32) {
    %c0_i32 = arith.constant 0 : i32
    %c0_i32_0 = arith.constant 0 : i32
    %c0_i32_1 = arith.constant 0 : i32
    return %arg0, %c0_i32, %c0_i32_0 : i32, i32, i32
  }
  func.func @transform_1(%arg0: i32, %arg1: i32) -> (i32, i32) {
    %c0_i32 = arith.constant 0 : i32
    %c0_i32_0 = arith.constant 0 : i32
    %c0_i32_1 = arith.constant 0 : i32
    return %c0_i32, %c0_i32_0 : i32, i32
  }
  func.func @transform_2(%arg0: i32, %arg1: i32) -> (i32, i32) {
    %c0_i32 = arith.constant 0 : i32
    %c0_i32_0 = arith.constant 0 : i32
    %c0_i32_1 = arith.constant 0 : i32
    return %c0_i32, %c0_i32_0 : i32, i32
  }
  func.func @transform_3(%arg0: i32, %arg1: i32) -> (i32, i32) {
    %c0_i32 = arith.constant 0 : i32
    %c0_i32_0 = arith.constant 0 : i32
    %c0_i32_1 = arith.constant 0 : i32
    return %c0_i32, %c0_i32_0 : i32, i32
  }
  func.func @transform_4(%arg0: i32, %arg1: i32) -> (i32, i32) {
    %c0_i32 = arith.constant 0 : i32
    %c0_i32_0 = arith.constant 0 : i32
    %c0_i32_1 = arith.constant 0 : i32
    return %c0_i32, %c0_i32_0 : i32, i32
  }
  func.func @transform_5(%arg0: i32, %arg1: i32) -> (i32, i32, i32) {
    %c0_i32 = arith.constant 0 : i32
    %c0_i32_0 = arith.constant 0 : i32
    %c0_i32_1 = arith.constant 0 : i32
    return %arg1, %c0_i32, %c0_i32_0 : i32, i32, i32
  }
  func.func @transform_6(%arg0: i32, %arg1: i32) -> (i32, i32, i32) {
    %c0_i32 = arith.constant 0 : i32
    %c0_i32_0 = arith.constant 0 : i32
    %c0_i32_1 = arith.constant 0 : i32
    return %arg1, %c0_i32, %c0_i32_0 : i32, i32, i32
  }
  func.func @transform_7(%arg0: i32, %arg1: i32) -> (i32, i32, i32) {
    %c0_i32 = arith.constant 0 : i32
    %c0_i32_0 = arith.constant 0 : i32
    %c0_i32_1 = arith.constant 0 : i32
    return %arg1, %c0_i32, %c0_i32_0 : i32, i32, i32
  }
  func.func @transform_8(%arg0: i32, %arg1: i32) -> (i32, i32, i32) {
    %c0_i32 = arith.constant 0 : i32
    %c0_i32_0 = arith.constant 0 : i32
    %c0_i32_1 = arith.constant 0 : i32
    return %arg1, %c0_i32, %c0_i32_0 : i32, i32, i32
  }
  func.func @transform_9(%arg0: i32, %arg1: i32) -> (i32, i32, i32) {
    %c0_i32 = arith.constant 0 : i32
    %c0_i32_0 = arith.constant 0 : i32
    %c0_i32_1 = arith.constant 0 : i32
    return %arg1, %c0_i32, %c0_i32_0 : i32, i32, i32
  }
  func.func @transform_10(%arg0: i32, %arg1: i32) -> (i32, i32, i32) {
    %c0_i32 = arith.constant 0 : i32
    %c0_i32_0 = arith.constant 0 : i32
    %c0_i32_1 = arith.constant 0 : i32
    return %arg1, %c0_i32, %c0_i32_0 : i32, i32, i32
  }
  func.func @transform_11(%arg0: i32, %arg1: i32) -> (i32, i32, i32) {
    %c0_i32 = arith.constant 0 : i32
    %c0_i32_0 = arith.constant 0 : i32
    %c0_i32_1 = arith.constant 0 : i32
    return %arg1, %c0_i32, %c0_i32_0 : i32, i32, i32
  }
  func.func @transform_12(%arg0: i32, %arg1: i32) -> (i32, i32, i32) {
    %c0_i32 = arith.constant 0 : i32
    %c0_i32_0 = arith.constant 0 : i32
    %c0_i32_1 = arith.constant 0 : i32
    return %arg1, %c0_i32, %c0_i32_0 : i32, i32, i32
  }
  func.func @transform_13(%arg0: i32, %arg1: i32) -> (i32, i32, i32) {
    %c0_i32 = arith.constant 0 : i32
    %c0_i32_0 = arith.constant 0 : i32
    %c0_i32_1 = arith.constant 0 : i32
    return %arg1, %c0_i32, %c0_i32_0 : i32, i32, i32
  }
  func.func @transform_14(%arg0: i32, %arg1: i32) -> (i32, i32, i32) {
    %c0_i32 = arith.constant 0 : i32
    %c0_i32_0 = arith.constant 0 : i32
    %c0_i32_1 = arith.constant 0 : i32
    return %arg1, %c0_i32, %c0_i32_0 : i32, i32, i32
  }
  func.func @transform_15(%arg0: i32, %arg1: i32) -> (i32, i32, i32) {
    %c0_i32 = arith.constant 0 : i32
    %c0_i32_0 = arith.constant 0 : i32
    %c0_i32_1 = arith.constant 0 : i32
    return %arg1, %c0_i32, %c0_i32_0 : i32, i32, i32
  }
  func.func @transform_16(%arg0: i32, %arg1: i32) -> (i32, i32, i32) {
    %c0_i32 = arith.constant 0 : i32
    %c0_i32_0 = arith.constant 0 : i32
    %c0_i32_1 = arith.constant 0 : i32
    return %arg1, %c0_i32, %c0_i32_0 : i32, i32, i32
  }
  func.func @transform_17(%arg0: i32, %arg1: i32) -> (i32, i32) {
    %c0_i32 = arith.constant 0 : i32
    %c0_i32_0 = arith.constant 0 : i32
    %c0_i32_1 = arith.constant 0 : i32
    return %c0_i32, %c0_i32_0 : i32, i32
  }
  func.func @transform_18(%arg0: i32, %arg1: i32) -> (i32, i32) {
    %c0_i32 = arith.constant 0 : i32
    %c0_i32_0 = arith.constant 0 : i32
    %c0_i32_1 = arith.constant 0 : i32
    return %c0_i32, %c0_i32_0 : i32, i32
  }
  func.func @transform_19(%arg0: i32, %arg1: i32) -> (i32, i32) {
    %c0_i32 = arith.constant 0 : i32
    %c0_i32_0 = arith.constant 0 : i32
    %c0_i32_1 = arith.constant 0 : i32
    return %c0_i32, %c0_i32_0 : i32, i32
  }
  func.func @transform_20(%arg0: i32, %arg1: i32) -> (i32, i32, i32) {
    %c0_i32 = arith.constant 0 : i32
    %c0_i32_0 = arith.constant 0 : i32
    %c0_i32_1 = arith.constant 0 : i32
    return %arg0, %c0_i32, %c0_i32_0 : i32, i32, i32
  }
}

</mosaic_0001>

<llo_original>
// kernel: tpu_custom_call.1
$region0: #{tpu_custom_call.1}
  #allocation0 [shape = 'u32[]', space=smem, size = 0x4, offset = 0x4, fixed_abs, tag = 'smem constant byte address 0x4 - core index']
  #allocation1 [shape = 'u32[72,128]{1,0:T(1,128)}', space=vmem, size = 0x9000, scoped, tag = 'internal scratch']
  #allocation2 [shape = 'f32[16,128]{1,0:T(8,128)}', space=vmem, size = 0x2000, scoped, tag = 'scratch operand']
  %s0 = inlined_call_operand.hbm [shape: bf16[2,4,768], index: 0, kind: input, shape index: {}]
  %s1 = inlined_call_operand.hbm [shape: f32[1,128], index: 1, kind: input, shape index: {}]
  %s2 = inlined_call_operand.hbm [shape: f32[5,128], index: 2, kind: input, shape index: {}]
  %s3 = inlined_call_operand.hbm [shape: bf16[768,128], index: 3, kind: input, shape index: {}]
  %s4 = inlined_call_operand.hbm [shape: f32[1,128], index: 4, kind: input, shape index: {}]
  %s5 = inlined_call_operand.vmem [shape: f32[2,1,128], index: 5, kind: input, shape index: {}]
  %s6 = inlined_call_operand.vmem [shape: f32[2,1,128], index: 6, kind: input, shape index: {}]
  %s7 = inlined_call_operand.hbm [shape: bf16[2,128,384], index: 7, kind: input, shape index: {}]
  %s8 = inlined_call_operand.hbm [shape: f32[2,1,384], index: 8, kind: input, shape index: {}]
  %s9 = inlined_call_operand.hbm [shape: bf16[2,128,128], index: 9, kind: input, shape index: {}]
  %s10 = inlined_call_operand.hbm [shape: f32[2,1,128], index: 10, kind: input, shape index: {}]
  %s11 = inlined_call_operand.hbm [shape: f32[2,1,128], index: 11, kind: input, shape index: {}]
  %s12 = inlined_call_operand.hbm [shape: f32[2,1,128], index: 12, kind: input, shape index: {}]
  %s13 = inlined_call_operand.hbm [shape: bf16[2,128,512], index: 13, kind: input, shape index: {}]
  %s14 = inlined_call_operand.vmem [shape: f32[2,1,512], index: 14, kind: input, shape index: {}]
  %s15 = inlined_call_operand.hbm [shape: bf16[2,512,128], index: 15, kind: input, shape index: {}]
  %s16 = inlined_call_operand.vmem [shape: f32[2,1,128], index: 16, kind: input, shape index: {}]
  %s17 = inlined_call_operand.vmem [shape: f32[1,128], index: 17, kind: input, shape index: {}]
  %s18 = inlined_call_operand.vmem [shape: f32[1,128], index: 18, kind: input, shape index: {}]
  %s19 = inlined_call_operand.hbm [shape: bf16[128,128], index: 19, kind: input, shape index: {}]
  %s20 = inlined_call_operand.hbm [shape: f32[1,2,128], index: 20, kind: output, shape index: {}]
  %s21 = sld [smem:[#allocation0]]
  $region177: #{tpu_custom_call.1} parent=0
    _
  %s23 = ssub.s32 1, %s21
  %s24 = scalar_select 0, %s23, %s21
  $region1: #{tpu_custom_call.1} parent=0
    #allocation3 [shape = 'u8[12288]{0}', space=vmem, size = 0x3000, scoped, tag = 'input window, operand 0, single buffered']
    #allocation4 [shape = 's32[2]{0}', space=sflag, size = 0x8, scoped, tag = 'scoped memory for tpu_custom_call.1']
    #allocation5 [shape = 's32[2]{0}', space=sflag, size = 0x8, scoped, tag = 'scoped memory for tpu_custom_call.1']
    #allocation6 [shape = 'u8[512]{0}', space=vmem, size = 0x400, scoped, tag = 'input window, operand 1, single buffered']
    #allocation7 [shape = 's32[1]{0}', space=sflag, size = 0x4, scoped, tag = 'scoped memory for tpu_custom_call.1']
    #allocation8 [shape = 'u8[4096]{0}', space=vmem, size = 0x1000, scoped, tag = 'input window, operand 2, single buffered']
    #allocation9 [shape = 'u8[196608]{0}', space=vmem, size = 0x30000, scoped, tag = 'input window, operand 3, single buffered']
    #allocation10 [shape = 's32[1]{0}', space=sflag, size = 0x4, scoped, tag = 'scoped memory for tpu_custom_call.1']
    #allocation11 [shape = 'u8[512]{0}', space=vmem, size = 0x400, scoped, tag = 'input window, operand 4, single buffered']
    #allocation12 [shape = 'u8[196608]{0}', space=vmem, size = 0x30000, scoped, tag = 'input window, operand 7']
    #allocation13 [shape = 's32[2]{0}', space=sflag, size = 0x8, scoped, tag = 'scoped memory for tpu_custom_call.1']
    #allocation14 [shape = 'u8[3072]{0}', space=vmem, size = 0xc00, scoped, tag = 'input window, operand 8']
    #allocation15 [shape = 'u8[65536]{0}', space=vmem, size = 0x10000, scoped, tag = 'input window, operand 9']
    #allocation16 [shape = 's32[2]{0}', space=sflag, size = 0x8, scoped, tag = 'scoped memory for tpu_custom_call.1']
    #allocation17 [shape = 'u8[1024]{0}', space=vmem, size = 0x400, scoped, tag = 'input window, operand 10']
    #allocation18 [shape = 'u8[1024]{0}', space=vmem, size = 0x400, scoped, tag = 'input window, operand 11']
    #allocation19 [shape = 's32[2]{0}', space=sflag, size = 0x8, scoped, tag = 'scoped memory for tpu_custom_call.1']
    #allocation20 [shape = 'u8[1024]{0}', space=vmem, size = 0x400, scoped, tag = 'input window, operand 12']
    #allocation21 [shape = 'u8[262144]{0}', space=vmem, size = 0x40000, scoped, tag = 'input window, operand 13']
    #allocation22 [shape = 's32[2]{0}', space=sflag, size = 0x8, scoped, tag = 'scoped memory for tpu_custom_call.1']
    #allocation23 [shape = 'u8[262144]{0}', space=vmem, size = 0x40000, scoped, tag = 'input window, operand 15']
    #allocation24 [shape = 'u8[32768]{0}', space=vmem, size = 0x8000, scoped, tag = 'input window, operand 19, single buffered']
    #allocation25 [shape = 's32[1]{0}', space=sflag, size = 0x4, scoped, tag = 'scoped memory for tpu_custom_call.1']
    #allocation26 [shape = 'u8[1024]{0}', space=vmem, size = 0x400, scoped, tag = 'output window, operand 0, single buffered']
    %25 = vsyncpa [#allocation4], 0
    %26 = vsyncpa [#allocation7], 0
    %27 = vsyncpa [#allocation10], 0
    %28 = vsyncpa [#allocation13], 0
    %s29 = scalar_lea.sflag [#allocation13], 1
    %30 = vsyncpa %s29, 0
    %31 = vsyncpa [#allocation16], 0
    %s32 = scalar_lea.sflag [#allocation16], 1
    %33 = vsyncpa %s32, 0
    %34 = vsyncpa [#allocation19], 0
    %s35 = scalar_lea.sflag [#allocation19], 1
    %36 = vsyncpa %s35, 0
    %37 = vsyncpa [#allocation22], 0
    %s38 = scalar_lea.sflag [#allocation22], 1
    %39 = vsyncpa %s38, 0
    %40 = vsyncpa [#allocation25], 0
    %41 = vsyncpa [#allocation5], 0
    loop: start=0, step=1, limit=4
    $region2: #{tpu_custom_call.1} parent=1 // loop_pre_header
      _
    $region3: #{tpu_custom_call.1} parent=1 // loop_header
      %s43 = sphi 0, %s47
      %p44 = scmp.ge.s32.totalorder %s43, 4
      %s50 = sphi 0, %s62
      %s51 = sphi 0, %s58
      %s52 = sphi 0, %s50
      %s53 = sphi 0, %s51
      %s54 = sphi 0, %s52
      %s55 = sphi 0, %s53
      %s65 = sphi 0, %s67
      %s68 = sphi 0, %s65
      %s69 = sphi 0, %s68
      %s85 = sphi 0, %s69
      %s89 = sphi 0, %s89
      %s91 = sphi 0, %s89
      %s92 = sphi 0, %s91
      %s106 = sphi 0, %s92
      %s110 = sphi 0, %s110
      %s112 = sphi 0, %s110
      %s113 = sphi 0, %s112
      %s127 = sphi 0, %s113
      %s131 = sphi 0, %s131
      %s133 = sphi 0, %s131
      %s134 = sphi 0, %s133
      %s148 = sphi 0, %s134
      %s152 = sphi 0, %s152
      %s154 = sphi 0, %s152
      %s155 = sphi 0, %s154
      %s169 = sphi 0, %s155
      %s175 = sphi 0, %s177
      %s178 = sphi 0, %s175
      %s179 = sphi 0, %s178
      %s195 = sphi 0, %s179
      %s201 = sphi 0, %s203
      %s204 = sphi 0, %s201
      %s205 = sphi 0, %s204
      %s221 = sphi 0, %s205
      %s227 = sphi 0, %s229
      %s230 = sphi 0, %s227
      %s231 = sphi 0, %s230
      %s247 = sphi 0, %s231
      %s253 = sphi 0, %s255
      %s256 = sphi 0, %s253
      %s257 = sphi 0, %s256
      %s273 = sphi 0, %s257
      %s279 = sphi 0, %s281
      %s282 = sphi 0, %s279
      %s283 = sphi 0, %s282
      %s299 = sphi 0, %s283
      %s305 = sphi 0, %s307
      %s308 = sphi 0, %s305
      %s309 = sphi 0, %s308
      %s325 = sphi 0, %s309
      %s331 = sphi 0, %s333
      %s334 = sphi 0, %s331
      %s335 = sphi 0, %s334
      %s351 = sphi 0, %s335
      %s357 = sphi 0, %s359
      %s360 = sphi 0, %s357
      %s361 = sphi 0, %s360
      %s377 = sphi 0, %s361
      %s383 = sphi 0, %s385
      %s386 = sphi 0, %s383
      %s387 = sphi 0, %s386
      %s403 = sphi 0, %s387
      %s409 = sphi 0, %s411
      %s412 = sphi 0, %s409
      %s413 = sphi 0, %s412
      %s429 = sphi 0, %s413
      %s435 = sphi 0, %s437
      %s438 = sphi 0, %s435
      %s439 = sphi 0, %s438
      %s455 = sphi 0, %s439
      %s461 = sphi 0, %s463
      %s464 = sphi 0, %s461
      %s465 = sphi 0, %s464
      %s481 = sphi 0, %s465
      %s485 = sphi 0, %s485
      %s487 = sphi 0, %s485
      %s488 = sphi 0, %s487
      %s502 = sphi 0, %s488
      %s506 = sphi 0, %s506
      %s508 = sphi 0, %s506
      %s509 = sphi 0, %s508
      %s523 = sphi 0, %s509
      %s527 = sphi 0, %s527
      %s529 = sphi 0, %s527
      %s530 = sphi 0, %s529
      %s544 = sphi 0, %s530
      %s550 = sphi 0, %s552
      %s553 = sphi 0, %s550
      %s554 = sphi 0, %s553
      %s570 = sphi 0, %s554
    $region4: #{tpu_custom_call.1} parent=1 // loop_header_branch
      %46 = sbr.rel (%p44) target = $region8
    $region5: #{tpu_custom_call.1} parent=1 // loop_body
      %s48 = ssub.s32 %s43, 1
      %s49 = ssub.s32 %s43, 2
      %s56 = sadd.s32 1, %s51
      %p57 = scmp.ge.s32.totalorder %s56, 2
      %s58 = scalar_select %p57, 0, %s56
      %s59 = sadd.s32 1, %s50
      %s60 = scalar_select %p57, %s59, %s50
      %p61 = scmp.ge.s32.totalorder %s60, 1
      %s62 = scalar_select %p61, 0, %s60
      %s63 = ssub.s32 %s50, %s62
      %p64 = scmp.eq.s32.totalorder %s63, 0
      %s66 = sadd.s32 %s65, 1
      %s67 = scalar_select %p64, %s65, %s66
      %p70 = pneg %p64
      %p71 = scmp.eq.s32.totalorder %s43, 1
      %p72 = por %p70, %p71
      %p73 = scmp.ne.s32.totalorder %s65, %s68
      %p74 = scmp.eq.s32.totalorder %s43, 0
      %p75 = por %p73, %p74
      %p76 = scmp.ne.s32.totalorder %s65, %s68
      %p77 = scmp.eq.s32.totalorder %s48, 1
      %p78 = por %p76, %p77
      %p79 = scmp.ne.s32.totalorder %s68, %s69
      %p80 = scmp.eq.s32.totalorder %s48, 0
      %p81 = por %p79, %p80
      %p82 = scmp.ne.s32.totalorder %s68, %s69
      %p83 = scmp.eq.s32.totalorder %s49, 1
      %p84 = por %p82, %p83
      %p86 = scmp.ne.s32.totalorder %s69, %s85
      %p87 = scmp.eq.s32.totalorder %s49, 0
      %p88 = por %p86, %p87
      %s90 = sadd.s32 %s89, 1
      %p93 = scmp.eq.s32.totalorder %s43, 1
      %p94 = scmp.ne.s32.totalorder %s89, %s91
      %p95 = scmp.eq.s32.totalorder %s43, 0
      %p96 = por %p94, %p95
      %p97 = scmp.ne.s32.totalorder %s89, %s91
      %p98 = scmp.eq.s32.totalorder %s48, 1
      %p99 = por %p97, %p98
      %p100 = scmp.ne.s32.totalorder %s91, %s92
      %p101 = scmp.eq.s32.totalorder %s48, 0
      %p102 = por %p100, %p101
      %p103 = scmp.ne.s32.totalorder %s91, %s92
      %p104 = scmp.eq.s32.totalorder %s49, 1
      %p105 = por %p103, %p104
      %p107 = scmp.ne.s32.totalorder %s92, %s106
      %p108 = scmp.eq.s32.totalorder %s49, 0
      %p109 = por %p107, %p108
      %s111 = sadd.s32 %s110, 1
      %p114 = scmp.eq.s32.totalorder %s43, 1
      %p115 = scmp.ne.s32.totalorder %s110, %s112
      %p116 = scmp.eq.s32.totalorder %s43, 0
      %p117 = por %p115, %p116
      %p118 = scmp.ne.s32.totalorder %s110, %s112
      %p119 = scmp.eq.s32.totalorder %s48, 1
      %p120 = por %p118, %p119
      %p121 = scmp.ne.s32.totalorder %s112, %s113
      %p122 = scmp.eq.s32.totalorder %s48, 0
      %p123 = por %p121, %p122
      %p124 = scmp.ne.s32.totalorder %s112, %s113
      %p125 = scmp.eq.s32.totalorder %s49, 1
      %p126 = por %p124, %p125
      %p128 = scmp.ne.s32.totalorder %s113, %s127
      %p129 = scmp.eq.s32.totalorder %s49, 0
      %p130 = por %p128, %p129
      %s132 = sadd.s32 %s131, 1
      %p135 = scmp.eq.s32.totalorder %s43, 1
      %p136 = scmp.ne.s32.totalorder %s131, %s133
      %p137 = scmp.eq.s32.totalorder %s43, 0
      %p138 = por %p136, %p137
      %p139 = scmp.ne.s32.totalorder %s131, %s133
      %p140 = scmp.eq.s32.totalorder %s48, 1
      %p141 = por %p139, %p140
      %p142 = scmp.ne.s32.totalorder %s133, %s134
      %p143 = scmp.eq.s32.totalorder %s48, 0
      %p144 = por %p142, %p143
      %p145 = scmp.ne.s32.totalorder %s133, %s134
      %p146 = scmp.eq.s32.totalorder %s49, 1
      %p147 = por %p145, %p146
      %p149 = scmp.ne.s32.totalorder %s134, %s148
      %p150 = scmp.eq.s32.totalorder %s49, 0
      %p151 = por %p149, %p150
      %s153 = sadd.s32 %s152, 1
      %p156 = scmp.eq.s32.totalorder %s43, 1
      %p157 = scmp.ne.s32.totalorder %s152, %s154
      %p158 = scmp.eq.s32.totalorder %s43, 0
      %p159 = por %p157, %p158
      %p160 = scmp.ne.s32.totalorder %s152, %s154
      %p161 = scmp.eq.s32.totalorder %s48, 1
      %p162 = por %p160, %p161
      %p163 = scmp.ne.s32.totalorder %s154, %s155
      %p164 = scmp.eq.s32.totalorder %s48, 0
      %p165 = por %p163, %p164
      %p166 = scmp.ne.s32.totalorder %s154, %s155
      %p167 = scmp.eq.s32.totalorder %s49, 1
      %p168 = por %p166, %p167
      %p170 = scmp.ne.s32.totalorder %s155, %s169
      %p171 = scmp.eq.s32.totalorder %s49, 0
      %p172 = por %p170, %p171
      %s173 = ssub.s32 %s51, %s58
      %p174 = scmp.eq.s32.totalorder %s173, 0
      %s176 = sadd.s32 %s175, 1
      %s177 = scalar_select %p174, %s175, %s176
      %p180 = pneg %p174
      %p181 = scmp.eq.s32.totalorder %s43, 1
      %p182 = por %p180, %p181
      %p183 = scmp.ne.s32.totalorder %s175, %s178
      %p184 = scmp.eq.s32.totalorder %s43, 0
      %p185 = por %p183, %p184
      %p186 = scmp.ne.s32.totalorder %s175, %s178
      %p187 = scmp.eq.s32.totalorder %s48, 1
      %p188 = por %p186, %p187
      %p189 = scmp.ne.s32.totalorder %s178, %s179
      %p190 = scmp.eq.s32.totalorder %s48, 0
      %p191 = por %p189, %p190
      %p192 = scmp.ne.s32.totalorder %s178, %s179
      %p193 = scmp.eq.s32.totalorder %s49, 1
      %p194 = por %p192, %p193
      %p196 = scmp.ne.s32.totalorder %s179, %s195
      %p197 = scmp.eq.s32.totalorder %s49, 0
      %p198 = por %p196, %p197
      %s199 = ssub.s32 %s51, %s58
      %p200 = scmp.eq.s32.totalorder %s199, 0
      %s202 = sadd.s32 %s201, 1
      %s203 = scalar_select %p200, %s201, %s202
      %p206 = pneg %p200
      %p207 = scmp.eq.s32.totalorder %s43, 1
      %p208 = por %p206, %p207
      %p209 = scmp.ne.s32.totalorder %s201, %s204
      %p210 = scmp.eq.s32.totalorder %s43, 0
      %p211 = por %p209, %p210
      %p212 = scmp.ne.s32.totalorder %s201, %s204
      %p213 = scmp.eq.s32.totalorder %s48, 1
      %p214 = por %p212, %p213
      %p215 = scmp.ne.s32.totalorder %s204, %s205
      %p216 = scmp.eq.s32.totalorder %s48, 0
      %p217 = por %p215, %p216
      %p218 = scmp.ne.s32.totalorder %s204, %s205
      %p219 = scmp.eq.s32.totalorder %s49, 1
      %p220 = por %p218, %p219
      %p222 = scmp.ne.s32.totalorder %s205, %s221
      %p223 = scmp.eq.s32.totalorder %s49, 0
      %p224 = por %p222, %p223
      %s225 = ssub.s32 %s51, %s58
      %p226 = scmp.eq.s32.totalorder %s225, 0
      %s228 = sadd.s32 %s227, 1
      %s229 = scalar_select %p226, %s227, %s228
      %p232 = pneg %p226
      %p233 = scmp.eq.s32.totalorder %s43, 1
      %p234 = por %p232, %p233
      %p235 = scmp.ne.s32.totalorder %s227, %s230
      %p236 = scmp.eq.s32.totalorder %s43, 0
      %p237 = por %p235, %p236
      %p238 = scmp.ne.s32.totalorder %s227, %s230
      %p239 = scmp.eq.s32.totalorder %s48, 1
      %p240 = por %p238, %p239
      %p241 = scmp.ne.s32.totalorder %s230, %s231
      %p242 = scmp.eq.s32.totalorder %s48, 0
      %p243 = por %p241, %p242
      %p244 = scmp.ne.s32.totalorder %s230, %s231
      %p245 = scmp.eq.s32.totalorder %s49, 1
      %p246 = por %p244, %p245
      %p248 = scmp.ne.s32.totalorder %s231, %s247
      %p249 = scmp.eq.s32.totalorder %s49, 0
      %p250 = por %p248, %p249
      %s251 = ssub.s32 %s51, %s58
      %p252 = scmp.eq.s32.totalorder %s251, 0
      %s254 = sadd.s32 %s253, 1
      %s255 = scalar_select %p252, %s253, %s254
      %p258 = pneg %p252
      %p259 = scmp.eq.s32.totalorder %s43, 1
      %p260 = por %p258, %p259
      %p261 = scmp.ne.s32.totalorder %s253, %s256
      %p262 = scmp.eq.s32.totalorder %s43, 0
      %p263 = por %p261, %p262
      %p264 = scmp.ne.s32.totalorder %s253, %s256
      %p265 = scmp.eq.s32.totalorder %s48, 1
      %p266 = por %p264, %p265
      %p267 = scmp.ne.s32.totalorder %s256, %s257
      %p268 = scmp.eq.s32.totalorder %s48, 0
      %p269 = por %p267, %p268
      %p270 = scmp.ne.s32.totalorder %s256, %s257
      %p271 = scmp.eq.s32.totalorder %s49, 1
      %p272 = por %p270, %p271
      %p274 = scmp.ne.s32.totalorder %s257, %s273
      %p275 = scmp.eq.s32.totalorder %s49, 0
      %p276 = por %p274, %p275
      %s277 = ssub.s32 %s51, %s58
      %p278 = scmp.eq.s32.totalorder %s277, 0
      %s280 = sadd.s32 %s279, 1
      %s281 = scalar_select %p278, %s279, %s280
      %p284 = pneg %p278
      %p285 = scmp.eq.s32.totalorder %s43, 1
      %p286 = por %p284, %p285
      %p287 = scmp.ne.s32.totalorder %s279, %s282
      %p288 = scmp.eq.s32.totalorder %s43, 0
      %p289 = por %p287, %p288
      %p290 = scmp.ne.s32.totalorder %s279, %s282
      %p291 = scmp.eq.s32.totalorder %s48, 1
      %p292 = por %p290, %p291
      %p293 = scmp.ne.s32.totalorder %s282, %s283
      %p294 = scmp.eq.s32.totalorder %s48, 0
      %p295 = por %p293, %p294
      %p296 = scmp.ne.s32.totalorder %s282, %s283
      %p297 = scmp.eq.s32.totalorder %s49, 1
      %p298 = por %p296, %p297
      %p300 = scmp.ne.s32.totalorder %s283, %s299
      %p301 = scmp.eq.s32.totalorder %s49, 0
      %p302 = por %p300, %p301
      %s303 = ssub.s32 %s51, %s58
      %p304 = scmp.eq.s32.totalorder %s303, 0
      %s306 = sadd.s32 %s305, 1
      %s307 = scalar_select %p304, %s305, %s306
      %p310 = pneg %p304
      %p311 = scmp.eq.s32.totalorder %s43, 1
      %p312 = por %p310, %p311
      %p313 = scmp.ne.s32.totalorder %s305, %s308
      %p314 = scmp.eq.s32.totalorder %s43, 0
      %p315 = por %p313, %p314
      %p316 = scmp.ne.s32.totalorder %s305, %s308
      %p317 = scmp.eq.s32.totalorder %s48, 1
      %p318 = por %p316, %p317
      %p319 = scmp.ne.s32.totalorder %s308, %s309
      %p320 = scmp.eq.s32.totalorder %s48, 0
      %p321 = por %p319, %p320
      %p322 = scmp.ne.s32.totalorder %s308, %s309
      %p323 = scmp.eq.s32.totalorder %s49, 1
      %p324 = por %p322, %p323
      %p326 = scmp.ne.s32.totalorder %s309, %s325
      %p327 = scmp.eq.s32.totalorder %s49, 0
      %p328 = por %p326, %p327
      %s329 = ssub.s32 %s51, %s58
      %p330 = scmp.eq.s32.totalorder %s329, 0
      %s332 = sadd.s32 %s331, 1
      %s333 = scalar_select %p330, %s331, %s332
      %p336 = pneg %p330
      %p337 = scmp.eq.s32.totalorder %s43, 1
      %p338 = por %p336, %p337
      %p339 = scmp.ne.s32.totalorder %s331, %s334
      %p340 = scmp.eq.s32.totalorder %s43, 0
      %p341 = por %p339, %p340
      %p342 = scmp.ne.s32.totalorder %s331, %s334
      %p343 = scmp.eq.s32.totalorder %s48, 1
      %p344 = por %p342, %p343
      %p345 = scmp.ne.s32.totalorder %s334, %s335
      %p346 = scmp.eq.s32.totalorder %s48, 0
      %p347 = por %p345, %p346
      %p348 = scmp.ne.s32.totalorder %s334, %s335
      %p349 = scmp.eq.s32.totalorder %s49, 1
      %p350 = por %p348, %p349
      %p352 = scmp.ne.s32.totalorder %s335, %s351
      %p353 = scmp.eq.s32.totalorder %s49, 0
      %p354 = por %p352, %p353
      %s355 = ssub.s32 %s51, %s58
      %p356 = scmp.eq.s32.totalorder %s355, 0
      %s358 = sadd.s32 %s357, 1
      %s359 = scalar_select %p356, %s357, %s358
      %p362 = pneg %p356
      %p363 = scmp.eq.s32.totalorder %s43, 1
      %p364 = por %p362, %p363
      %p365 = scmp.ne.s32.totalorder %s357, %s360
      %p366 = scmp.eq.s32.totalorder %s43, 0
      %p367 = por %p365, %p366
      %p368 = scmp.ne.s32.totalorder %s357, %s360
      %p369 = scmp.eq.s32.totalorder %s48, 1
      %p370 = por %p368, %p369
      %p371 = scmp.ne.s32.totalorder %s360, %s361
      %p372 = scmp.eq.s32.totalorder %s48, 0
      %p373 = por %p371, %p372
      %p374 = scmp.ne.s32.totalorder %s360, %s361
      %p375 = scmp.eq.s32.totalorder %s49, 1
      %p376 = por %p374, %p375
      %p378 = scmp.ne.s32.totalorder %s361, %s377
      %p379 = scmp.eq.s32.totalorder %s49, 0
      %p380 = por %p378, %p379
      %s381 = ssub.s32 %s51, %s58
      %p382 = scmp.eq.s32.totalorder %s381, 0
      %s384 = sadd.s32 %s383, 1
      %s385 = scalar_select %p382, %s383, %s384
      %p388 = pneg %p382
      %p389 = scmp.eq.s32.totalorder %s43, 1
      %p390 = por %p388, %p389
      %p391 = scmp.ne.s32.totalorder %s383, %s386
      %p392 = scmp.eq.s32.totalorder %s43, 0
      %p393 = por %p391, %p392
      %p394 = scmp.ne.s32.totalorder %s383, %s386
      %p395 = scmp.eq.s32.totalorder %s48, 1
      %p396 = por %p394, %p395
      %p397 = scmp.ne.s32.totalorder %s386, %s387
      %p398 = scmp.eq.s32.totalorder %s48, 0
      %p399 = por %p397, %p398
      %p400 = scmp.ne.s32.totalorder %s386, %s387
      %p401 = scmp.eq.s32.totalorder %s49, 1
      %p402 = por %p400, %p401
      %p404 = scmp.ne.s32.totalorder %s387, %s403
      %p405 = scmp.eq.s32.totalorder %s49, 0
      %p406 = por %p404, %p405
      %s407 = ssub.s32 %s51, %s58
      %p408 = scmp.eq.s32.totalorder %s407, 0
      %s410 = sadd.s32 %s409, 1
      %s411 = scalar_select %p408, %s409, %s410
      %p414 = pneg %p408
      %p415 = scmp.eq.s32.totalorder %s43, 1
      %p416 = por %p414, %p415
      %p417 = scmp.ne.s32.totalorder %s409, %s412
      %p418 = scmp.eq.s32.totalorder %s43, 0
      %p419 = por %p417, %p418
      %p420 = scmp.ne.s32.totalorder %s409, %s412
      %p421 = scmp.eq.s32.totalorder %s48, 1
      %p422 = por %p420, %p421
      %p423 = scmp.ne.s32.totalorder %s412, %s413
      %p424 = scmp.eq.s32.totalorder %s48, 0
      %p425 = por %p423, %p424
      %p426 = scmp.ne.s32.totalorder %s412, %s413
      %p427 = scmp.eq.s32.totalorder %s49, 1
      %p428 = por %p426, %p427
      %p430 = scmp.ne.s32.totalorder %s413, %s429
      %p431 = scmp.eq.s32.totalorder %s49, 0
      %p432 = por %p430, %p431
      %s433 = ssub.s32 %s51, %s58
      %p434 = scmp.eq.s32.totalorder %s433, 0
      %s436 = sadd.s32 %s435, 1
      %s437 = scalar_select %p434, %s435, %s436
      %p440 = pneg %p434
      %p441 = scmp.eq.s32.totalorder %s43, 1
      %p442 = por %p440, %p441
      %p443 = scmp.ne.s32.totalorder %s435, %s438
      %p444 = scmp.eq.s32.totalorder %s43, 0
      %p445 = por %p443, %p444
      %p446 = scmp.ne.s32.totalorder %s435, %s438
      %p447 = scmp.eq.s32.totalorder %s48, 1
      %p448 = por %p446, %p447
      %p449 = scmp.ne.s32.totalorder %s438, %s439
      %p450 = scmp.eq.s32.totalorder %s48, 0
      %p451 = por %p449, %p450
      %p452 = scmp.ne.s32.totalorder %s438, %s439
      %p453 = scmp.eq.s32.totalorder %s49, 1
      %p454 = por %p452, %p453
      %p456 = scmp.ne.s32.totalorder %s439, %s455
      %p457 = scmp.eq.s32.totalorder %s49, 0
      %p458 = por %p456, %p457
      %s459 = ssub.s32 %s51, %s58
      %p460 = scmp.eq.s32.totalorder %s459, 0
      %s462 = sadd.s32 %s461, 1
      %s463 = scalar_select %p460, %s461, %s462
      %p466 = pneg %p460
      %p467 = scmp.eq.s32.totalorder %s43, 1
      %p468 = por %p466, %p467
      %p469 = scmp.ne.s32.totalorder %s461, %s464
      %p470 = scmp.eq.s32.totalorder %s43, 0
      %p471 = por %p469, %p470
      %p472 = scmp.ne.s32.totalorder %s461, %s464
      %p473 = scmp.eq.s32.totalorder %s48, 1
      %p474 = por %p472, %p473
      %p475 = scmp.ne.s32.totalorder %s464, %s465
      %p476 = scmp.eq.s32.totalorder %s48, 0
      %p477 = por %p475, %p476
      %p478 = scmp.ne.s32.totalorder %s464, %s465
      %p479 = scmp.eq.s32.totalorder %s49, 1
      %p480 = por %p478, %p479
      %p482 = scmp.ne.s32.totalorder %s465, %s481
      %p483 = scmp.eq.s32.totalorder %s49, 0
      %p484 = por %p482, %p483
      %s486 = sadd.s32 %s485, 1
      %p489 = scmp.eq.s32.totalorder %s43, 1
      %p490 = scmp.ne.s32.totalorder %s485, %s487
      %p491 = scmp.eq.s32.totalorder %s43, 0
      %p492 = por %p490, %p491
      %p493 = scmp.ne.s32.totalorder %s485, %s487
      %p494 = scmp.eq.s32.totalorder %s48, 1
      %p495 = por %p493, %p494
      %p496 = scmp.ne.s32.totalorder %s487, %s488
      %p497 = scmp.eq.s32.totalorder %s48, 0
      %p498 = por %p496, %p497
      %p499 = scmp.ne.s32.totalorder %s487, %s488
      %p500 = scmp.eq.s32.totalorder %s49, 1
      %p501 = por %p499, %p500
      %p503 = scmp.ne.s32.totalorder %s488, %s502
      %p504 = scmp.eq.s32.totalorder %s49, 0
      %p505 = por %p503, %p504
      %s507 = sadd.s32 %s506, 1
      %p510 = scmp.eq.s32.totalorder %s43, 1
      %p511 = scmp.ne.s32.totalorder %s506, %s508
      %p512 = scmp.eq.s32.totalorder %s43, 0
      %p513 = por %p511, %p512
      %p514 = scmp.ne.s32.totalorder %s506, %s508
      %p515 = scmp.eq.s32.totalorder %s48, 1
      %p516 = por %p514, %p515
      %p517 = scmp.ne.s32.totalorder %s508, %s509
      %p518 = scmp.eq.s32.totalorder %s48, 0
      %p519 = por %p517, %p518
      %p520 = scmp.ne.s32.totalorder %s508, %s509
      %p521 = scmp.eq.s32.totalorder %s49, 1
      %p522 = por %p520, %p521
      %p524 = scmp.ne.s32.totalorder %s509, %s523
      %p525 = scmp.eq.s32.totalorder %s49, 0
      %p526 = por %p524, %p525
      %s528 = sadd.s32 %s527, 1
      %p531 = scmp.eq.s32.totalorder %s43, 1
      %p532 = scmp.ne.s32.totalorder %s527, %s529
      %p533 = scmp.eq.s32.totalorder %s43, 0
      %p534 = por %p532, %p533
      %p535 = scmp.ne.s32.totalorder %s527, %s529
      %p536 = scmp.eq.s32.totalorder %s48, 1
      %p537 = por %p535, %p536
      %p538 = scmp.ne.s32.totalorder %s529, %s530
      %p539 = scmp.eq.s32.totalorder %s48, 0
      %p540 = por %p538, %p539
      %p541 = scmp.ne.s32.totalorder %s529, %s530
      %p542 = scmp.eq.s32.totalorder %s49, 1
      %p543 = por %p541, %p542
      %p545 = scmp.ne.s32.totalorder %s530, %s544
      %p546 = scmp.eq.s32.totalorder %s49, 0
      %p547 = por %p545, %p546
      %s548 = ssub.s32 %s50, %s62
      %p549 = scmp.eq.s32.totalorder %s548, 0
      %s551 = sadd.s32 %s550, 1
      %s552 = scalar_select %p549, %s550, %s551
      %p555 = pneg %p549
      %p556 = scmp.eq.s32.totalorder %s43, 1
      %p557 = por %p555, %p556
      %p558 = scmp.ne.s32.totalorder %s550, %s553
      %p559 = scmp.eq.s32.totalorder %s43, 0
      %p560 = por %p558, %p559
      %p561 = scmp.ne.s32.totalorder %s550, %s553
      %p562 = scmp.eq.s32.totalorder %s48, 1
      %p563 = por %p561, %p562
      %p564 = scmp.ne.s32.totalorder %s553, %s554
      %p565 = scmp.eq.s32.totalorder %s48, 0
      %p566 = por %p564, %p565
      %p567 = scmp.ne.s32.totalorder %s553, %s554
      %p568 = scmp.eq.s32.totalorder %s49, 1
      %p569 = por %p567, %p568
      %p571 = scmp.ne.s32.totalorder %s554, %s570
      %p572 = scmp.eq.s32.totalorder %s49, 0
      %p573 = por %p571, %p572
      %p574 = scmp.le.s32.totalorder 1, %s43
      %p575 = scmp.lt.s32.totalorder %s43, 3
      %p576 = pnand %p574, %p575
      %p577 = pneg %p576
      // Predicated region
      $region9: #{tpu_custom_call.1} parent=5 // pred_check
        _
      $region10: #{tpu_custom_call.1} parent=5 // pred_check_branch
        %579 = sbr.rel (%p576) target = $region12
      $region11: #{tpu_custom_call.1} parent=5 // pred_region
        %s580 = ssub.s32 %s43, 1
        // Predicated region
        $region13: #{tpu_custom_call.1} parent=11 // pred_check
          %p581 = pneg %p81
        $region14: #{tpu_custom_call.1} parent=11 // pred_check_branch
          %583 = sbr.rel (%p581) target = $region16
        $region15: #{tpu_custom_call.1} parent=11 // pred_region
          %s584 = smul.u32 2, %s52
          %586 = vsyncadd [#allocation4], 0
          %s587 = smul.addr %s584, 6
          %s588 = smul.addr %s587, 2
          %s589 = scalar_lea.hbm %s0, %s588
          %s590 = sshll.u32 %s589, 4
          %s591 = int_to_ptr.hbm [resolvable:$true] %s590
          %s592 = sshll.u32 [#allocation3], 4
          %s593 = int_to_ptr.vmem [resolvable:$true] %s592
          %598 = dma.hbm_to_vmem [thread:$0]  %s591, 384, %s593, [#allocation4], 192, 192, 12
        $region16: #{tpu_custom_call.1} parent=11 // pred_fallthru
          _
        // Predicated region
        $region17: #{tpu_custom_call.1} parent=11 // pred_check
          %p599 = pneg %p102
        $region18: #{tpu_custom_call.1} parent=11 // pred_check_branch
          %601 = sbr.rel (%p599) target = $region20
        $region19: #{tpu_custom_call.1} parent=11 // pred_region
          %603 = vsyncadd [#allocation7], 0
          %s605 = sshll.u32 %s1, 4
          %s606 = int_to_ptr.hbm [resolvable:$true] %s605
          %s607 = sshll.u32 [#allocation6], 4
          %s608 = int_to_ptr.vmem [resolvable:$true] %s607
          %610 = dma.hbm_to_vmem [thread:$0]  %s606, 16, %s608, [#allocation7]
        $region20: #{tpu_custom_call.1} parent=11 // pred_fallthru
          _
        // Predicated region
        $region21: #{tpu_custom_call.1} parent=11 // pred_check
          %p611 = pneg %p123
        $region22: #{tpu_custom_call.1} parent=11 // pred_check_branch
          %613 = sbr.rel (%p611) target = $region24
        $region23: #{tpu_custom_call.1} parent=11 // pred_region
          %615 = vsyncadd [#allocation7], 0
          %s617 = sshll.u32 %s2, 4
          %s618 = int_to_ptr.hbm [resolvable:$true] %s617
          %s619 = sshll.u32 [#allocation8], 4
          %s620 = int_to_ptr.vmem [resolvable:$true] %s619
          %622 = dma.hbm_to_vmem [thread:$0]  %s618, 128, %s620, [#allocation7]
        $region24: #{tpu_custom_call.1} parent=11 // pred_fallthru
          _
        // Predicated region
        $region25: #{tpu_custom_call.1} parent=11 // pred_check
          %p623 = pneg %p144
        $region26: #{tpu_custom_call.1} parent=11 // pred_check_branch
          %625 = sbr.rel (%p623) target = $region28
        $region27: #{tpu_custom_call.1} parent=11 // pred_region
          %627 = vsyncadd [#allocation10], 0
          %s628 = sshll.u32 %s3, 4
          %s629 = int_to_ptr.hbm [resolvable:$true] %s628
          %s630 = sshll.u32 [#allocation9], 4
          %s631 = int_to_ptr.vmem [resolvable:$true] %s630
          %636 = dma.hbm_to_vmem [thread:$0]  %s629, 6144, %s631, [#allocation10], 64, 64, 4
        $region28: #{tpu_custom_call.1} parent=11 // pred_fallthru
          _
        // Predicated region
        $region29: #{tpu_custom_call.1} parent=11 // pred_check
          %p637 = pneg %p165
        $region30: #{tpu_custom_call.1} parent=11 // pred_check_branch
          %639 = sbr.rel (%p637) target = $region32
        $region31: #{tpu_custom_call.1} parent=11 // pred_region
          %641 = vsyncadd [#allocation10], 0
          %s643 = sshll.u32 %s4, 4
          %s644 = int_to_ptr.hbm [resolvable:$true] %s643
          %s645 = sshll.u32 [#allocation11], 4
          %s646 = int_to_ptr.vmem [resolvable:$true] %s645
          %648 = dma.hbm_to_vmem [thread:$0]  %s644, 16, %s646, [#allocation10]
        $region32: #{tpu_custom_call.1} parent=11 // pred_fallthru
          _
        // Predicated region
        $region33: #{tpu_custom_call.1} parent=11 // pred_check
          %p649 = pneg %p498
        $region34: #{tpu_custom_call.1} parent=11 // pred_check_branch
          %651 = sbr.rel (%p649) target = $region36
        $region35: #{tpu_custom_call.1} parent=11 // pred_region
          _
        $region36: #{tpu_custom_call.1} parent=11 // pred_fallthru
          _
        // Predicated region
        $region37: #{tpu_custom_call.1} parent=11 // pred_check
          %p652 = pneg %p519
        $region38: #{tpu_custom_call.1} parent=11 // pred_check_branch
          %654 = sbr.rel (%p652) target = $region40
        $region39: #{tpu_custom_call.1} parent=11 // pred_region
          _
        $region40: #{tpu_custom_call.1} parent=11 // pred_fallthru
          _
        // Predicated region
        $region41: #{tpu_custom_call.1} parent=11 // pred_check
          %p655 = pneg %p540
        $region42: #{tpu_custom_call.1} parent=11 // pred_check_branch
          %657 = sbr.rel (%p655) target = $region44
        $region43: #{tpu_custom_call.1} parent=11 // pred_region
          %659 = vsyncadd [#allocation25], 0
          %s660 = sshll.u32 %s19, 4
          %s661 = int_to_ptr.hbm [resolvable:$true] %s660
          %s662 = sshll.u32 [#allocation24], 4
          %s663 = int_to_ptr.vmem [resolvable:$true] %s662
          %668 = dma.hbm_to_vmem [thread:$0]  %s661, 1024, %s663, [#allocation25], 64, 64, 4
        $region44: #{tpu_custom_call.1} parent=11 // pred_fallthru
          _
      $region12: #{tpu_custom_call.1} parent=5 // pred_fallthru
        _
      %p669 = scmp.lt.s32.totalorder %s43, 2
      // Predicated region
      $region45: #{tpu_custom_call.1} parent=5 // pred_check
        %p670 = pneg %p669
      $region46: #{tpu_custom_call.1} parent=5 // pred_check_branch
        %672 = sbr.rel (%p670) target = $region48
      $region47: #{tpu_custom_call.1} parent=5 // pred_region
        // Predicated region
        $region49: #{tpu_custom_call.1} parent=47 // pred_check
          %p673 = pneg %p185
        $region50: #{tpu_custom_call.1} parent=47 // pred_check_branch
          %675 = sbr.rel (%p673) target = $region52
        $region51: #{tpu_custom_call.1} parent=47 // pred_region
          %p676 = scmp.lt.s32.totalorder %s51, 1
          %s677 = scalar_select %p676, %s51, 1
          %s678 = scalar_lea.vmem %s5, %s677
        $region52: #{tpu_custom_call.1} parent=47 // pred_fallthru
          _
        // Predicated region
        $region53: #{tpu_custom_call.1} parent=47 // pred_check
          %p679 = pneg %p211
        $region54: #{tpu_custom_call.1} parent=47 // pred_check_branch
          %681 = sbr.rel (%p679) target = $region56
        $region55: #{tpu_custom_call.1} parent=47 // pred_region
          %p682 = scmp.lt.s32.totalorder %s51, 1
          %s683 = scalar_select %p682, %s51, 1
          %s684 = scalar_lea.vmem %s6, %s683
        $region56: #{tpu_custom_call.1} parent=47 // pred_fallthru
          _
        // Predicated region
        $region57: #{tpu_custom_call.1} parent=47 // pred_check
          %p685 = pneg %p237
        $region58: #{tpu_custom_call.1} parent=47 // pred_check_branch
          %687 = sbr.rel (%p685) target = $region60
        $region59: #{tpu_custom_call.1} parent=47 // pred_region
          %s688 = sand.u32 %s43, 1
          %s689 = scalar_lea.sflag [#allocation13], %s688
          %s690 = sand.u32 %s227, 1
          %s691 = smul.addr %s690, 192
          %s692 = scalar_lea.vmem [#allocation12], %s691
          %694 = vsyncadd %s689, 0
          %s695 = smul.addr %s51, 48
          %s696 = smul.addr %s695, 4
          %s697 = scalar_lea.hbm %s7, %s696
          %s698 = sshll.u32 %s697, 4
          %s699 = int_to_ptr.hbm [resolvable:$true] %s698
          %s700 = sshll.u32 %s692, 4
          %s701 = int_to_ptr.vmem [resolvable:$true] %s700
          %706 = dma.hbm_to_vmem [thread:$0]  %s699, 3072, %s701, %s689, 192, 192, 12
        $region60: #{tpu_custom_call.1} parent=47 // pred_fallthru
          _
        // Predicated region
        $region61: #{tpu_custom_call.1} parent=47 // pred_check
          %p707 = pneg %p263
        $region62: #{tpu_custom_call.1} parent=47 // pred_check_branch
          %709 = sbr.rel (%p707) target = $region64
        $region63: #{tpu_custom_call.1} parent=47 // pred_region
          %s710 = sand.u32 %s43, 1
          %s711 = scalar_lea.sflag [#allocation13], %s710
          %s712 = sand.u32 %s253, 1
          %s713 = smul.addr %s712, 3
          %s714 = scalar_lea.vmem [#allocation14], %s713
          %716 = vsyncadd %s711, 0
          %s717 = smul.addr %s51, 3
          %s718 = scalar_lea.hbm %s8, %s717
          %s720 = sshll.u32 %s718, 4
          %s721 = int_to_ptr.hbm [resolvable:$true] %s720
          %s722 = sshll.u32 %s714, 4
          %s723 = int_to_ptr.vmem [resolvable:$true] %s722
          %725 = dma.hbm_to_vmem [thread:$0]  %s721, 48, %s723, %s711
        $region64: #{tpu_custom_call.1} parent=47 // pred_fallthru
          _
        // Predicated region
        $region65: #{tpu_custom_call.1} parent=47 // pred_check
          %p726 = pneg %p289
        $region66: #{tpu_custom_call.1} parent=47 // pred_check_branch
          %728 = sbr.rel (%p726) target = $region68
        $region67: #{tpu_custom_call.1} parent=47 // pred_region
          %s729 = sand.u32 %s43, 1
          %s730 = scalar_lea.sflag [#allocation16], %s729
          %s731 = sand.u32 %s279, 1
          %s732 = smul.addr %s731, 64
          %s733 = scalar_lea.vmem [#allocation15], %s732
          %735 = vsyncadd %s730, 0
          %s736 = smul.addr %s51, 16
          %s737 = smul.addr %s736, 4
          %s738 = scalar_lea.hbm %s9, %s737
          %s739 = sshll.u32 %s738, 4
          %s740 = int_to_ptr.hbm [resolvable:$true] %s739
          %s741 = sshll.u32 %s733, 4
          %s742 = int_to_ptr.vmem [resolvable:$true] %s741
          %747 = dma.hbm_to_vmem [thread:$0]  %s740, 1024, %s742, %s730, 64, 64, 4
        $region68: #{tpu_custom_call.1} parent=47 // pred_fallthru
          _
        // Predicated region
        $region69: #{tpu_custom_call.1} parent=47 // pred_check
          %p748 = pneg %p315
        $region70: #{tpu_custom_call.1} parent=47 // pred_check_branch
          %750 = sbr.rel (%p748) target = $region72
        $region71: #{tpu_custom_call.1} parent=47 // pred_region
          %s751 = sand.u32 %s43, 1
          %s752 = scalar_lea.sflag [#allocation16], %s751
          %s753 = sand.u32 %s305, 1
          %s754 = scalar_lea.vmem [#allocation17], %s753
          %756 = vsyncadd %s752, 0
          %s757 = scalar_lea.hbm %s10, %s51
          %s759 = sshll.u32 %s757, 4
          %s760 = int_to_ptr.hbm [resolvable:$true] %s759
          %s761 = sshll.u32 %s754, 4
          %s762 = int_to_ptr.vmem [resolvable:$true] %s761
          %764 = dma.hbm_to_vmem [thread:$0]  %s760, 16, %s762, %s752
        $region72: #{tpu_custom_call.1} parent=47 // pred_fallthru
          _
        // Predicated region
        $region73: #{tpu_custom_call.1} parent=47 // pred_check
          %p765 = pneg %p341
        $region74: #{tpu_custom_call.1} parent=47 // pred_check_branch
          %767 = sbr.rel (%p765) target = $region76
        $region75: #{tpu_custom_call.1} parent=47 // pred_region
          %s768 = sand.u32 %s43, 1
          %s769 = scalar_lea.sflag [#allocation19], %s768
          %s770 = sand.u32 %s331, 1
          %s771 = scalar_lea.vmem [#allocation18], %s770
          %773 = vsyncadd %s769, 0
          %s774 = scalar_lea.hbm %s11, %s51
          %s776 = sshll.u32 %s774, 4
          %s777 = int_to_ptr.hbm [resolvable:$true] %s776
          %s778 = sshll.u32 %s771, 4
          %s779 = int_to_ptr.vmem [resolvable:$true] %s778
          %781 = dma.hbm_to_vmem [thread:$0]  %s777, 16, %s779, %s769
        $region76: #{tpu_custom_call.1} parent=47 // pred_fallthru
          _
        // Predicated region
        $region77: #{tpu_custom_call.1} parent=47 // pred_check
          %p782 = pneg %p367
        $region78: #{tpu_custom_call.1} parent=47 // pred_check_branch
          %784 = sbr.rel (%p782) target = $region80
        $region79: #{tpu_custom_call.1} parent=47 // pred_region
          %s785 = sand.u32 %s43, 1
          %s786 = scalar_lea.sflag [#allocation19], %s785
          %s787 = sand.u32 %s357, 1
          %s788 = scalar_lea.vmem [#allocation20], %s787
          %790 = vsyncadd %s786, 0
          %s791 = scalar_lea.hbm %s12, %s51
          %s793 = sshll.u32 %s791, 4
          %s794 = int_to_ptr.hbm [resolvable:$true] %s793
          %s795 = sshll.u32 %s788, 4
          %s796 = int_to_ptr.vmem [resolvable:$true] %s795
          %798 = dma.hbm_to_vmem [thread:$0]  %s794, 16, %s796, %s786
        $region80: #{tpu_custom_call.1} parent=47 // pred_fallthru
          _
        // Predicated region
        $region81: #{tpu_custom_call.1} parent=47 // pred_check
          %p799 = pneg %p393
        $region82: #{tpu_custom_call.1} parent=47 // pred_check_branch
          %801 = sbr.rel (%p799) target = $region84
        $region83: #{tpu_custom_call.1} parent=47 // pred_region
          %s802 = sand.u32 %s43, 1
          %s803 = scalar_lea.sflag [#allocation22], %s802
          %s804 = sand.u32 %s383, 1
          %s805 = smul.addr %s804, 256
          %s806 = scalar_lea.vmem [#allocation21], %s805
          %808 = vsyncadd %s803, 0
          %s809 = smul.addr %s51, 64
          %s810 = smul.addr %s809, 4
          %s811 = scalar_lea.hbm %s13, %s810
          %s812 = sshll.u32 %s811, 4
          %s813 = int_to_ptr.hbm [resolvable:$true] %s812
          %s814 = sshll.u32 %s806, 4
          %s815 = int_to_ptr.vmem [resolvable:$true] %s814
          %820 = dma.hbm_to_vmem [thread:$0]  %s813, 4096, %s815, %s803, 256, 256, 16
        $region84: #{tpu_custom_call.1} parent=47 // pred_fallthru
          _
        // Predicated region
        $region85: #{tpu_custom_call.1} parent=47 // pred_check
          %p821 = pneg %p419
        $region86: #{tpu_custom_call.1} parent=47 // pred_check_branch
          %823 = sbr.rel (%p821) target = $region88
        $region87: #{tpu_custom_call.1} parent=47 // pred_region
          %p824 = scmp.lt.s32.totalorder %s51, 1
          %s825 = scalar_select %p824, %s51, 1
          %s826 = smul.addr %s825, 4
          %s827 = scalar_lea.vmem %s14, %s826
        $region88: #{tpu_custom_call.1} parent=47 // pred_fallthru
          _
        // Predicated region
        $region89: #{tpu_custom_call.1} parent=47 // pred_check
          %p828 = pneg %p445
        $region90: #{tpu_custom_call.1} parent=47 // pred_check_branch
          %830 = sbr.rel (%p828) target = $region92
        $region91: #{tpu_custom_call.1} parent=47 // pred_region
          %s831 = sand.u32 %s43, 1
          %s832 = scalar_lea.sflag [#allocation22], %s831
          %s833 = sand.u32 %s435, 1
          %s834 = smul.addr %s833, 256
          %s835 = scalar_lea.vmem [#allocation23], %s834
          %837 = vsyncadd %s832, 0
          %s838 = smul.addr %s51, 64
          %s839 = smul.addr %s838, 4
          %s840 = scalar_lea.hbm %s15, %s839
          %s841 = sshll.u32 %s840, 4
          %s842 = int_to_ptr.hbm [resolvable:$true] %s841
          %s843 = sshll.u32 %s835, 4
          %s844 = int_to_ptr.vmem [resolvable:$true] %s843
          %849 = dma.hbm_to_vmem [thread:$0]  %s842, 4096, %s844, %s832, 64, 64, 4
        $region92: #{tpu_custom_call.1} parent=47 // pred_fallthru
          _
        // Predicated region
        $region93: #{tpu_custom_call.1} parent=47 // pred_check
          %p850 = pneg %p471
        $region94: #{tpu_custom_call.1} parent=47 // pred_check_branch
          %852 = sbr.rel (%p850) target = $region96
        $region95: #{tpu_custom_call.1} parent=47 // pred_region
          %p853 = scmp.lt.s32.totalorder %s51, 1
          %s854 = scalar_select %p853, %s51, 1
          %s855 = scalar_lea.vmem %s16, %s854
        $region96: #{tpu_custom_call.1} parent=47 // pred_fallthru
          _
      $region48: #{tpu_custom_call.1} parent=5 // pred_fallthru
        _
      %p856 = scmp.le.s32.totalorder 1, %s43
      %p857 = scmp.lt.s32.totalorder %s43, 3
      %p858 = pnand %p856, %p857
      %p859 = pneg %p858
      // Predicated region
      $region97: #{tpu_custom_call.1} parent=5 // pred_check
        _
      $region98: #{tpu_custom_call.1} parent=5 // pred_check_branch
        %861 = sbr.rel (%p858) target = $region100
      $region99: #{tpu_custom_call.1} parent=5 // pred_region
        %s862 = ssub.s32 %s43, 1
        // Predicated region
        $region101: #{tpu_custom_call.1} parent=99 // pred_check
          %p863 = pneg %p81
        $region102: #{tpu_custom_call.1} parent=99 // pred_check_branch
          %865 = sbr.rel (%p863) target = $region104
        $region103: #{tpu_custom_call.1} parent=99 // pred_region
          %867 = dma.done [#allocation4], 384
        $region104: #{tpu_custom_call.1} parent=99 // pred_fallthru
          _
        // Predicated region
        $region105: #{tpu_custom_call.1} parent=99 // pred_check
          %p868 = pneg %p102
        $region106: #{tpu_custom_call.1} parent=99 // pred_check_branch
          %870 = sbr.rel (%p868) target = $region108
        $region107: #{tpu_custom_call.1} parent=99 // pred_region
          %872 = dma.done [#allocation7], 16
        $region108: #{tpu_custom_call.1} parent=99 // pred_fallthru
          _
        // Predicated region
        $region109: #{tpu_custom_call.1} parent=99 // pred_check
          %p873 = pneg %p123
        $region110: #{tpu_custom_call.1} parent=99 // pred_check_branch
          %875 = sbr.rel (%p873) target = $region112
        $region111: #{tpu_custom_call.1} parent=99 // pred_region
          %877 = dma.done [#allocation7], 128
        $region112: #{tpu_custom_call.1} parent=99 // pred_fallthru
          _
        // Predicated region
        $region113: #{tpu_custom_call.1} parent=99 // pred_check
          %p878 = pneg %p144
        $region114: #{tpu_custom_call.1} parent=99 // pred_check_branch
          %880 = sbr.rel (%p878) target = $region116
        $region115: #{tpu_custom_call.1} parent=99 // pred_region
          %882 = dma.done [#allocation10], 6144
        $region116: #{tpu_custom_call.1} parent=99 // pred_fallthru
          _
        // Predicated region
        $region117: #{tpu_custom_call.1} parent=99 // pred_check
          %p883 = pneg %p165
        $region118: #{tpu_custom_call.1} parent=99 // pred_check_branch
          %885 = sbr.rel (%p883) target = $region120
        $region119: #{tpu_custom_call.1} parent=99 // pred_region
          %887 = dma.done [#allocation10], 16
        $region120: #{tpu_custom_call.1} parent=99 // pred_fallthru
          _
        %s888 = sand.u32 %s48, 1
        %s889 = scalar_lea.sflag [#allocation13], %s888
        %s890 = sand.u32 %s230, 1
        %s891 = smul.addr %s890, 192
        %s892 = scalar_lea.vmem [#allocation12], %s891
        // Predicated region
        $region121: #{tpu_custom_call.1} parent=99 // pred_check
          %p893 = pneg %p243
        $region122: #{tpu_custom_call.1} parent=99 // pred_check_branch
          %895 = sbr.rel (%p893) target = $region124
        $region123: #{tpu_custom_call.1} parent=99 // pred_region
          %897 = dma.done %s889, 3072
        $region124: #{tpu_custom_call.1} parent=99 // pred_fallthru
          _
        %s898 = sand.u32 %s48, 1
        %s899 = scalar_lea.sflag [#allocation13], %s898
        %s900 = sand.u32 %s256, 1
        %s901 = smul.addr %s900, 3
        %s902 = scalar_lea.vmem [#allocation14], %s901
        // Predicated region
        $region125: #{tpu_custom_call.1} parent=99 // pred_check
          %p903 = pneg %p269
        $region126: #{tpu_custom_call.1} parent=99 // pred_check_branch
          %905 = sbr.rel (%p903) target = $region128
        $region127: #{tpu_custom_call.1} parent=99 // pred_region
          %907 = dma.done %s899, 48
        $region128: #{tpu_custom_call.1} parent=99 // pred_fallthru
          _
        %s908 = sand.u32 %s48, 1
        %s909 = scalar_lea.sflag [#allocation16], %s908
        %s910 = sand.u32 %s282, 1
        %s911 = smul.addr %s910, 64
        %s912 = scalar_lea.vmem [#allocation15], %s911
        // Predicated region
        $region129: #{tpu_custom_call.1} parent=99 // pred_check
          %p913 = pneg %p295
        $region130: #{tpu_custom_call.1} parent=99 // pred_check_branch
          %915 = sbr.rel (%p913) target = $region132
        $region131: #{tpu_custom_call.1} parent=99 // pred_region
          %917 = dma.done %s909, 1024
        $region132: #{tpu_custom_call.1} parent=99 // pred_fallthru
          _
        %s918 = sand.u32 %s48, 1
        %s919 = scalar_lea.sflag [#allocation16], %s918
        %s920 = sand.u32 %s308, 1
        %s921 = scalar_lea.vmem [#allocation17], %s920
        // Predicated region
        $region133: #{tpu_custom_call.1} parent=99 // pred_check
          %p922 = pneg %p321
        $region134: #{tpu_custom_call.1} parent=99 // pred_check_branch
          %924 = sbr.rel (%p922) target = $region136
        $region135: #{tpu_custom_call.1} parent=99 // pred_region
          %926 = dma.done %s919, 16
        $region136: #{tpu_custom_call.1} parent=99 // pred_fallthru
          _
        %s927 = sand.u32 %s48, 1
        %s928 = scalar_lea.sflag [#allocation19], %s927
        %s929 = sand.u32 %s334, 1
        %s930 = scalar_lea.vmem [#allocation18], %s929
        // Predicated region
        $region137: #{tpu_custom_call.1} parent=99 // pred_check
          %p931 = pneg %p347
        $region138: #{tpu_custom_call.1} parent=99 // pred_check_branch
          %933 = sbr.rel (%p931) target = $region140
        $region139: #{tpu_custom_call.1} parent=99 // pred_region
          %935 = dma.done %s928, 16
        $region140: #{tpu_custom_call.1} parent=99 // pred_fallthru
          _
        %s936 = sand.u32 %s48, 1
        %s937 = scalar_lea.sflag [#allocation19], %s936
        %s938 = sand.u32 %s360, 1
        %s939 = scalar_lea.vmem [#allocation20], %s938
        // Predicated region
        $region141: #{tpu_custom_call.1} parent=99 // pred_check
          %p940 = pneg %p373
        $region142: #{tpu_custom_call.1} parent=99 // pred_check_branch
          %942 = sbr.rel (%p940) target = $region144
        $region143: #{tpu_custom_call.1} parent=99 // pred_region
          %944 = dma.done %s937, 16
        $region144: #{tpu_custom_call.1} parent=99 // pred_fallthru
          _
        %s945 = sand.u32 %s48, 1
        %s946 = scalar_lea.sflag [#allocation22], %s945
        %s947 = sand.u32 %s386, 1
        %s948 = smul.addr %s947, 256
        %s949 = scalar_lea.vmem [#allocation21], %s948
        // Predicated region
        $region145: #{tpu_custom_call.1} parent=99 // pred_check
          %p950 = pneg %p399
        $region146: #{tpu_custom_call.1} parent=99 // pred_check_branch
          %952 = sbr.rel (%p950) target = $region148
        $region147: #{tpu_custom_call.1} parent=99 // pred_region
          %954 = dma.done %s946, 4096
        $region148: #{tpu_custom_call.1} parent=99 // pred_fallthru
          _
        %s955 = sand.u32 %s48, 1
        %s956 = scalar_lea.sflag [#allocation22], %s955
        %s957 = sand.u32 %s438, 1
        %s958 = smul.addr %s957, 256
        %s959 = scalar_lea.vmem [#allocation23], %s958
        // Predicated region
        $region149: #{tpu_custom_call.1} parent=99 // pred_check
          %p960 = pneg %p451
        $region150: #{tpu_custom_call.1} parent=99 // pred_check_branch
          %962 = sbr.rel (%p960) target = $region152
        $region151: #{tpu_custom_call.1} parent=99 // pred_region
          %964 = dma.done %s956, 4096
        $region152: #{tpu_custom_call.1} parent=99 // pred_fallthru
          _
        // Predicated region
        $region153: #{tpu_custom_call.1} parent=99 // pred_check
          %p965 = pneg %p540
        $region154: #{tpu_custom_call.1} parent=99 // pred_check_branch
          %967 = sbr.rel (%p965) target = $region156
        $region155: #{tpu_custom_call.1} parent=99 // pred_region
          %969 = dma.done [#allocation25], 1024
        $region156: #{tpu_custom_call.1} parent=99 // pred_fallthru
          _
        %p970 = pneg %p81
        %p971 = pneg %p78
        %p972 = pneg %p102
        %p973 = pneg %p99
        %p974 = pneg %p123
        %p975 = pneg %p120
        %p976 = pneg %p144
        %p977 = pneg %p141
        %p978 = pneg %p165
        %p979 = pneg %p162
        %p980 = scmp.lt.s32.totalorder %s53, 1
        %s981 = scalar_select %p980, %s53, 1
        %s982 = scalar_lea.vmem %s5, %s981
        %p983 = pneg %p191
        %p984 = pneg %p188
        %p985 = scmp.lt.s32.totalorder %s53, 1
        %s986 = scalar_select %p985, %s53, 1
        %s987 = scalar_lea.vmem %s6, %s986
        %p988 = pneg %p217
        %p989 = pneg %p214
        %s990 = sand.u32 %s48, 1
        %s991 = scalar_lea.sflag [#allocation13], %s990
        %s992 = sand.u32 %s230, 1
        %s993 = smul.addr %s992, 192
        %s994 = scalar_lea.vmem [#allocation12], %s993
        %p995 = pneg %p243
        %p996 = pneg %p240
        %s997 = sand.u32 %s48, 1
        %s998 = scalar_lea.sflag [#allocation13], %s997
        %s999 = sand.u32 %s256, 1
        %s1000 = smul.addr %s999, 3
        %s1001 = scalar_lea.vmem [#allocation14], %s1000
        %p1002 = pneg %p269
        %p1003 = pneg %p266
        %s1004 = sand.u32 %s48, 1
        %s1005 = scalar_lea.sflag [#allocation16], %s1004
        %s1006 = sand.u32 %s282, 1
        %s1007 = smul.addr %s1006, 64
        %s1008 = scalar_lea.vmem [#allocation15], %s1007
        %p1009 = pneg %p295
        %p1010 = pneg %p292
        %s1011 = sand.u32 %s48, 1
        %s1012 = scalar_lea.sflag [#allocation16], %s1011
        %s1013 = sand.u32 %s308, 1
        %s1014 = scalar_lea.vmem [#allocation17], %s1013
        %p1015 = pneg %p321
        %p1016 = pneg %p318
        %s1017 = sand.u32 %s48, 1
        %s1018 = scalar_lea.sflag [#allocation19], %s1017
        %s1019 = sand.u32 %s334, 1
        %s1020 = scalar_lea.vmem [#allocation18], %s1019
        %p1021 = pneg %p347
        %p1022 = pneg %p344
        %s1023 = sand.u32 %s48, 1
        %s1024 = scalar_lea.sflag [#allocation19], %s1023
        %s1025 = sand.u32 %s360, 1
        %s1026 = scalar_lea.vmem [#allocation20], %s1025
        %p1027 = pneg %p373
        %p1028 = pneg %p370
        %s1029 = sand.u32 %s48, 1
        %s1030 = scalar_lea.sflag [#allocation22], %s1029
        %s1031 = sand.u32 %s386, 1
        %s1032 = smul.addr %s1031, 256
        %s1033 = scalar_lea.vmem [#allocation21], %s1032
        %p1034 = pneg %p399
        %p1035 = pneg %p396
        %p1036 = scmp.lt.s32.totalorder %s53, 1
        %s1037 = scalar_select %p1036, %s53, 1
        %s1038 = smul.addr %s1037, 4
        %s1039 = scalar_lea.vmem %s14, %s1038
        %p1040 = pneg %p425
        %p1041 = pneg %p422
        %s1042 = sand.u32 %s48, 1
        %s1043 = scalar_lea.sflag [#allocation22], %s1042
        %s1044 = sand.u32 %s438, 1
        %s1045 = smul.addr %s1044, 256
        %s1046 = scalar_lea.vmem [#allocation23], %s1045
        %p1047 = pneg %p451
        %p1048 = pneg %p448
        %p1049 = scmp.lt.s32.totalorder %s53, 1
        %s1050 = scalar_select %p1049, %s53, 1
        %s1051 = scalar_lea.vmem %s16, %s1050
        %p1052 = pneg %p477
        %p1053 = pneg %p474
        %p1054 = pneg %p498
        %p1055 = pneg %p495
        %p1056 = pneg %p519
        %p1057 = pneg %p516
        %p1058 = pneg %p540
        %p1059 = pneg %p537
        %p1060 = pneg %p566
        %p1061 = pneg %p563
        %s1062 = smul.u32 2, %s52
        %p1063 = scmp.lt.s32.totalorder %s53, 1
        %s1064 = scalar_select %p1063, %s53, 1
        %s1065 = scalar_lea.vmem %s5, %s1064
        %p1066 = scmp.lt.s32.totalorder %s53, 1
        %s1067 = scalar_select %p1066, %s53, 1
        %s1068 = scalar_lea.vmem %s6, %s1067
        %p1069 = scmp.lt.s32.totalorder %s53, 1
        %s1070 = scalar_select %p1069, %s53, 1
        %s1071 = smul.addr %s1070, 4
        %s1072 = scalar_lea.vmem %s14, %s1071
        %p1073 = scmp.lt.s32.totalorder %s53, 1
        %s1074 = scalar_select %p1073, %s53, 1
        %s1075 = scalar_lea.vmem %s16, %s1074
        %p1077 = scmp.eq.s32.totalorder %s53, 0
        // Predicated region
        $region157: #{tpu_custom_call.1} parent=99 // pred_check
          %p1078 = pneg %p1077
        $region158: #{tpu_custom_call.1} parent=99 // pred_check_branch
          %1080 = sbr.rel (%p1078) target = $region160
        $region159: #{tpu_custom_call.1} parent=99 // pred_region
          %v1081 = vld [vmem:[#allocation8] sm:$0x1f]
          %v1082 = vld [vmem:[#allocation11] sm:$0x1]
          %v1083 = vld [vmem:[#allocation3] sm:$0xff]
          %v1084 = vld [vmem:[#allocation3 + $0x8] sm:$0xf]
          %v1085 = vld [vmem:[#allocation9] sm:$0xf]
          %v1086 = vld [vmem:[#allocation9 + $0x4] sm:$0xf]
          %v1087 = vld [vmem:[#allocation9 + $0x8] sm:$0xf]
          %v1088 = vld [vmem:[#allocation9 + $0xc] sm:$0xf]
          %v1089 = vld [vmem:[#allocation9 + $0x10] sm:$0xf]
          %v1090 = vld [vmem:[#allocation9 + $0x14] sm:$0xf]
          %v1091 = vld [vmem:[#allocation9 + $0x18] sm:$0xf]
          %v1092 = vld [vmem:[#allocation9 + $0x1c] sm:$0xf]
          %v1093 = vld [vmem:[#allocation9 + $0x20] sm:$0xf]
          %v1094 = vld [vmem:[#allocation9 + $0x24] sm:$0xf]
          %v1095 = vld [vmem:[#allocation9 + $0x28] sm:$0xf]
          %v1096 = vld [vmem:[#allocation9 + $0x2c] sm:$0xf]
          %v1097 = vld [vmem:[#allocation9 + $0x30] sm:$0xf]
          %v1098 = vld [vmem:[#allocation9 + $0x34] sm:$0xf]
          %v1099 = vld [vmem:[#allocation9 + $0x38] sm:$0xf]
          %v1100 = vld [vmem:[#allocation9 + $0x3c] sm:$0xf]
          %v1101 = vld [vmem:[#allocation9 + $0x40] sm:$0xf]
          %v1102 = vld [vmem:[#allocation9 + $0x44] sm:$0xf]
          %v1103 = vld [vmem:[#allocation9 + $0x48] sm:$0xf]
          %v1104 = vld [vmem:[#allocation9 + $0x4c] sm:$0xf]
          %v1105 = vld [vmem:[#allocation9 + $0x50] sm:$0xf]
          %v1106 = vld [vmem:[#allocation9 + $0x54] sm:$0xf]
          %v1107 = vld [vmem:[#allocation9 + $0x58] sm:$0xf]
          %v1108 = vld [vmem:[#allocation9 + $0x5c] sm:$0xf]
          %v1109 = vld [vmem:[#allocation9 + $0x60] sm:$0xf]
          %v1110 = vld [vmem:[#allocation9 + $0x64] sm:$0xf]
          %v1111 = vld [vmem:[#allocation9 + $0x68] sm:$0xf]
          %v1112 = vld [vmem:[#allocation9 + $0x6c] sm:$0xf]
          %v1113 = vld [vmem:[#allocation9 + $0x70] sm:$0xf]
          %v1114 = vld [vmem:[#allocation9 + $0x74] sm:$0xf]
          %v1115 = vld [vmem:[#allocation9 + $0x78] sm:$0xf]
          %v1116 = vld [vmem:[#allocation9 + $0x7c] sm:$0xf]
          %v1117 = vld [vmem:[#allocation9 + $0x80] sm:$0xf]
          %v1118 = vld [vmem:[#allocation9 + $0x84] sm:$0xf]
          %v1119 = vld [vmem:[#allocation9 + $0x88] sm:$0xf]
          %v1120 = vld [vmem:[#allocation9 + $0x8c] sm:$0xf]
          %v1121 = vld [vmem:[#allocation9 + $0x90] sm:$0xf]
          %v1122 = vld [vmem:[#allocation9 + $0x94] sm:$0xf]
          %v1123 = vld [vmem:[#allocation9 + $0x98] sm:$0xf]
          %v1124 = vld [vmem:[#allocation9 + $0x9c] sm:$0xf]
          %v1125 = vld [vmem:[#allocation9 + $0xa0] sm:$0xf]
          %v1126 = vld [vmem:[#allocation9 + $0xa4] sm:$0xf]
          %v1127 = vld [vmem:[#allocation9 + $0xa8] sm:$0xf]
          %v1128 = vld [vmem:[#allocation9 + $0xac] sm:$0xf]
          %v1129 = vld [vmem:[#allocation9 + $0xb0] sm:$0xf]
          %v1130 = vld [vmem:[#allocation9 + $0xb4] sm:$0xf]
          %v1131 = vld [vmem:[#allocation9 + $0xb8] sm:$0xf]
          %v1132 = vld [vmem:[#allocation9 + $0xbc] sm:$0xf]
          %v1133 = vld [vmem:[#allocation9 + $0xc0] sm:$0xf]
          %v1134 = vld [vmem:[#allocation9 + $0xc4] sm:$0xf]
          %v1135 = vld [vmem:[#allocation9 + $0xc8] sm:$0xf]
          %v1136 = vld [vmem:[#allocation9 + $0xcc] sm:$0xf]
          %v1137 = vld [vmem:[#allocation9 + $0xd0] sm:$0xf]
          %v1138 = vld [vmem:[#allocation9 + $0xd4] sm:$0xf]
          %v1139 = vld [vmem:[#allocation9 + $0xd8] sm:$0xf]
          %v1140 = vld [vmem:[#allocation9 + $0xdc] sm:$0xf]
          %v1141 = vld [vmem:[#allocation9 + $0xe0] sm:$0xf]
          %v1142 = vld [vmem:[#allocation9 + $0xe4] sm:$0xf]
          %v1143 = vld [vmem:[#allocation9 + $0xe8] sm:$0xf]
          %v1144 = vld [vmem:[#allocation9 + $0xec] sm:$0xf]
          %v1145 = vld [vmem:[#allocation9 + $0xf0] sm:$0xf]
          %v1146 = vld [vmem:[#allocation9 + $0xf4] sm:$0xf]
          %v1147 = vld [vmem:[#allocation9 + $0xf8] sm:$0xf]
          %v1148 = vld [vmem:[#allocation9 + $0xfc] sm:$0xf]
          %v1149 = vld [vmem:[#allocation9 + $0x100] sm:$0xf]
          %v1150 = vld [vmem:[#allocation9 + $0x104] sm:$0xf]
          %v1151 = vld [vmem:[#allocation9 + $0x108] sm:$0xf]
          %v1152 = vld [vmem:[#allocation9 + $0x10c] sm:$0xf]
          %v1153 = vld [vmem:[#allocation9 + $0x110] sm:$0xf]
          %v1154 = vld [vmem:[#allocation9 + $0x114] sm:$0xf]
          %v1155 = vld [vmem:[#allocation9 + $0x118] sm:$0xf]
          %v1156 = vld [vmem:[#allocation9 + $0x11c] sm:$0xf]
          %v1157 = vld [vmem:[#allocation9 + $0x120] sm:$0xf]
          %v1158 = vld [vmem:[#allocation9 + $0x124] sm:$0xf]
          %v1159 = vld [vmem:[#allocation9 + $0x128] sm:$0xf]
          %v1160 = vld [vmem:[#allocation9 + $0x12c] sm:$0xf]
          %v1161 = vld [vmem:[#allocation9 + $0x130] sm:$0xf]
          %v1162 = vld [vmem:[#allocation9 + $0x134] sm:$0xf]
          %v1163 = vld [vmem:[#allocation9 + $0x138] sm:$0xf]
          %v1164 = vld [vmem:[#allocation9 + $0x13c] sm:$0xf]
          %v1165 = vld [vmem:[#allocation9 + $0x140] sm:$0xf]
          %v1166 = vld [vmem:[#allocation9 + $0x144] sm:$0xf]
          %v1167 = vld [vmem:[#allocation9 + $0x148] sm:$0xf]
          %v1168 = vld [vmem:[#allocation9 + $0x14c] sm:$0xf]
          %v1169 = vld [vmem:[#allocation9 + $0x150] sm:$0xf]
          %v1170 = vld [vmem:[#allocation9 + $0x154] sm:$0xf]
          %v1171 = vld [vmem:[#allocation9 + $0x158] sm:$0xf]
          %v1172 = vld [vmem:[#allocation9 + $0x15c] sm:$0xf]
          %v1173 = vld [vmem:[#allocation9 + $0x160] sm:$0xf]
          %v1174 = vld [vmem:[#allocation9 + $0x164] sm:$0xf]
          %v1175 = vld [vmem:[#allocation9 + $0x168] sm:$0xf]
          %v1176 = vld [vmem:[#allocation9 + $0x16c] sm:$0xf]
          %v1177 = vld [vmem:[#allocation9 + $0x170] sm:$0xf]
          %v1178 = vld [vmem:[#allocation9 + $0x174] sm:$0xf]
          %v1179 = vld [vmem:[#allocation9 + $0x178] sm:$0xf]
          %v1180 = vld [vmem:[#allocation9 + $0x17c] sm:$0xf]
          %v1182 = vperm.slane %v1082, 0
          %1185 = vst [vmem:[#allocation1] ss:$4 sm:$0xff] %v1083
          %s1187 = scalar_lea.vmem [#allocation1], 32
          %1188 = vst [vmem:[%s1187] ss:$4 sm:$0xff] %v1084
          %v1189 = vld.sshfl [vmem:[#allocation1] sm:$0xff pattern:$0x73625140]
          %v1190 = vld.sshfl [vmem:[#allocation1 + $0x8] sm:$0xff pattern:$0x73625140]
          %v1191 = vld.sshfl [vmem:[#allocation1 + $0x10] sm:$0xff pattern:$0x73625140]
          %v1192 = vld.sshfl [vmem:[#allocation1 + $0x18] sm:$0xff pattern:$0x73625140]
          %v1193 = vld.sshfl [vmem:[#allocation1 + $0x20] sm:$0xff pattern:$0x73625140]
          %v1194 = vld.sshfl [vmem:[#allocation1 + $0x28] sm:$0xff pattern:$0x73625140]
          %v1297 = vunpack.c.l.b16 %v1085
          %v1298 = vunpack.c.l.b16 %v1086
          %v1299 = vunpack.c.l.b16 %v1087
          %v1300 = vunpack.c.l.b16 %v1088
          %v1301 = vunpack.c.l.b16 %v1089
          %v1302 = vunpack.c.l.b16 %v1090
          %v1303 = vunpack.c.l.b16 %v1091
          %v1304 = vunpack.c.l.b16 %v1092
          %v1305 = vunpack.c.l.b16 %v1093
          %v1306 = vunpack.c.l.b16 %v1094
          %v1307 = vunpack.c.l.b16 %v1095
          %v1308 = vunpack.c.l.b16 %v1096
          %v1309 = vunpack.c.l.b16 %v1097
          %v1310 = vunpack.c.l.b16 %v1098
          %v1311 = vunpack.c.l.b16 %v1099
          %v1312 = vunpack.c.l.b16 %v1100
          %v1313 = vunpack.c.l.b16 %v1101
          %v1314 = vunpack.c.l.b16 %v1102
          %v1315 = vunpack.c.l.b16 %v1103
          %v1316 = vunpack.c.l.b16 %v1104
          %v1317 = vunpack.c.l.b16 %v1105
          %v1318 = vunpack.c.l.b16 %v1106
          %v1319 = vunpack.c.l.b16 %v1107
          %v1320 = vunpack.c.l.b16 %v1108
          %v1321 = vunpack.c.l.b16 %v1109
          %v1322 = vunpack.c.l.b16 %v1110
          %v1323 = vunpack.c.l.b16 %v1111
          %v1324 = vunpack.c.l.b16 %v1112
          %v1325 = vunpack.c.l.b16 %v1113
          %v1326 = vunpack.c.l.b16 %v1114
          %v1327 = vunpack.c.l.b16 %v1115
          %v1328 = vunpack.c.l.b16 %v1116
          %v1329 = vunpack.c.l.b16 %v1117
          %v1330 = vunpack.c.l.b16 %v1118
          %v1331 = vunpack.c.l.b16 %v1119
          %v1332 = vunpack.c.l.b16 %v1120
          %v1333 = vunpack.c.l.b16 %v1121
          %v1334 = vunpack.c.l.b16 %v1122
          %v1335 = vunpack.c.l.b16 %v1123
          %v1336 = vunpack.c.l.b16 %v1124
          %v1337 = vunpack.c.l.b16 %v1125
          %v1338 = vunpack.c.l.b16 %v1126
          %v1339 = vunpack.c.l.b16 %v1127
          %v1340 = vunpack.c.l.b16 %v1128
          %v1341 = vunpack.c.l.b16 %v1129
          %v1342 = vunpack.c.l.b16 %v1130
          %v1343 = vunpack.c.l.b16 %v1131
          %v1344 = vunpack.c.l.b16 %v1132
          %v1345 = vunpack.c.l.b16 %v1133
          %v1346 = vunpack.c.l.b16 %v1134
          %v1347 = vunpack.c.l.b16 %v1135
          %v1348 = vunpack.c.l.b16 %v1136
          %v1349 = vunpack.c.l.b16 %v1137
          %v1350 = vunpack.c.l.b16 %v1138
          %v1351 = vunpack.c.l.b16 %v1139
          %v1352 = vunpack.c.l.b16 %v1140
          %v1353 = vunpack.c.l.b16 %v1141
          %v1354 = vunpack.c.l.b16 %v1142
          %v1355 = vunpack.c.l.b16 %v1143
          %v1356 = vunpack.c.l.b16 %v1144
          %v1357 = vunpack.c.l.b16 %v1145
          %v1358 = vunpack.c.l.b16 %v1146
          %v1359 = vunpack.c.l.b16 %v1147
          %v1360 = vunpack.c.l.b16 %v1148
          %v1361 = vunpack.c.l.b16 %v1149
          %v1362 = vunpack.c.l.b16 %v1150
          %v1363 = vunpack.c.l.b16 %v1151
          %v1364 = vunpack.c.l.b16 %v1152
          %v1365 = vunpack.c.l.b16 %v1153
          %v1366 = vunpack.c.l.b16 %v1154
          %v1367 = vunpack.c.l.b16 %v1155
          %v1368 = vunpack.c.l.b16 %v1156
          %v1369 = vunpack.c.l.b16 %v1157
          %v1370 = vunpack.c.l.b16 %v1158
          %v1371 = vunpack.c.l.b16 %v1159
          %v1372 = vunpack.c.l.b16 %v1160
          %v1373 = vunpack.c.l.b16 %v1161
          %v1374 = vunpack.c.l.b16 %v1162
          %v1375 = vunpack.c.l.b16 %v1163
          %v1376 = vunpack.c.l.b16 %v1164
          %v1377 = vunpack.c.l.b16 %v1165
          %v1378 = vunpack.c.l.b16 %v1166
          %v1379 = vunpack.c.l.b16 %v1167
          %v1380 = vunpack.c.l.b16 %v1168
          %v1381 = vunpack.c.l.b16 %v1169
          %v1382 = vunpack.c.l.b16 %v1170
          %v1383 = vunpack.c.l.b16 %v1171
          %v1384 = vunpack.c.l.b16 %v1172
          %v1385 = vunpack.c.l.b16 %v1173
          %v1386 = vunpack.c.l.b16 %v1174
          %v1387 = vunpack.c.l.b16 %v1175
          %v1388 = vunpack.c.l.b16 %v1176
          %v1389 = vunpack.c.l.b16 %v1177
          %v1390 = vunpack.c.l.b16 %v1178
          %v1391 = vunpack.c.l.b16 %v1179
          %v1392 = vunpack.c.l.b16 %v1180
          %v1393 = vpack.c.b16 %v1298, %v1297
          %v1394 = vpack.c.b16 %v1300, %v1299
          %v1395 = vpack.c.b16 %v1302, %v1301
          %v1396 = vpack.c.b16 %v1304, %v1303
          %v1397 = vpack.c.b16 %v1306, %v1305
          %v1398 = vpack.c.b16 %v1308, %v1307
          %v1399 = vpack.c.b16 %v1310, %v1309
          %v1400 = vpack.c.b16 %v1312, %v1311
          %v1401 = vpack.c.b16 %v1314, %v1313
          %v1402 = vpack.c.b16 %v1316, %v1315
          %v1403 = vpack.c.b16 %v1318, %v1317
          %v1404 = vpack.c.b16 %v1320, %v1319
          %v1405 = vpack.c.b16 %v1322, %v1321
          %v1406 = vpack.c.b16 %v1324, %v1323
          %v1407 = vpack.c.b16 %v1326, %v1325
          %v1408 = vpack.c.b16 %v1328, %v1327
          %v1409 = vpack.c.b16 %v1330, %v1329
          %v1410 = vpack.c.b16 %v1332, %v1331
          %v1411 = vpack.c.b16 %v1334, %v1333
          %v1412 = vpack.c.b16 %v1336, %v1335
          %v1413 = vpack.c.b16 %v1338, %v1337
          %v1414 = vpack.c.b16 %v1340, %v1339
          %v1415 = vpack.c.b16 %v1342, %v1341
          %v1416 = vpack.c.b16 %v1344, %v1343
          %v1417 = vpack.c.b16 %v1346, %v1345
          %v1418 = vpack.c.b16 %v1348, %v1347
          %v1419 = vpack.c.b16 %v1350, %v1349
          %v1420 = vpack.c.b16 %v1352, %v1351
          %v1421 = vpack.c.b16 %v1354, %v1353
          %v1422 = vpack.c.b16 %v1356, %v1355
          %v1423 = vpack.c.b16 %v1358, %v1357
          %v1424 = vpack.c.b16 %v1360, %v1359
          %v1425 = vpack.c.b16 %v1362, %v1361
          %v1426 = vpack.c.b16 %v1364, %v1363
          %v1427 = vpack.c.b16 %v1366, %v1365
          %v1428 = vpack.c.b16 %v1368, %v1367
          %v1429 = vpack.c.b16 %v1370, %v1369
          %v1430 = vpack.c.b16 %v1372, %v1371
          %v1431 = vpack.c.b16 %v1374, %v1373
          %v1432 = vpack.c.b16 %v1376, %v1375
          %v1433 = vpack.c.b16 %v1378, %v1377
          %v1434 = vpack.c.b16 %v1380, %v1379
          %v1435 = vpack.c.b16 %v1382, %v1381
          %v1436 = vpack.c.b16 %v1384, %v1383
          %v1437 = vpack.c.b16 %v1386, %v1385
          %v1438 = vpack.c.b16 %v1388, %v1387
          %v1439 = vpack.c.b16 %v1390, %v1389
          %v1440 = vpack.c.b16 %v1392, %v1391
          %1489 = vmatpush.bf16.msra.mxu0 %v1400
          %1490 = vmatpush.bf16.msra.mxu0 %v1399
          %1491 = vmatpush.bf16.msra.mxu0 %v1398
          %1492 = vmatpush.bf16.msra.mxu0 %v1397
          %1493 = vmatpush.bf16.msra.mxu0 %v1396
          %1494 = vmatpush.bf16.msra.mxu0 %v1395
          %1495 = vmatpush.bf16.msra.mxu0 %v1394
          %1496 = vmatpush.bf16.msra.mxu0 %v1393
          %1497 = vmatmul.bf16.gmra.mxu0 %v1189
          %v1498 = vpop.f32.mrf.mxu0
          %v1499 = vadd.f32 %v1182, %v1498
          %v1500 = vpop.f32.mrf.mxu0
          %1501 = vdwg.mxu0
          %1502 = vmatpush.bf16.msra.mxu0 %v1408
          %1503 = vmatpush.bf16.msra.mxu0 %v1407
          %1504 = vmatpush.bf16.msra.mxu0 %v1406
          %1505 = vmatpush.bf16.msra.mxu0 %v1405
          %1506 = vmatpush.bf16.msra.mxu0 %v1404
          %1507 = vmatpush.bf16.msra.mxu0 %v1403
          %1508 = vmatpush.bf16.msra.mxu0 %v1402
          %1509 = vmatpush.bf16.msra.mxu0 %v1401
          %1510 = vmatmul.bf16.gmra.mxu0 %v1190
          %v1511 = vpop.f32.mrf.mxu0
          %v1512 = vadd.f32 %v1499, %v1511
          %v1513 = vpop.f32.mrf.mxu0
          %1514 = vdwg.mxu0
          %1515 = vmatpush.bf16.msra.mxu0 %v1416
          %1516 = vmatpush.bf16.msra.mxu0 %v1415
          %1517 = vmatpush.bf16.msra.mxu0 %v1414
          %1518 = vmatpush.bf16.msra.mxu0 %v1413
          %1519 = vmatpush.bf16.msra.mxu0 %v1412
          %1520 = vmatpush.bf16.msra.mxu0 %v1411
          %1521 = vmatpush.bf16.msra.mxu0 %v1410
          %1522 = vmatpush.bf16.msra.mxu0 %v1409
          %1523 = vmatmul.bf16.gmra.mxu0 %v1191
          %v1524 = vpop.f32.mrf.mxu0
          %v1525 = vadd.f32 %v1512, %v1524
          %v1526 = vpop.f32.mrf.mxu0
          %1527 = vdwg.mxu0
          %1528 = vmatpush.bf16.msra.mxu0 %v1424
          %1529 = vmatpush.bf16.msra.mxu0 %v1423
          %1530 = vmatpush.bf16.msra.mxu0 %v1422
          %1531 = vmatpush.bf16.msra.mxu0 %v1421
          %1532 = vmatpush.bf16.msra.mxu0 %v1420
          %1533 = vmatpush.bf16.msra.mxu0 %v1419
          %1534 = vmatpush.bf16.msra.mxu0 %v1418
          %1535 = vmatpush.bf16.msra.mxu0 %v1417
          %1536 = vmatmul.bf16.gmra.mxu0 %v1192
          %v1537 = vpop.f32.mrf.mxu0
          %v1538 = vadd.f32 %v1525, %v1537
          %v1539 = vpop.f32.mrf.mxu0
          %1540 = vdwg.mxu0
          %1541 = vmatpush.bf16.msra.mxu0 %v1432
          %1542 = vmatpush.bf16.msra.mxu0 %v1431
          %1543 = vmatpush.bf16.msra.mxu0 %v1430
          %1544 = vmatpush.bf16.msra.mxu0 %v1429
          %1545 = vmatpush.bf16.msra.mxu0 %v1428
          %1546 = vmatpush.bf16.msra.mxu0 %v1427
          %1547 = vmatpush.bf16.msra.mxu0 %v1426
          %1548 = vmatpush.bf16.msra.mxu0 %v1425
          %1549 = vmatmul.bf16.gmra.mxu0 %v1193
          %v1550 = vpop.f32.mrf.mxu0
          %v1551 = vadd.f32 %v1538, %v1550
          %v1552 = vpop.f32.mrf.mxu0
          %1553 = vdwg.mxu0
          %1554 = vmatpush.bf16.msra.mxu0 %v1440
          %1555 = vmatpush.bf16.msra.mxu0 %v1439
          %1556 = vmatpush.bf16.msra.mxu0 %v1438
          %1557 = vmatpush.bf16.msra.mxu0 %v1437
          %1558 = vmatpush.bf16.msra.mxu0 %v1436
          %1559 = vmatpush.bf16.msra.mxu0 %v1435
          %1560 = vmatpush.bf16.msra.mxu0 %v1434
          %1561 = vmatpush.bf16.msra.mxu0 %v1433
          %1562 = vmatmul.bf16.gmra.mxu0 %v1194
          %v1563 = vpop.f32.mrf.mxu0
          %v1564 = vadd.f32 %v1551, %v1563
          %v1565 = vpop.f32.mrf.mxu0
          %1566 = vdwg.mxu0
          %v1567 = vld [vmem:[#allocation6] sm:$0x1]
          %v1568 = vadd.f32 %v1567, %v1081
          %v1570 = vrot.slane %v1081, 1
          %v1572 = vadd.f32 %v1564, %v1570
          %v1574 = vrot.slane %v1572, 7
          %vm1576 = vcmask 1040384
          %v1577 = vsel %vm1576, %v1568, %v1574
          %vm1578 = vcmask 1044480
          %v1579 = vsel %vm1578, %v1577, 0.0
          %s1580 = scalar_lea.vmem [#allocation3], 12
          %v1581 = vld [vmem:[%s1580] sm:$0xff]
          %v1582 = vld [vmem:[%s1580 + $0x8] sm:$0xf]
          %1584 = vst [vmem:[#allocation1] ss:$4 sm:$0xff] %v1581
          %s1586 = scalar_lea.vmem [#allocation1], 32
          %1587 = vst [vmem:[%s1586] ss:$4 sm:$0xff] %v1582
          %v1588 = vld.sshfl [vmem:[#allocation1] sm:$0xff pattern:$0x73625140]
          %v1589 = vld.sshfl [vmem:[#allocation1 + $0x8] sm:$0xff pattern:$0x73625140]
          %v1590 = vld.sshfl [vmem:[#allocation1 + $0x10] sm:$0xff pattern:$0x73625140]
          %v1591 = vld.sshfl [vmem:[#allocation1 + $0x18] sm:$0xff pattern:$0x73625140]
          %v1592 = vld.sshfl [vmem:[#allocation1 + $0x20] sm:$0xff pattern:$0x73625140]
          %v1593 = vld.sshfl [vmem:[#allocation1 + $0x28] sm:$0xff pattern:$0x73625140]
          %1600 = vmatpush.bf16.msra.mxu0 %v1400
          %1601 = vmatpush.bf16.msra.mxu0 %v1399
          %1602 = vmatpush.bf16.msra.mxu0 %v1398
          %1603 = vmatpush.bf16.msra.mxu0 %v1397
          %1604 = vmatpush.bf16.msra.mxu0 %v1396
          %1605 = vmatpush.bf16.msra.mxu0 %v1395
          %1606 = vmatpush.bf16.msra.mxu0 %v1394
          %1607 = vmatpush.bf16.msra.mxu0 %v1393
          %1608 = vmatmul.bf16.gmra.mxu0 %v1588
          %v1609 = vpop.f32.mrf.mxu0
          %v1610 = vadd.f32 %v1182, %v1609
          %v1611 = vpop.f32.mrf.mxu0
          %1612 = vdwg.mxu0
          %1613 = vmatpush.bf16.msra.mxu0 %v1408
          %1614 = vmatpush.bf16.msra.mxu0 %v1407
          %1615 = vmatpush.bf16.msra.mxu0 %v1406
          %1616 = vmatpush.bf16.msra.mxu0 %v1405
          %1617 = vmatpush.bf16.msra.mxu0 %v1404
          %1618 = vmatpush.bf16.msra.mxu0 %v1403
          %1619 = vmatpush.bf16.msra.mxu0 %v1402
          %1620 = vmatpush.bf16.msra.mxu0 %v1401
          %1621 = vmatmul.bf16.gmra.mxu0 %v1589
          %v1622 = vpop.f32.mrf.mxu0
          %v1623 = vadd.f32 %v1610, %v1622
          %v1624 = vpop.f32.mrf.mxu0
          %1625 = vdwg.mxu0
          %1626 = vmatpush.bf16.msra.mxu0 %v1416
          %1627 = vmatpush.bf16.msra.mxu0 %v1415
          %1628 = vmatpush.bf16.msra.mxu0 %v1414
          %1629 = vmatpush.bf16.msra.mxu0 %v1413
          %1630 = vmatpush.bf16.msra.mxu0 %v1412
          %1631 = vmatpush.bf16.msra.mxu0 %v1411
          %1632 = vmatpush.bf16.msra.mxu0 %v1410
          %1633 = vmatpush.bf16.msra.mxu0 %v1409
          %1634 = vmatmul.bf16.gmra.mxu0 %v1590
          %v1635 = vpop.f32.mrf.mxu0
          %v1636 = vadd.f32 %v1623, %v1635
          %v1637 = vpop.f32.mrf.mxu0
          %1638 = vdwg.mxu0
          %1639 = vmatpush.bf16.msra.mxu0 %v1424
          %1640 = vmatpush.bf16.msra.mxu0 %v1423
          %1641 = vmatpush.bf16.msra.mxu0 %v1422
          %1642 = vmatpush.bf16.msra.mxu0 %v1421
          %1643 = vmatpush.bf16.msra.mxu0 %v1420
          %1644 = vmatpush.bf16.msra.mxu0 %v1419
          %1645 = vmatpush.bf16.msra.mxu0 %v1418
          %1646 = vmatpush.bf16.msra.mxu0 %v1417
          %1647 = vmatmul.bf16.gmra.mxu0 %v1591
          %v1648 = vpop.f32.mrf.mxu0
          %v1649 = vadd.f32 %v1636, %v1648
          %v1650 = vpop.f32.mrf.mxu0
          %1651 = vdwg.mxu0
          %1652 = vmatpush.bf16.msra.mxu0 %v1432
          %1653 = vmatpush.bf16.msra.mxu0 %v1431
          %1654 = vmatpush.bf16.msra.mxu0 %v1430
          %1655 = vmatpush.bf16.msra.mxu0 %v1429
          %1656 = vmatpush.bf16.msra.mxu0 %v1428
          %1657 = vmatpush.bf16.msra.mxu0 %v1427
          %1658 = vmatpush.bf16.msra.mxu0 %v1426
          %1659 = vmatpush.bf16.msra.mxu0 %v1425
          %1660 = vmatmul.bf16.gmra.mxu0 %v1592
          %v1661 = vpop.f32.mrf.mxu0
          %v1662 = vadd.f32 %v1649, %v1661
          %v1663 = vpop.f32.mrf.mxu0
          %1664 = vdwg.mxu0
          %1665 = vmatpush.bf16.msra.mxu0 %v1440
          %1666 = vmatpush.bf16.msra.mxu0 %v1439
          %1667 = vmatpush.bf16.msra.mxu0 %v1438
          %1668 = vmatpush.bf16.msra.mxu0 %v1437
          %1669 = vmatpush.bf16.msra.mxu0 %v1436
          %1670 = vmatpush.bf16.msra.mxu0 %v1435
          %1671 = vmatpush.bf16.msra.mxu0 %v1434
          %1672 = vmatpush.bf16.msra.mxu0 %v1433
          %1673 = vmatmul.bf16.gmra.mxu0 %v1593
          %v1674 = vpop.f32.mrf.mxu0
          %v1675 = vadd.f32 %v1662, %v1674
          %v1676 = vpop.f32.mrf.mxu0
          %1677 = vdwg.mxu0
          %v1678 = vadd.f32 %v1675, %v1570
          %v1680 = vrot.slane %v1678, 7
          %v1682 = vsel %vm1576, %v1568, %v1680
          %v1683 = vsel %vm1578, %v1682, 0.0
          %1684 = vst [vmem:[#allocation2] sm:$0xff] %v1579
          %1685 = vst [vmem:[#allocation2 + $0x8] sm:$0xff] %v1683
        $region160: #{tpu_custom_call.1} parent=99 // pred_fallthru
          _
        %v1686 = vld [vmem:[#allocation2] sm:$0xff]
        %v1687 = vld [vmem:[#allocation2 + $0x8] sm:$0xff]
        %v1688 = vld [vmem:[%s1065] sm:$0x1]
        %v1689 = vld [vmem:[%s1068] sm:$0x1]
        %1690 = vadd.xlane.f32.xlu0 %v1686
        %v1691 = vpop.xlane.xlu0 %1690
        %1692 = vadd.xlane.f32.xlu0 %v1687
        %v1693 = vpop.xlane.xlu0 %1692
        %v1694 = vrcp.pop 128.0
        %v1695 = vmul.f32 128.0, %v1694
        %v1696 = vsub.f32 1.0, %v1695
        %v1697 = vmul.f32 %v1694, %v1696
        %v1698 = vadd.f32 %v1694, %v1697
        %vm1699 = vweird.f32 %v1694
        %v1700 = vsel %vm1699, %v1694, %v1698
        %v1701 = vmul.f32 %v1691, %v1700
        %v1702 = vmul.f32 %v1693, %v1700
        %v1703 = vsub.f32 %v1686, %v1701
        %v1704 = vsub.f32 %v1687, %v1702
        %v1705 = vmul.f32 %v1703, %v1703
        %v1706 = vmul.f32 %v1704, %v1704
        %1707 = vadd.xlane.f32.xlu0 %v1705
        %v1708 = vpop.xlane.xlu0 %1707
        %1709 = vadd.xlane.f32.xlu0 %v1706
        %v1710 = vpop.xlane.xlu0 %1709
        %v1711 = vmul.f32 %v1708, %v1700
        %v1712 = vmul.f32 %v1710, %v1700
        %v1713 = vadd.f32 %v1711, 1e-06
        %v1714 = vadd.f32 %v1712, 1e-06
        %v1715 = vrsqrt.pop %v1713
        %v1716 = vmul.f32 %v1715, %v1713
        %v1717 = vmul.f32 %v1716, %v1715
        %v1718 = vmul.f32 0.5, %v1717
        %v1719 = vsub.f32 1.5, %v1718
        %v1720 = vmul.f32 %v1715, %v1719
        %vm1721 = vweird.f32 %v1713
        %vm1722 = vweird.f32 %v1715
        %vm1723 = vmor %vm1721, %vm1722
        %v1724 = vsel %vm1723, %v1715, %v1720
        %v1725 = vrsqrt.pop %v1714
        %v1726 = vmul.f32 %v1725, %v1714
        %v1727 = vmul.f32 %v1726, %v1725
        %v1728 = vmul.f32 0.5, %v1727
        %v1729 = vsub.f32 1.5, %v1728
        %v1730 = vmul.f32 %v1725, %v1729
        %vm1731 = vweird.f32 %v1714
        %vm1732 = vweird.f32 %v1725
        %vm1733 = vmor %vm1731, %vm1732
        %v1734 = vsel %vm1733, %v1725, %v1730
        %v1735 = vmul.f32 %v1703, %v1724
        %v1736 = vmul.f32 %v1704, %v1734
        %v1738 = vperm.slane %v1688, 0
        %v1740 = vmul.f32 %v1735, %v1738
        %v1741 = vmul.f32 %v1736, %v1738
        %v1743 = vperm.slane %v1689, 0
        %v1745 = vadd.f32 %v1740, %v1743
        %v1746 = vadd.f32 %v1741, %v1743
        %v1747 = vpack.c.bf16 %v1746, %v1745
        %v1748 = vld [vmem:[%s892] sm:$0xff]
        %v1749 = vld [vmem:[%s892 + $0x8] sm:$0xf]
        %v1750 = vld [vmem:[%s892 + $0xc] sm:$0xff]
        %v1751 = vld [vmem:[%s892 + $0x14] sm:$0xf]
        %v1752 = vld [vmem:[%s892 + $0x18] sm:$0xff]
        %v1753 = vld [vmem:[%s892 + $0x20] sm:$0xf]
        %v1754 = vld [vmem:[%s892 + $0x24] sm:$0xff]
        %v1755 = vld [vmem:[%s892 + $0x2c] sm:$0xf]
        %v1756 = vld [vmem:[%s892 + $0x30] sm:$0xff]
        %v1757 = vld [vmem:[%s892 + $0x38] sm:$0xf]
        %v1758 = vld [vmem:[%s892 + $0x3c] sm:$0xff]
        %v1759 = vld [vmem:[%s892 + $0x44] sm:$0xf]
        %v1760 = vld [vmem:[%s892 + $0x48] sm:$0xff]
        %v1761 = vld [vmem:[%s892 + $0x50] sm:$0xf]
        %v1762 = vld [vmem:[%s892 + $0x54] sm:$0xff]
        %v1763 = vld [vmem:[%s892 + $0x5c] sm:$0xf]
        %v1764 = vld [vmem:[%s892 + $0x60] sm:$0xff]
        %v1765 = vld [vmem:[%s892 + $0x68] sm:$0xf]
        %v1766 = vld [vmem:[%s892 + $0x6c] sm:$0xff]
        %v1767 = vld [vmem:[%s892 + $0x74] sm:$0xf]
        %v1768 = vld [vmem:[%s892 + $0x78] sm:$0xff]
        %v1769 = vld [vmem:[%s892 + $0x80] sm:$0xf]
        %v1770 = vld [vmem:[%s892 + $0x84] sm:$0xff]
        %v1771 = vld [vmem:[%s892 + $0x8c] sm:$0xf]
        %v1772 = vld [vmem:[%s892 + $0x90] sm:$0xff]
        %v1773 = vld [vmem:[%s892 + $0x98] sm:$0xf]
        %v1774 = vld [vmem:[%s892 + $0x9c] sm:$0xff]
        %v1775 = vld [vmem:[%s892 + $0xa4] sm:$0xf]
        %v1776 = vld [vmem:[%s892 + $0xa8] sm:$0xff]
        %v1777 = vld [vmem:[%s892 + $0xb0] sm:$0xf]
        %v1778 = vld [vmem:[%s892 + $0xb4] sm:$0xff]
        %v1779 = vld [vmem:[%s892 + $0xbc] sm:$0xf]
        %v1780 = vld [vmem:[%s902] sm:$0x7]
        %v1782 = vperm.slane %v1780, 0
        %v1783 = vperm.slane %v1780, 1
        %v1784 = vperm.slane %v1780, 2
        %v1820 = vunpack.c.l.b16 %v1748
        %v1821 = vunpack.c.h.b16 %v1748
        %v1822 = vunpack.c.l.b16 %v1749
        %v1823 = vunpack.c.l.b16 %v1750
        %v1824 = vunpack.c.h.b16 %v1750
        %v1825 = vunpack.c.l.b16 %v1751
        %v1826 = vunpack.c.l.b16 %v1752
        %v1827 = vunpack.c.h.b16 %v1752
        %v1828 = vunpack.c.l.b16 %v1753
        %v1829 = vunpack.c.l.b16 %v1754
        %v1830 = vunpack.c.h.b16 %v1754
        %v1831 = vunpack.c.l.b16 %v1755
        %v1832 = vunpack.c.l.b16 %v1756
        %v1833 = vunpack.c.h.b16 %v1756
        %v1834 = vunpack.c.l.b16 %v1757
        %v1835 = vunpack.c.l.b16 %v1758
        %v1836 = vunpack.c.h.b16 %v1758
        %v1837 = vunpack.c.l.b16 %v1759
        %v1838 = vunpack.c.l.b16 %v1760
        %v1839 = vunpack.c.h.b16 %v1760
        %v1840 = vunpack.c.l.b16 %v1761
        %v1841 = vunpack.c.l.b16 %v1762
        %v1842 = vunpack.c.h.b16 %v1762
        %v1843 = vunpack.c.l.b16 %v1763
        %v1844 = vunpack.c.l.b16 %v1764
        %v1845 = vunpack.c.h.b16 %v1764
        %v1846 = vunpack.c.l.b16 %v1765
        %v1847 = vunpack.c.l.b16 %v1766
        %v1848 = vunpack.c.h.b16 %v1766
        %v1849 = vunpack.c.l.b16 %v1767
        %v1850 = vunpack.c.l.b16 %v1768
        %v1851 = vunpack.c.h.b16 %v1768
        %v1852 = vunpack.c.l.b16 %v1769
        %v1853 = vunpack.c.l.b16 %v1770
        %v1854 = vunpack.c.h.b16 %v1770
        %v1855 = vunpack.c.l.b16 %v1771
        %v1856 = vunpack.c.l.b16 %v1772
        %v1857 = vunpack.c.h.b16 %v1772
        %v1858 = vunpack.c.l.b16 %v1773
        %v1859 = vunpack.c.l.b16 %v1774
        %v1860 = vunpack.c.h.b16 %v1774
        %v1861 = vunpack.c.l.b16 %v1775
        %v1862 = vunpack.c.l.b16 %v1776
        %v1863 = vunpack.c.h.b16 %v1776
        %v1864 = vunpack.c.l.b16 %v1777
        %v1865 = vunpack.c.l.b16 %v1778
        %v1866 = vunpack.c.h.b16 %v1778
        %v1867 = vunpack.c.l.b16 %v1779
        %v1868 = vpack.c.b16 %v1823, %v1820
        %v1869 = vpack.c.b16 %v1824, %v1821
        %v1870 = vpack.c.b16 %v1825, %v1822
        %v1871 = vpack.c.b16 %v1829, %v1826
        %v1872 = vpack.c.b16 %v1830, %v1827
        %v1873 = vpack.c.b16 %v1831, %v1828
        %v1874 = vpack.c.b16 %v1835, %v1832
        %v1875 = vpack.c.b16 %v1836, %v1833
        %v1876 = vpack.c.b16 %v1837, %v1834
        %v1877 = vpack.c.b16 %v1841, %v1838
        %v1878 = vpack.c.b16 %v1842, %v1839
        %v1879 = vpack.c.b16 %v1843, %v1840
        %v1880 = vpack.c.b16 %v1847, %v1844
        %v1881 = vpack.c.b16 %v1848, %v1845
        %v1882 = vpack.c.b16 %v1849, %v1846
        %v1883 = vpack.c.b16 %v1853, %v1850
        %v1884 = vpack.c.b16 %v1854, %v1851
        %v1885 = vpack.c.b16 %v1855, %v1852
        %v1886 = vpack.c.b16 %v1859, %v1856
        %v1887 = vpack.c.b16 %v1860, %v1857
        %v1888 = vpack.c.b16 %v1861, %v1858
        %v1889 = vpack.c.b16 %v1865, %v1862
        %v1890 = vpack.c.b16 %v1866, %v1863
        %v1891 = vpack.c.b16 %v1867, %v1864
        %1916 = vmatpush.bf16.msra.mxu0 %v1889
        %1917 = vmatpush.bf16.msra.mxu0 %v1886
        %1918 = vmatpush.bf16.msra.mxu0 %v1883
        %1919 = vmatpush.bf16.msra.mxu0 %v1880
        %1920 = vmatpush.bf16.msra.mxu0 %v1877
        %1921 = vmatpush.bf16.msra.mxu0 %v1874
        %1922 = vmatpush.bf16.msra.mxu0 %v1871
        %1923 = vmatpush.bf16.msra.mxu0 %v1868
        %1924 = vmatmul.bf16.gmra.mxu0 %v1747
        %v1925 = vpop.f32.mrf.mxu0
        %v1926 = vadd.f32 %v1782, %v1925
        %v1927 = vpop.f32.mrf.mxu0
        %v1928 = vadd.f32 %v1782, %v1927
        %1929 = vdwg.mxu0
        %1930 = vmatpush.bf16.msra.mxu0 %v1890
        %1931 = vmatpush.bf16.msra.mxu0 %v1887
        %1932 = vmatpush.bf16.msra.mxu0 %v1884
        %1933 = vmatpush.bf16.msra.mxu0 %v1881
        %1934 = vmatpush.bf16.msra.mxu0 %v1878
        %1935 = vmatpush.bf16.msra.mxu0 %v1875
        %1936 = vmatpush.bf16.msra.mxu0 %v1872
        %1937 = vmatpush.bf16.msra.mxu0 %v1869
        %1938 = vmatmul.bf16.gmra.mxu0 %v1747
        %v1939 = vpop.f32.mrf.mxu0
        %v1940 = vadd.f32 %v1783, %v1939
        %v1941 = vpop.f32.mrf.mxu0
        %v1942 = vadd.f32 %v1783, %v1941
        %1943 = vdwg.mxu0
        %1944 = vmatpush.bf16.msra.mxu0 %v1891
        %1945 = vmatpush.bf16.msra.mxu0 %v1888
        %1946 = vmatpush.bf16.msra.mxu0 %v1885
        %1947 = vmatpush.bf16.msra.mxu0 %v1882
        %1948 = vmatpush.bf16.msra.mxu0 %v1879
        %1949 = vmatpush.bf16.msra.mxu0 %v1876
        %1950 = vmatpush.bf16.msra.mxu0 %v1873
        %1951 = vmatpush.bf16.msra.mxu0 %v1870
        %1952 = vmatmul.bf16.gmra.mxu0 %v1747
        %v1953 = vpop.f32.mrf.mxu0
        %v1954 = vadd.f32 %v1784, %v1953
        %v1955 = vpop.f32.mrf.mxu0
        %v1956 = vadd.f32 %v1784, %v1955
        %1957 = vdwg.mxu0
        %v1958 = vlaneseq
        %v1959 = vand.u32 %v1958, 127
        %vm1960 = vcmp.lt.s32.totalorder %v1959, 5
        %v1961 = vpack.c.bf16 %v1926, %v1926
        %v1962 = vpack.c.bf16 %v1940, %v1940
        %v1963 = vpack.c.bf16 %v1954, %v1954
        %vm1964 = vcmask 261120
        %v1966 = vsel %vm1964, %v1961, 0
        %v1969 = vsel %vm1964, %v1962, 0
        %1971 = vmatpush.bf16.xpose.msra.mxu0 0
        %1972 = vmatpush.bf16.xpose.msra.mxu0 0
        %1973 = vmatpush.bf16.xpose.msra.mxu0 0
        %1974 = vmatpush.bf16.xpose.msra.mxu0 0
        %1975 = vmatpush.bf16.xpose.msra.mxu0 0
        %1976 = vmatpush.bf16.xpose.msra.mxu0 0
        %1977 = vmatpush.bf16.xpose.msra.mxu0 0
        %1978 = vmatpush.bf16.xpose.msra.mxu0 %v1969
        %1979 = vmatmul.bf16.gmra.mxu0 %v1966
        %v1980 = vpop.f32.mrf.mxu0
        %v1981 = vadd.f32 0.0, %v1980
        %v1982 = vpop.f32.mrf.mxu0
        %1983 = vdwg.mxu0
        %v1984 = vmul.f32 %v1981, 0.17677669
        %v1985 = vsel %vm1960, %v1984, -1e+30
        %vm1986 = vcmask 64512
        %v1987 = vsel %vm1986, %v1985, -inf
        %1988 = vmax.xlane.f32.xlu0 %v1987
        %v1989 = vpop.xlane.xlu0 %1988
        %v1990 = vsub.f32 %v1985, %v1989
        %v1991 = vmul.f32 %v1990, 1.442695
        %v1992 = vpow.pop %v1991
        %v1993 = vsel %vm1986, %v1992, 0.0
        %1994 = vadd.xlane.f32.xlu0 %v1993
        %v1995 = vpop.xlane.xlu0 %1994
        %v1996 = vrcp.pop %v1995
        %v1997 = vmul.f32 %v1992, %v1996
        %v1998 = vpack.c.bf16 %v1997, %v1997
        %v2000 = vsel %vm1986, %v1998, 0
        %vm2002 = vcmask 1043456
        %v2004 = vsel %vm2002, %v1963, 0
        %2006 = vmatpush.bf16.msra.mxu0 0
        %2007 = vmatpush.bf16.msra.mxu0 0
        %2008 = vmatpush.bf16.msra.mxu0 0
        %2009 = vmatpush.bf16.msra.mxu0 0
        %2010 = vmatpush.bf16.msra.mxu0 0
        %2011 = vmatpush.bf16.msra.mxu0 0
        %2012 = vmatpush.bf16.msra.mxu0 0
        %2013 = vmatpush.bf16.msra.mxu0 %v2004
        %2014 = vmatmul.bf16.gmra.mxu0 %v2000
        %v2015 = vpop.f32.mrf.mxu0
        %v2016 = vadd.f32 0.0, %v2015
        %v2017 = vpop.f32.mrf.mxu0
        %2018 = vdwg.mxu0
        %2020 = vrot.lane.b32.xlu0 %v1961, 96
        %v2021 = vpop.permute.xlu0 %2020
        %2023 = vrot.lane.b32.xlu0 %v1962, 96
        %v2024 = vpop.permute.xlu0 %2023
        %v2026 = vsel %vm1964, %v2021, 0
        %v2029 = vsel %vm1964, %v2024, 0
        %2031 = vmatpush.bf16.xpose.msra.mxu0 0
        %2032 = vmatpush.bf16.xpose.msra.mxu0 0
        %2033 = vmatpush.bf16.xpose.msra.mxu0 0
        %2034 = vmatpush.bf16.xpose.msra.mxu0 0
        %2035 = vmatpush.bf16.xpose.msra.mxu0 0
        %2036 = vmatpush.bf16.xpose.msra.mxu0 0
        %2037 = vmatpush.bf16.xpose.msra.mxu0 0
        %2038 = vmatpush.bf16.xpose.msra.mxu0 %v2029
        %2039 = vmatmul.bf16.gmra.mxu0 %v2026
        %v2040 = vpop.f32.mrf.mxu0
        %v2041 = vadd.f32 0.0, %v2040
        %v2042 = vpop.f32.mrf.mxu0
        %2043 = vdwg.mxu0
        %v2044 = vmul.f32 %v2041, 0.17677669
        %v2045 = vsel %vm1960, %v2044, -1e+30
        %v2046 = vsel %vm1986, %v2045, -inf
        %2047 = vmax.xlane.f32.xlu0 %v2046
        %v2048 = vpop.xlane.xlu0 %2047
        %v2049 = vsub.f32 %v2045, %v2048
        %v2050 = vmul.f32 %v2049, 1.442695
        %v2051 = vpow.pop %v2050
        %v2052 = vsel %vm1986, %v2051, 0.0
        %2053 = vadd.xlane.f32.xlu0 %v2052
        %v2054 = vpop.xlane.xlu0 %2053
        %v2055 = vrcp.pop %v2054
        %v2056 = vmul.f32 %v2051, %v2055
        %v2057 = vpack.c.bf16 %v2056, %v2056
        %2059 = vrot.lane.b32.xlu0 %v1963, 96
        %v2060 = vpop.permute.xlu0 %2059
        %v2062 = vsel %vm1986, %v2057, 0
        %v2065 = vsel %vm2002, %v2060, 0
        %2067 = vmatpush.bf16.msra.mxu0 0
        %2068 = vmatpush.bf16.msra.mxu0 0
        %2069 = vmatpush.bf16.msra.mxu0 0
        %2070 = vmatpush.bf16.msra.mxu0 0
        %2071 = vmatpush.bf16.msra.mxu0 0
        %2072 = vmatpush.bf16.msra.mxu0 0
        %2073 = vmatpush.bf16.msra.mxu0 0
        %2074 = vmatpush.bf16.msra.mxu0 %v2065
        %2075 = vmatmul.bf16.gmra.mxu0 %v2062
        %v2076 = vpop.f32.mrf.mxu0
        %v2077 = vadd.f32 0.0, %v2076
        %v2078 = vpop.f32.mrf.mxu0
        %2079 = vdwg.mxu0
        %2080 = vrot.lane.b32.xlu0 %v1961, 64
        %v2081 = vpop.permute.xlu0 %2080
        %2082 = vrot.lane.b32.xlu0 %v1962, 64
        %v2083 = vpop.permute.xlu0 %2082
        %v2085 = vsel %vm1964, %v2081, 0
        %v2088 = vsel %vm1964, %v2083, 0
        %2090 = vmatpush.bf16.xpose.msra.mxu0 0
        %2091 = vmatpush.bf16.xpose.msra.mxu0 0
        %2092 = vmatpush.bf16.xpose.msra.mxu0 0
        %2093 = vmatpush.bf16.xpose.msra.mxu0 0
        %2094 = vmatpush.bf16.xpose.msra.mxu0 0
        %2095 = vmatpush.bf16.xpose.msra.mxu0 0
        %2096 = vmatpush.bf16.xpose.msra.mxu0 0
        %2097 = vmatpush.bf16.xpose.msra.mxu0 %v2088
        %2098 = vmatmul.bf16.gmra.mxu0 %v2085
        %v2099 = vpop.f32.mrf.mxu0
        %v2100 = vadd.f32 0.0, %v2099
        %v2101 = vpop.f32.mrf.mxu0
        %2102 = vdwg.mxu0
        %v2103 = vmul.f32 %v2100, 0.17677669
        %v2104 = vsel %vm1960, %v2103, -1e+30
        %v2105 = vsel %vm1986, %v2104, -inf
        %2106 = vmax.xlane.f32.xlu0 %v2105
        %v2107 = vpop.xlane.xlu0 %2106
        %v2108 = vsub.f32 %v2104, %v2107
        %v2109 = vmul.f32 %v2108, 1.442695
        %v2110 = vpow.pop %v2109
        %v2111 = vsel %vm1986, %v2110, 0.0
        %2112 = vadd.xlane.f32.xlu0 %v2111
        %v2113 = vpop.xlane.xlu0 %2112
        %v2114 = vrcp.pop %v2113
        %v2115 = vmul.f32 %v2110, %v2114
        %v2116 = vpack.c.bf16 %v2115, %v2115
        %2117 = vrot.lane.b32.xlu0 %v1963, 64
        %v2118 = vpop.permute.xlu0 %2117
        %v2120 = vsel %vm1986, %v2116, 0
        %v2123 = vsel %vm2002, %v2118, 0
        %2125 = vmatpush.bf16.msra.mxu0 0
        %2126 = vmatpush.bf16.msra.mxu0 0
        %2127 = vmatpush.bf16.msra.mxu0 0
        %2128 = vmatpush.bf16.msra.mxu0 0
        %2129 = vmatpush.bf16.msra.mxu0 0
        %2130 = vmatpush.bf16.msra.mxu0 0
        %2131 = vmatpush.bf16.msra.mxu0 0
        %2132 = vmatpush.bf16.msra.mxu0 %v2123
        %2133 = vmatmul.bf16.gmra.mxu0 %v2120
        %v2134 = vpop.f32.mrf.mxu0
        %v2135 = vadd.f32 0.0, %v2134
        %v2136 = vpop.f32.mrf.mxu0
        %2137 = vdwg.mxu0
        %2138 = vrot.lane.b32.xlu0 %v1961, 32
        %v2139 = vpop.permute.xlu0 %2138
        %2140 = vrot.lane.b32.xlu0 %v1962, 32
        %v2141 = vpop.permute.xlu0 %2140
        %v2143 = vsel %vm1964, %v2139, 0
        %v2146 = vsel %vm1964, %v2141, 0
        %2148 = vmatpush.bf16.xpose.msra.mxu0 0
        %2149 = vmatpush.bf16.xpose.msra.mxu0 0
        %2150 = vmatpush.bf16.xpose.msra.mxu0 0
        %2151 = vmatpush.bf16.xpose.msra.mxu0 0
        %2152 = vmatpush.bf16.xpose.msra.mxu0 0
        %2153 = vmatpush.bf16.xpose.msra.mxu0 0
        %2154 = vmatpush.bf16.xpose.msra.mxu0 0
        %2155 = vmatpush.bf16.xpose.msra.mxu0 %v2146
        %2156 = vmatmul.bf16.gmra.mxu0 %v2143
        %v2157 = vpop.f32.mrf.mxu0
        %v2158 = vadd.f32 0.0, %v2157
        %v2159 = vpop.f32.mrf.mxu0
        %2160 = vdwg.mxu0
        %v2161 = vmul.f32 %v2158, 0.17677669
        %v2162 = vsel %vm1960, %v2161, -1e+30
        %v2163 = vsel %vm1986, %v2162, -inf
        %2164 = vmax.xlane.f32.xlu0 %v2163
        %v2165 = vpop.xlane.xlu0 %2164
        %v2166 = vsub.f32 %v2162, %v2165
        %v2167 = vmul.f32 %v2166, 1.442695
        %v2168 = vpow.pop %v2167
        %v2169 = vsel %vm1986, %v2168, 0.0
        %2170 = vadd.xlane.f32.xlu0 %v2169
        %v2171 = vpop.xlane.xlu0 %2170
        %v2172 = vrcp.pop %v2171
        %v2173 = vmul.f32 %v2168, %v2172
        %v2174 = vpack.c.bf16 %v2173, %v2173
        %2175 = vrot.lane.b32.xlu0 %v1963, 32
        %v2176 = vpop.permute.xlu0 %2175
        %v2178 = vsel %vm1986, %v2174, 0
        %v2181 = vsel %vm2002, %v2176, 0
        %2183 = vmatpush.bf16.msra.mxu0 0
        %2184 = vmatpush.bf16.msra.mxu0 0
        %2185 = vmatpush.bf16.msra.mxu0 0
        %2186 = vmatpush.bf16.msra.mxu0 0
        %2187 = vmatpush.bf16.msra.mxu0 0
        %2188 = vmatpush.bf16.msra.mxu0 0
        %2189 = vmatpush.bf16.msra.mxu0 0
        %2190 = vmatpush.bf16.msra.mxu0 %v2181
        %2191 = vmatmul.bf16.gmra.mxu0 %v2178
        %v2192 = vpop.f32.mrf.mxu0
        %v2193 = vadd.f32 0.0, %v2192
        %v2194 = vpop.f32.mrf.mxu0
        %2195 = vdwg.mxu0
        %2197 = vrot.lane.b32.xlu0 %v2077, 32
        %v2198 = vpop.permute.xlu0 %2197
        %2201 = vrot.lane.b32.xlu0 %v2135, 64
        %v2202 = vpop.permute.xlu0 %2201
        %2205 = vrot.lane.b32.xlu0 %v2193, 96
        %v2206 = vpop.permute.xlu0 %2205
        %v2208 = vsel %vm1964, %v2016, %v2198
        %vm2209 = vcmask 523264
        %v2210 = vsel %vm2209, %v2208, %v2202
        %vm2211 = vcmask 785408
        %v2212 = vsel %vm2211, %v2210, %v2206
        %v2213 = vpack.c.bf16 %v1928, %v1928
        %v2214 = vpack.c.bf16 %v1942, %v1942
        %v2215 = vpack.c.bf16 %v1956, %v1956
        %v2217 = vsel %vm1964, %v2213, 0
        %v2220 = vsel %vm1964, %v2214, 0
        %2222 = vmatpush.bf16.xpose.msra.mxu0 0
        %2223 = vmatpush.bf16.xpose.msra.mxu0 0
        %2224 = vmatpush.bf16.xpose.msra.mxu0 0
        %2225 = vmatpush.bf16.xpose.msra.mxu0 0
        %2226 = vmatpush.bf16.xpose.msra.mxu0 0
        %2227 = vmatpush.bf16.xpose.msra.mxu0 0
        %2228 = vmatpush.bf16.xpose.msra.mxu0 0
        %2229 = vmatpush.bf16.xpose.msra.mxu0 %v2220
        %2230 = vmatmul.bf16.gmra.mxu0 %v2217
        %v2231 = vpop.f32.mrf.mxu0
        %v2232 = vadd.f32 0.0, %v2231
        %v2233 = vpop.f32.mrf.mxu0
        %2234 = vdwg.mxu0
        %v2235 = vmul.f32 %v2232, 0.17677669
        %v2236 = vsel %vm1960, %v2235, -1e+30
        %v2237 = vsel %vm1986, %v2236, -inf
        %2238 = vmax.xlane.f32.xlu0 %v2237
        %v2239 = vpop.xlane.xlu0 %2238
        %v2240 = vsub.f32 %v2236, %v2239
        %v2241 = vmul.f32 %v2240, 1.442695
        %v2242 = vpow.pop %v2241
        %v2243 = vsel %vm1986, %v2242, 0.0
        %2244 = vadd.xlane.f32.xlu0 %v2243
        %v2245 = vpop.xlane.xlu0 %2244
        %v2246 = vrcp.pop %v2245
        %v2247 = vmul.f32 %v2242, %v2246
        %v2248 = vpack.c.bf16 %v2247, %v2247
        %v2250 = vsel %vm1986, %v2248, 0
        %v2253 = vsel %vm2002, %v2215, 0
        %2255 = vmatpush.bf16.msra.mxu0 0
        %2256 = vmatpush.bf16.msra.mxu0 0
        %2257 = vmatpush.bf16.msra.mxu0 0
        %2258 = vmatpush.bf16.msra.mxu0 0
        %2259 = vmatpush.bf16.msra.mxu0 0
        %2260 = vmatpush.bf16.msra.mxu0 0
        %2261 = vmatpush.bf16.msra.mxu0 0
        %2262 = vmatpush.bf16.msra.mxu0 %v2253
        %2263 = vmatmul.bf16.gmra.mxu0 %v2250
        %v2264 = vpop.f32.mrf.mxu0
        %v2265 = vadd.f32 0.0, %v2264
        %v2266 = vpop.f32.mrf.mxu0
        %2267 = vdwg.mxu0
        %2269 = vrot.lane.b32.xlu0 %v2213, 96
        %v2270 = vpop.permute.xlu0 %2269
        %2272 = vrot.lane.b32.xlu0 %v2214, 96
        %v2273 = vpop.permute.xlu0 %2272
        %v2275 = vsel %vm1964, %v2270, 0
        %v2278 = vsel %vm1964, %v2273, 0
        %2280 = vmatpush.bf16.xpose.msra.mxu0 0
        %2281 = vmatpush.bf16.xpose.msra.mxu0 0
        %2282 = vmatpush.bf16.xpose.msra.mxu0 0
        %2283 = vmatpush.bf16.xpose.msra.mxu0 0
        %2284 = vmatpush.bf16.xpose.msra.mxu0 0
        %2285 = vmatpush.bf16.xpose.msra.mxu0 0
        %2286 = vmatpush.bf16.xpose.msra.mxu0 0
        %2287 = vmatpush.bf16.xpose.msra.mxu0 %v2278
        %2288 = vmatmul.bf16.gmra.mxu0 %v2275
        %v2289 = vpop.f32.mrf.mxu0
        %v2290 = vadd.f32 0.0, %v2289
        %v2291 = vpop.f32.mrf.mxu0
        %2292 = vdwg.mxu0
        %v2293 = vmul.f32 %v2290, 0.17677669
        %v2294 = vsel %vm1960, %v2293, -1e+30
        %v2295 = vsel %vm1986, %v2294, -inf
        %2296 = vmax.xlane.f32.xlu0 %v2295
        %v2297 = vpop.xlane.xlu0 %2296
        %v2298 = vsub.f32 %v2294, %v2297
        %v2299 = vmul.f32 %v2298, 1.442695
        %v2300 = vpow.pop %v2299
        %v2301 = vsel %vm1986, %v2300, 0.0
        %2302 = vadd.xlane.f32.xlu0 %v2301
        %v2303 = vpop.xlane.xlu0 %2302
        %v2304 = vrcp.pop %v2303
        %v2305 = vmul.f32 %v2300, %v2304
        %v2306 = vpack.c.bf16 %v2305, %v2305
        %2308 = vrot.lane.b32.xlu0 %v2215, 96
        %v2309 = vpop.permute.xlu0 %2308
        %v2311 = vsel %vm1986, %v2306, 0
        %v2314 = vsel %vm2002, %v2309, 0
        %2316 = vmatpush.bf16.msra.mxu0 0
        %2317 = vmatpush.bf16.msra.mxu0 0
        %2318 = vmatpush.bf16.msra.mxu0 0
        %2319 = vmatpush.bf16.msra.mxu0 0
        %2320 = vmatpush.bf16.msra.mxu0 0
        %2321 = vmatpush.bf16.msra.mxu0 0
        %2322 = vmatpush.bf16.msra.mxu0 0
        %2323 = vmatpush.bf16.msra.mxu0 %v2314
        %2324 = vmatmul.bf16.gmra.mxu0 %v2311
        %v2325 = vpop.f32.mrf.mxu0
        %v2326 = vadd.f32 0.0, %v2325
        %v2327 = vpop.f32.mrf.mxu0
        %2328 = vdwg.mxu0
        %2329 = vrot.lane.b32.xlu0 %v2213, 64
        %v2330 = vpop.permute.xlu0 %2329
        %2331 = vrot.lane.b32.xlu0 %v2214, 64
        %v2332 = vpop.permute.xlu0 %2331
        %v2334 = vsel %vm1964, %v2330, 0
        %v2337 = vsel %vm1964, %v2332, 0
        %2339 = vmatpush.bf16.xpose.msra.mxu0 0
        %2340 = vmatpush.bf16.xpose.msra.mxu0 0
        %2341 = vmatpush.bf16.xpose.msra.mxu0 0
        %2342 = vmatpush.bf16.xpose.msra.mxu0 0
        %2343 = vmatpush.bf16.xpose.msra.mxu0 0
        %2344 = vmatpush.bf16.xpose.msra.mxu0 0
        %2345 = vmatpush.bf16.xpose.msra.mxu0 0
        %2346 = vmatpush.bf16.xpose.msra.mxu0 %v2337
        %2347 = vmatmul.bf16.gmra.mxu0 %v2334
        %v2348 = vpop.f32.mrf.mxu0
        %v2349 = vadd.f32 0.0, %v2348
        %v2350 = vpop.f32.mrf.mxu0
        %2351 = vdwg.mxu0
        %v2352 = vmul.f32 %v2349, 0.17677669
        %v2353 = vsel %vm1960, %v2352, -1e+30
        %v2354 = vsel %vm1986, %v2353, -inf
        %2355 = vmax.xlane.f32.xlu0 %v2354
        %v2356 = vpop.xlane.xlu0 %2355
        %v2357 = vsub.f32 %v2353, %v2356
        %v2358 = vmul.f32 %v2357, 1.442695
        %v2359 = vpow.pop %v2358
        %v2360 = vsel %vm1986, %v2359, 0.0
        %2361 = vadd.xlane.f32.xlu0 %v2360
        %v2362 = vpop.xlane.xlu0 %2361
        %v2363 = vrcp.pop %v2362
        %v2364 = vmul.f32 %v2359, %v2363
        %v2365 = vpack.c.bf16 %v2364, %v2364
        %2366 = vrot.lane.b32.xlu0 %v2215, 64
        %v2367 = vpop.permute.xlu0 %2366
        %v2369 = vsel %vm1986, %v2365, 0
        %v2372 = vsel %vm2002, %v2367, 0
        %2374 = vmatpush.bf16.msra.mxu0 0
        %2375 = vmatpush.bf16.msra.mxu0 0
        %2376 = vmatpush.bf16.msra.mxu0 0
        %2377 = vmatpush.bf16.msra.mxu0 0
        %2378 = vmatpush.bf16.msra.mxu0 0
        %2379 = vmatpush.bf16.msra.mxu0 0
        %2380 = vmatpush.bf16.msra.mxu0 0
        %2381 = vmatpush.bf16.msra.mxu0 %v2372
        %2382 = vmatmul.bf16.gmra.mxu0 %v2369
        %v2383 = vpop.f32.mrf.mxu0
        %v2384 = vadd.f32 0.0, %v2383
        %v2385 = vpop.f32.mrf.mxu0
        %2386 = vdwg.mxu0
        %2387 = vrot.lane.b32.xlu0 %v2213, 32
        %v2388 = vpop.permute.xlu0 %2387
        %2389 = vrot.lane.b32.xlu0 %v2214, 32
        %v2390 = vpop.permute.xlu0 %2389
        %v2392 = vsel %vm1964, %v2388, 0
        %v2395 = vsel %vm1964, %v2390, 0
        %2397 = vmatpush.bf16.xpose.msra.mxu0 0
        %2398 = vmatpush.bf16.xpose.msra.mxu0 0
        %2399 = vmatpush.bf16.xpose.msra.mxu0 0
        %2400 = vmatpush.bf16.xpose.msra.mxu0 0
        %2401 = vmatpush.bf16.xpose.msra.mxu0 0
        %2402 = vmatpush.bf16.xpose.msra.mxu0 0
        %2403 = vmatpush.bf16.xpose.msra.mxu0 0
        %2404 = vmatpush.bf16.xpose.msra.mxu0 %v2395
        %2405 = vmatmul.bf16.gmra.mxu0 %v2392
        %v2406 = vpop.f32.mrf.mxu0
        %v2407 = vadd.f32 0.0, %v2406
        %v2408 = vpop.f32.mrf.mxu0
        %2409 = vdwg.mxu0
        %v2410 = vmul.f32 %v2407, 0.17677669
        %v2411 = vsel %vm1960, %v2410, -1e+30
        %v2412 = vsel %vm1986, %v2411, -inf
        %2413 = vmax.xlane.f32.xlu0 %v2412
        %v2414 = vpop.xlane.xlu0 %2413
        %v2415 = vsub.f32 %v2411, %v2414
        %v2416 = vmul.f32 %v2415, 1.442695
        %v2417 = vpow.pop %v2416
        %v2418 = vsel %vm1986, %v2417, 0.0
        %2419 = vadd.xlane.f32.xlu0 %v2418
        %v2420 = vpop.xlane.xlu0 %2419
        %v2421 = vrcp.pop %v2420
        %v2422 = vmul.f32 %v2417, %v2421
        %v2423 = vpack.c.bf16 %v2422, %v2422
        %2424 = vrot.lane.b32.xlu0 %v2215, 32
        %v2425 = vpop.permute.xlu0 %2424
        %v2427 = vsel %vm1986, %v2423, 0
        %v2430 = vsel %vm2002, %v2425, 0
        %2432 = vmatpush.bf16.msra.mxu0 0
        %2433 = vmatpush.bf16.msra.mxu0 0
        %2434 = vmatpush.bf16.msra.mxu0 0
        %2435 = vmatpush.bf16.msra.mxu0 0
        %2436 = vmatpush.bf16.msra.mxu0 0
        %2437 = vmatpush.bf16.msra.mxu0 0
        %2438 = vmatpush.bf16.msra.mxu0 0
        %2439 = vmatpush.bf16.msra.mxu0 %v2430
        %2440 = vmatmul.bf16.gmra.mxu0 %v2427
        %v2441 = vpop.f32.mrf.mxu0
        %v2442 = vadd.f32 0.0, %v2441
        %v2443 = vpop.f32.mrf.mxu0
        %2444 = vdwg.mxu0
        %2446 = vrot.lane.b32.xlu0 %v2326, 32
        %v2447 = vpop.permute.xlu0 %2446
        %2450 = vrot.lane.b32.xlu0 %v2384, 64
        %v2451 = vpop.permute.xlu0 %2450
        %2454 = vrot.lane.b32.xlu0 %v2442, 96
        %v2455 = vpop.permute.xlu0 %2454
        %v2457 = vsel %vm1964, %v2265, %v2447
        %v2458 = vsel %vm2209, %v2457, %v2451
        %v2459 = vsel %vm2211, %v2458, %v2455
        %v2460 = vpack.c.bf16 %v2459, %v2212
        %v2461 = vld [vmem:[%s912] sm:$0xf]
        %v2462 = vld [vmem:[%s912 + $0x4] sm:$0xf]
        %v2463 = vld [vmem:[%s912 + $0x8] sm:$0xf]
        %v2464 = vld [vmem:[%s912 + $0xc] sm:$0xf]
        %v2465 = vld [vmem:[%s912 + $0x10] sm:$0xf]
        %v2466 = vld [vmem:[%s912 + $0x14] sm:$0xf]
        %v2467 = vld [vmem:[%s912 + $0x18] sm:$0xf]
        %v2468 = vld [vmem:[%s912 + $0x1c] sm:$0xf]
        %v2469 = vld [vmem:[%s912 + $0x20] sm:$0xf]
        %v2470 = vld [vmem:[%s912 + $0x24] sm:$0xf]
        %v2471 = vld [vmem:[%s912 + $0x28] sm:$0xf]
        %v2472 = vld [vmem:[%s912 + $0x2c] sm:$0xf]
        %v2473 = vld [vmem:[%s912 + $0x30] sm:$0xf]
        %v2474 = vld [vmem:[%s912 + $0x34] sm:$0xf]
        %v2475 = vld [vmem:[%s912 + $0x38] sm:$0xf]
        %v2476 = vld [vmem:[%s912 + $0x3c] sm:$0xf]
        %v2493 = vunpack.c.l.b16 %v2461
        %v2494 = vunpack.c.l.b16 %v2462
        %v2495 = vunpack.c.l.b16 %v2463
        %v2496 = vunpack.c.l.b16 %v2464
        %v2497 = vunpack.c.l.b16 %v2465
        %v2498 = vunpack.c.l.b16 %v2466
        %v2499 = vunpack.c.l.b16 %v2467
        %v2500 = vunpack.c.l.b16 %v2468
        %v2501 = vunpack.c.l.b16 %v2469
        %v2502 = vunpack.c.l.b16 %v2470
        %v2503 = vunpack.c.l.b16 %v2471
        %v2504 = vunpack.c.l.b16 %v2472
        %v2505 = vunpack.c.l.b16 %v2473
        %v2506 = vunpack.c.l.b16 %v2474
        %v2507 = vunpack.c.l.b16 %v2475
        %v2508 = vunpack.c.l.b16 %v2476
        %v2509 = vpack.c.b16 %v2494, %v2493
        %v2510 = vpack.c.b16 %v2496, %v2495
        %v2511 = vpack.c.b16 %v2498, %v2497
        %v2512 = vpack.c.b16 %v2500, %v2499
        %v2513 = vpack.c.b16 %v2502, %v2501
        %v2514 = vpack.c.b16 %v2504, %v2503
        %v2515 = vpack.c.b16 %v2506, %v2505
        %v2516 = vpack.c.b16 %v2508, %v2507
        %2525 = vmatpush.bf16.msra.mxu0 %v2516
        %2526 = vmatpush.bf16.msra.mxu0 %v2515
        %2527 = vmatpush.bf16.msra.mxu0 %v2514
        %2528 = vmatpush.bf16.msra.mxu0 %v2513
        %2529 = vmatpush.bf16.msra.mxu0 %v2512
        %2530 = vmatpush.bf16.msra.mxu0 %v2511
        %2531 = vmatpush.bf16.msra.mxu0 %v2510
        %2532 = vmatpush.bf16.msra.mxu0 %v2509
        %2533 = vmatmul.bf16.gmra.mxu0 %v2460
        %v2534 = vpop.f32.mrf.mxu0
        %v2535 = vadd.f32 0.0, %v2534
        %v2536 = vpop.f32.mrf.mxu0
        %v2537 = vadd.f32 0.0, %v2536
        %2538 = vdwg.mxu0
        %v2539 = vadd.f32 %v1686, %v2535
        %v2540 = vadd.f32 %v1687, %v2537
        %v2541 = vld [vmem:[%s921] sm:$0x1]
        %v2543 = vperm.slane %v2541, 0
        %v2545 = vadd.f32 %v2539, %v2543
        %v2546 = vadd.f32 %v2540, %v2543
        %v2547 = vld [vmem:[%s930] sm:$0x1]
        %v2548 = vld [vmem:[%s939] sm:$0x1]
        %2549 = vadd.xlane.f32.xlu0 %v2545
        %v2550 = vpop.xlane.xlu0 %2549
        %2551 = vadd.xlane.f32.xlu0 %v2546
        %v2552 = vpop.xlane.xlu0 %2551
        %v2553 = vmul.f32 %v2550, %v1700
        %v2554 = vmul.f32 %v2552, %v1700
        %v2555 = vsub.f32 %v2545, %v2553
        %v2556 = vsub.f32 %v2546, %v2554
        %v2557 = vmul.f32 %v2555, %v2555
        %v2558 = vmul.f32 %v2556, %v2556
        %2559 = vadd.xlane.f32.xlu0 %v2557
        %v2560 = vpop.xlane.xlu0 %2559
        %2561 = vadd.xlane.f32.xlu0 %v2558
        %v2562 = vpop.xlane.xlu0 %2561
        %v2563 = vmul.f32 %v2560, %v1700
        %v2564 = vmul.f32 %v2562, %v1700
        %v2565 = vadd.f32 %v2563, 1e-06
        %v2566 = vadd.f32 %v2564, 1e-06
        %v2567 = vrsqrt.pop %v2565
        %v2568 = vmul.f32 %v2567, %v2565
        %v2569 = vmul.f32 %v2568, %v2567
        %v2570 = vmul.f32 0.5, %v2569
        %v2571 = vsub.f32 1.5, %v2570
        %v2572 = vmul.f32 %v2567, %v2571
        %vm2573 = vweird.f32 %v2565
        %vm2574 = vweird.f32 %v2567
        %vm2575 = vmor %vm2573, %vm2574
        %v2576 = vsel %vm2575, %v2567, %v2572
        %v2577 = vrsqrt.pop %v2566
        %v2578 = vmul.f32 %v2577, %v2566
        %v2579 = vmul.f32 %v2578, %v2577
        %v2580 = vmul.f32 0.5, %v2579
        %v2581 = vsub.f32 1.5, %v2580
        %v2582 = vmul.f32 %v2577, %v2581
        %vm2583 = vweird.f32 %v2566
        %vm2584 = vweird.f32 %v2577
        %vm2585 = vmor %vm2583, %vm2584
        %v2586 = vsel %vm2585, %v2577, %v2582
        %v2587 = vmul.f32 %v2555, %v2576
        %v2588 = vmul.f32 %v2556, %v2586
        %v2590 = vperm.slane %v2547, 0
        %v2592 = vmul.f32 %v2587, %v2590
        %v2593 = vmul.f32 %v2588, %v2590
        %v2595 = vperm.slane %v2548, 0
        %v2597 = vadd.f32 %v2592, %v2595
        %v2598 = vadd.f32 %v2593, %v2595
        %v2599 = vpack.c.bf16 %v2598, %v2597
        %v2600 = vld [vmem:[%s949] sm:$0xff]
        %v2601 = vld [vmem:[%s949 + $0x8] sm:$0xff]
        %v2602 = vld [vmem:[%s949 + $0x10] sm:$0xff]
        %v2603 = vld [vmem:[%s949 + $0x18] sm:$0xff]
        %v2604 = vld [vmem:[%s949 + $0x20] sm:$0xff]
        %v2605 = vld [vmem:[%s949 + $0x28] sm:$0xff]
        %v2606 = vld [vmem:[%s949 + $0x30] sm:$0xff]
        %v2607 = vld [vmem:[%s949 + $0x38] sm:$0xff]
        %v2608 = vld [vmem:[%s949 + $0x40] sm:$0xff]
        %v2609 = vld [vmem:[%s949 + $0x48] sm:$0xff]
        %v2610 = vld [vmem:[%s949 + $0x50] sm:$0xff]
        %v2611 = vld [vmem:[%s949 + $0x58] sm:$0xff]
        %v2612 = vld [vmem:[%s949 + $0x60] sm:$0xff]
        %v2613 = vld [vmem:[%s949 + $0x68] sm:$0xff]
        %v2614 = vld [vmem:[%s949 + $0x70] sm:$0xff]
        %v2615 = vld [vmem:[%s949 + $0x78] sm:$0xff]
        %v2616 = vld [vmem:[%s949 + $0x80] sm:$0xff]
        %v2617 = vld [vmem:[%s949 + $0x88] sm:$0xff]
        %v2618 = vld [vmem:[%s949 + $0x90] sm:$0xff]
        %v2619 = vld [vmem:[%s949 + $0x98] sm:$0xff]
        %v2620 = vld [vmem:[%s949 + $0xa0] sm:$0xff]
        %v2621 = vld [vmem:[%s949 + $0xa8] sm:$0xff]
        %v2622 = vld [vmem:[%s949 + $0xb0] sm:$0xff]
        %v2623 = vld [vmem:[%s949 + $0xb8] sm:$0xff]
        %v2624 = vld [vmem:[%s949 + $0xc0] sm:$0xff]
        %v2625 = vld [vmem:[%s949 + $0xc8] sm:$0xff]
        %v2626 = vld [vmem:[%s949 + $0xd0] sm:$0xff]
        %v2627 = vld [vmem:[%s949 + $0xd8] sm:$0xff]
        %v2628 = vld [vmem:[%s949 + $0xe0] sm:$0xff]
        %v2629 = vld [vmem:[%s949 + $0xe8] sm:$0xff]
        %v2630 = vld [vmem:[%s949 + $0xf0] sm:$0xff]
        %v2631 = vld [vmem:[%s949 + $0xf8] sm:$0xff]
        %v2632 = vld [vmem:[%s1072] sm:$0xf]
        %v2634 = vperm.slane %v2632, 0
        %v2635 = vperm.slane %v2632, 1
        %v2636 = vperm.slane %v2632, 2
        %v2637 = vperm.slane %v2632, 3
        %v2674 = vunpack.c.l.b16 %v2600
        %v2675 = vunpack.c.h.b16 %v2600
        %v2676 = vunpack.c.l.b16 %v2601
        %v2677 = vunpack.c.h.b16 %v2601
        %v2678 = vunpack.c.l.b16 %v2602
        %v2679 = vunpack.c.h.b16 %v2602
        %v2680 = vunpack.c.l.b16 %v2603
        %v2681 = vunpack.c.h.b16 %v2603
        %v2682 = vunpack.c.l.b16 %v2604
        %v2683 = vunpack.c.h.b16 %v2604
        %v2684 = vunpack.c.l.b16 %v2605
        %v2685 = vunpack.c.h.b16 %v2605
        %v2686 = vunpack.c.l.b16 %v2606
        %v2687 = vunpack.c.h.b16 %v2606
        %v2688 = vunpack.c.l.b16 %v2607
        %v2689 = vunpack.c.h.b16 %v2607
        %v2690 = vunpack.c.l.b16 %v2608
        %v2691 = vunpack.c.h.b16 %v2608
        %v2692 = vunpack.c.l.b16 %v2609
        %v2693 = vunpack.c.h.b16 %v2609
        %v2694 = vunpack.c.l.b16 %v2610
        %v2695 = vunpack.c.h.b16 %v2610
        %v2696 = vunpack.c.l.b16 %v2611
        %v2697 = vunpack.c.h.b16 %v2611
        %v2698 = vunpack.c.l.b16 %v2612
        %v2699 = vunpack.c.h.b16 %v2612
        %v2700 = vunpack.c.l.b16 %v2613
        %v2701 = vunpack.c.h.b16 %v2613
        %v2702 = vunpack.c.l.b16 %v2614
        %v2703 = vunpack.c.h.b16 %v2614
        %v2704 = vunpack.c.l.b16 %v2615
        %v2705 = vunpack.c.h.b16 %v2615
        %v2706 = vunpack.c.l.b16 %v2616
        %v2707 = vunpack.c.h.b16 %v2616
        %v2708 = vunpack.c.l.b16 %v2617
        %v2709 = vunpack.c.h.b16 %v2617
        %v2710 = vunpack.c.l.b16 %v2618
        %v2711 = vunpack.c.h.b16 %v2618
        %v2712 = vunpack.c.l.b16 %v2619
        %v2713 = vunpack.c.h.b16 %v2619
        %v2714 = vunpack.c.l.b16 %v2620
        %v2715 = vunpack.c.h.b16 %v2620
        %v2716 = vunpack.c.l.b16 %v2621
        %v2717 = vunpack.c.h.b16 %v2621
        %v2718 = vunpack.c.l.b16 %v2622
        %v2719 = vunpack.c.h.b16 %v2622
        %v2720 = vunpack.c.l.b16 %v2623
        %v2721 = vunpack.c.h.b16 %v2623
        %v2722 = vunpack.c.l.b16 %v2624
        %v2723 = vunpack.c.h.b16 %v2624
        %v2724 = vunpack.c.l.b16 %v2625
        %v2725 = vunpack.c.h.b16 %v2625
        %v2726 = vunpack.c.l.b16 %v2626
        %v2727 = vunpack.c.h.b16 %v2626
        %v2728 = vunpack.c.l.b16 %v2627
        %v2729 = vunpack.c.h.b16 %v2627
        %v2730 = vunpack.c.l.b16 %v2628
        %v2731 = vunpack.c.h.b16 %v2628
        %v2732 = vunpack.c.l.b16 %v2629
        %v2733 = vunpack.c.h.b16 %v2629
        %v2734 = vunpack.c.l.b16 %v2630
        %v2735 = vunpack.c.h.b16 %v2630
        %v2736 = vunpack.c.l.b16 %v2631
        %v2737 = vunpack.c.h.b16 %v2631
        %v2738 = vpack.c.b16 %v2678, %v2674
        %v2739 = vpack.c.b16 %v2679, %v2675
        %v2740 = vpack.c.b16 %v2680, %v2676
        %v2741 = vpack.c.b16 %v2681, %v2677
        %v2742 = vpack.c.b16 %v2686, %v2682
        %v2743 = vpack.c.b16 %v2687, %v2683
        %v2744 = vpack.c.b16 %v2688, %v2684
        %v2745 = vpack.c.b16 %v2689, %v2685
        %v2746 = vpack.c.b16 %v2694, %v2690
        %v2747 = vpack.c.b16 %v2695, %v2691
        %v2748 = vpack.c.b16 %v2696, %v2692
        %v2749 = vpack.c.b16 %v2697, %v2693
        %v2750 = vpack.c.b16 %v2702, %v2698
        %v2751 = vpack.c.b16 %v2703, %v2699
        %v2752 = vpack.c.b16 %v2704, %v2700
        %v2753 = vpack.c.b16 %v2705, %v2701
        %v2754 = vpack.c.b16 %v2710, %v2706
        %v2755 = vpack.c.b16 %v2711, %v2707
        %v2756 = vpack.c.b16 %v2712, %v2708
        %v2757 = vpack.c.b16 %v2713, %v2709
        %v2758 = vpack.c.b16 %v2718, %v2714
        %v2759 = vpack.c.b16 %v2719, %v2715
        %v2760 = vpack.c.b16 %v2720, %v2716
        %v2761 = vpack.c.b16 %v2721, %v2717
        %v2762 = vpack.c.b16 %v2726, %v2722
        %v2763 = vpack.c.b16 %v2727, %v2723
        %v2764 = vpack.c.b16 %v2728, %v2724
        %v2765 = vpack.c.b16 %v2729, %v2725
        %v2766 = vpack.c.b16 %v2734, %v2730
        %v2767 = vpack.c.b16 %v2735, %v2731
        %v2768 = vpack.c.b16 %v2736, %v2732
        %v2769 = vpack.c.b16 %v2737, %v2733
        %2802 = vmatpush.bf16.msra.mxu0 %v2766
        %2803 = vmatpush.bf16.msra.mxu0 %v2762
        %2804 = vmatpush.bf16.msra.mxu0 %v2758
        %2805 = vmatpush.bf16.msra.mxu0 %v2754
        %2806 = vmatpush.bf16.msra.mxu0 %v2750
        %2807 = vmatpush.bf16.msra.mxu0 %v2746
        %2808 = vmatpush.bf16.msra.mxu0 %v2742
        %2809 = vmatpush.bf16.msra.mxu0 %v2738
        %2810 = vmatmul.bf16.gmra.mxu0 %v2599
        %v2811 = vpop.f32.mrf.mxu0
        %v2812 = vadd.f32 %v2634, %v2811
        %v2813 = vpop.f32.mrf.mxu0
        %v2814 = vadd.f32 %v2634, %v2813
        %2815 = vdwg.mxu0
        %2816 = vmatpush.bf16.msra.mxu0 %v2767
        %2817 = vmatpush.bf16.msra.mxu0 %v2763
        %2818 = vmatpush.bf16.msra.mxu0 %v2759
        %2819 = vmatpush.bf16.msra.mxu0 %v2755
        %2820 = vmatpush.bf16.msra.mxu0 %v2751
        %2821 = vmatpush.bf16.msra.mxu0 %v2747
        %2822 = vmatpush.bf16.msra.mxu0 %v2743
        %2823 = vmatpush.bf16.msra.mxu0 %v2739
        %2824 = vmatmul.bf16.gmra.mxu0 %v2599
        %v2825 = vpop.f32.mrf.mxu0
        %v2826 = vadd.f32 %v2635, %v2825
        %v2827 = vpop.f32.mrf.mxu0
        %v2828 = vadd.f32 %v2635, %v2827
        %2829 = vdwg.mxu0
        %2830 = vmatpush.bf16.msra.mxu0 %v2768
        %2831 = vmatpush.bf16.msra.mxu0 %v2764
        %2832 = vmatpush.bf16.msra.mxu0 %v2760
        %2833 = vmatpush.bf16.msra.mxu0 %v2756
        %2834 = vmatpush.bf16.msra.mxu0 %v2752
        %2835 = vmatpush.bf16.msra.mxu0 %v2748
        %2836 = vmatpush.bf16.msra.mxu0 %v2744
        %2837 = vmatpush.bf16.msra.mxu0 %v2740
        %2838 = vmatmul.bf16.gmra.mxu0 %v2599
        %v2839 = vpop.f32.mrf.mxu0
        %v2840 = vadd.f32 %v2636, %v2839
        %v2841 = vpop.f32.mrf.mxu0
        %v2842 = vadd.f32 %v2636, %v2841
        %2843 = vdwg.mxu0
        %2844 = vmatpush.bf16.msra.mxu0 %v2769
        %2845 = vmatpush.bf16.msra.mxu0 %v2765
        %2846 = vmatpush.bf16.msra.mxu0 %v2761
        %2847 = vmatpush.bf16.msra.mxu0 %v2757
        %2848 = vmatpush.bf16.msra.mxu0 %v2753
        %2849 = vmatpush.bf16.msra.mxu0 %v2749
        %2850 = vmatpush.bf16.msra.mxu0 %v2745
        %2851 = vmatpush.bf16.msra.mxu0 %v2741
        %2852 = vmatmul.bf16.gmra.mxu0 %v2599
        %v2853 = vpop.f32.mrf.mxu0
        %v2854 = vadd.f32 %v2637, %v2853
        %v2855 = vpop.f32.mrf.mxu0
        %v2856 = vadd.f32 %v2637, %v2855
        %2857 = vdwg.mxu0
        %v2858 = vmul.f32 %v2812, 0.5
        %v2859 = vmul.f32 %v2826, 0.5
        %v2860 = vmul.f32 %v2840, 0.5
        %v2861 = vmul.f32 %v2854, 0.5
        %v2862 = vmul.f32 %v2814, 0.5
        %v2863 = vmul.f32 %v2828, 0.5
        %v2864 = vmul.f32 %v2842, 0.5
        %v2865 = vmul.f32 %v2856, 0.5
        %v2866 = vmul.f32 %v2812, 0.70710677
        %v2867 = vmul.f32 %v2826, 0.70710677
        %v2868 = vmul.f32 %v2840, 0.70710677
        %v2869 = vmul.f32 %v2854, 0.70710677
        %v2870 = vmul.f32 %v2814, 0.70710677
        %v2871 = vmul.f32 %v2828, 0.70710677
        %v2872 = vmul.f32 %v2842, 0.70710677
        %v2873 = vmul.f32 %v2856, 0.70710677
        %vm2874 = vcmp.ge.f32.partialorder %v2866, 0.0
        %vm2875 = vcmp.ge.f32.partialorder %v2867, 0.0
        %vm2876 = vcmp.ge.f32.partialorder %v2868, 0.0
        %vm2877 = vcmp.ge.f32.partialorder %v2869, 0.0
        %vm2878 = vcmp.ge.f32.partialorder %v2870, 0.0
        %vm2879 = vcmp.ge.f32.partialorder %v2871, 0.0
        %vm2880 = vcmp.ge.f32.partialorder %v2872, 0.0
        %vm2881 = vcmp.ge.f32.partialorder %v2873, 0.0
        %v2882 = vsel %vm2874, 1.0, -1.0
        %v2883 = vsel %vm2875, 1.0, -1.0
        %v2884 = vsel %vm2876, 1.0, -1.0
        %v2885 = vsel %vm2877, 1.0, -1.0
        %v2886 = vsel %vm2878, 1.0, -1.0
        %v2887 = vsel %vm2879, 1.0, -1.0
        %v2888 = vsel %vm2880, 1.0, -1.0
        %v2889 = vsel %vm2881, 1.0, -1.0
        %v2890 = vand.u32 2147483647, %v2866
        %v2891 = vand.u32 2147483647, %v2867
        %v2892 = vand.u32 2147483647, %v2868
        %v2893 = vand.u32 2147483647, %v2869
        %v2894 = vand.u32 2147483647, %v2870
        %v2895 = vand.u32 2147483647, %v2871
        %v2896 = vand.u32 2147483647, %v2872
        %v2897 = vand.u32 2147483647, %v2873
        %v2898 = vmul.f32 %v2890, 0.3275911
        %v2899 = vmul.f32 %v2891, 0.3275911
        %v2900 = vmul.f32 %v2892, 0.3275911
        %v2901 = vmul.f32 %v2893, 0.3275911
        %v2902 = vmul.f32 %v2894, 0.3275911
        %v2903 = vmul.f32 %v2895, 0.3275911
        %v2904 = vmul.f32 %v2896, 0.3275911
        %v2905 = vmul.f32 %v2897, 0.3275911
        %v2906 = vadd.f32 %v2898, 1.0
        %v2907 = vadd.f32 %v2899, 1.0
        %v2908 = vadd.f32 %v2900, 1.0
        %v2909 = vadd.f32 %v2901, 1.0
        %v2910 = vadd.f32 %v2902, 1.0
        %v2911 = vadd.f32 %v2903, 1.0
        %v2912 = vadd.f32 %v2904, 1.0
        %v2913 = vadd.f32 %v2905, 1.0
        %v2914 = vrcp.pop %v2906
        %v2915 = vmul.f32 %v2906, %v2914
        %v2916 = vsub.f32 1.0, %v2915
        %v2917 = vmul.f32 %v2914, %v2916
        %v2918 = vadd.f32 %v2914, %v2917
        %vm2919 = vweird.f32 %v2906
        %vm2920 = vweird.f32 %v2914
        %vm2921 = vmor %vm2919, %vm2920
        %v2922 = vsel %vm2921, %v2914, %v2918
        %v2923 = vand.u32 2147483647, %v2906
        %vm2924 = vcmp.eq.f32.partialorder %v2923, 8.507059e+37
        %v2925 = vand.u32 %v2906, 2147483648
        %v2926 = vor.u32 1.1754944e-38, %v2925
        %v2927 = vsel %vm2924, %v2926, %v2922
        %v2928 = vmul.f32 1.0, %v2927
        %v2929 = vrcp.pop %v2907
        %v2930 = vmul.f32 %v2907, %v2929
        %v2931 = vsub.f32 1.0, %v2930
        %v2932 = vmul.f32 %v2929, %v2931
        %v2933 = vadd.f32 %v2929, %v2932
        %vm2934 = vweird.f32 %v2907
        %vm2935 = vweird.f32 %v2929
        %vm2936 = vmor %vm2934, %vm2935
        %v2937 = vsel %vm2936, %v2929, %v2933
        %v2938 = vand.u32 2147483647, %v2907
        %vm2939 = vcmp.eq.f32.partialorder %v2938, 8.507059e+37
        %v2940 = vand.u32 %v2907, 2147483648
        %v2941 = vor.u32 1.1754944e-38, %v2940
        %v2942 = vsel %vm2939, %v2941, %v2937
        %v2943 = vmul.f32 1.0, %v2942
        %v2944 = vrcp.pop %v2908
        %v2945 = vmul.f32 %v2908, %v2944
        %v2946 = vsub.f32 1.0, %v2945
        %v2947 = vmul.f32 %v2944, %v2946
        %v2948 = vadd.f32 %v2944, %v2947
        %vm2949 = vweird.f32 %v2908
        %vm2950 = vweird.f32 %v2944
        %vm2951 = vmor %vm2949, %vm2950
        %v2952 = vsel %vm2951, %v2944, %v2948
        %v2953 = vand.u32 2147483647, %v2908
        %vm2954 = vcmp.eq.f32.partialorder %v2953, 8.507059e+37
        %v2955 = vand.u32 %v2908, 2147483648
        %v2956 = vor.u32 1.1754944e-38, %v2955
        %v2957 = vsel %vm2954, %v2956, %v2952
        %v2958 = vmul.f32 1.0, %v2957
        %v2959 = vrcp.pop %v2909
        %v2960 = vmul.f32 %v2909, %v2959
        %v2961 = vsub.f32 1.0, %v2960
        %v2962 = vmul.f32 %v2959, %v2961
        %v2963 = vadd.f32 %v2959, %v2962
        %vm2964 = vweird.f32 %v2909
        %vm2965 = vweird.f32 %v2959
        %vm2966 = vmor %vm2964, %vm2965
        %v2967 = vsel %vm2966, %v2959, %v2963
        %v2968 = vand.u32 2147483647, %v2909
        %vm2969 = vcmp.eq.f32.partialorder %v2968, 8.507059e+37
        %v2970 = vand.u32 %v2909, 2147483648
        %v2971 = vor.u32 1.1754944e-38, %v2970
        %v2972 = vsel %vm2969, %v2971, %v2967
        %v2973 = vmul.f32 1.0, %v2972
        %v2974 = vrcp.pop %v2910
        %v2975 = vmul.f32 %v2910, %v2974
        %v2976 = vsub.f32 1.0, %v2975
        %v2977 = vmul.f32 %v2974, %v2976
        %v2978 = vadd.f32 %v2974, %v2977
        %vm2979 = vweird.f32 %v2910
        %vm2980 = vweird.f32 %v2974
        %vm2981 = vmor %vm2979, %vm2980
        %v2982 = vsel %vm2981, %v2974, %v2978
        %v2983 = vand.u32 2147483647, %v2910
        %vm2984 = vcmp.eq.f32.partialorder %v2983, 8.507059e+37
        %v2985 = vand.u32 %v2910, 2147483648
        %v2986 = vor.u32 1.1754944e-38, %v2985
        %v2987 = vsel %vm2984, %v2986, %v2982
        %v2988 = vmul.f32 1.0, %v2987
        %v2989 = vrcp.pop %v2911
        %v2990 = vmul.f32 %v2911, %v2989
        %v2991 = vsub.f32 1.0, %v2990
        %v2992 = vmul.f32 %v2989, %v2991
        %v2993 = vadd.f32 %v2989, %v2992
        %vm2994 = vweird.f32 %v2911
        %vm2995 = vweird.f32 %v2989
        %vm2996 = vmor %vm2994, %vm2995
        %v2997 = vsel %vm2996, %v2989, %v2993
        %v2998 = vand.u32 2147483647, %v2911
        %vm2999 = vcmp.eq.f32.partialorder %v2998, 8.507059e+37
        %v3000 = vand.u32 %v2911, 2147483648
        %v3001 = vor.u32 1.1754944e-38, %v3000
        %v3002 = vsel %vm2999, %v3001, %v2997
        %v3003 = vmul.f32 1.0, %v3002
        %v3004 = vrcp.pop %v2912
        %v3005 = vmul.f32 %v2912, %v3004
        %v3006 = vsub.f32 1.0, %v3005
        %v3007 = vmul.f32 %v3004, %v3006
        %v3008 = vadd.f32 %v3004, %v3007
        %vm3009 = vweird.f32 %v2912
        %vm3010 = vweird.f32 %v3004
        %vm3011 = vmor %vm3009, %vm3010
        %v3012 = vsel %vm3011, %v3004, %v3008
        %v3013 = vand.u32 2147483647, %v2912
        %vm3014 = vcmp.eq.f32.partialorder %v3013, 8.507059e+37
        %v3015 = vand.u32 %v2912, 2147483648
        %v3016 = vor.u32 1.1754944e-38, %v3015
        %v3017 = vsel %vm3014, %v3016, %v3012
        %v3018 = vmul.f32 1.0, %v3017
        %v3019 = vrcp.pop %v2913
        %v3020 = vmul.f32 %v2913, %v3019
        %v3021 = vsub.f32 1.0, %v3020
        %v3022 = vmul.f32 %v3019, %v3021
        %v3023 = vadd.f32 %v3019, %v3022
        %vm3024 = vweird.f32 %v2913
        %vm3025 = vweird.f32 %v3019
        %vm3026 = vmor %vm3024, %vm3025
        %v3027 = vsel %vm3026, %v3019, %v3023
        %v3028 = vand.u32 2147483647, %v2913
        %vm3029 = vcmp.eq.f32.partialorder %v3028, 8.507059e+37
        %v3030 = vand.u32 %v2913, 2147483648
        %v3031 = vor.u32 1.1754944e-38, %v3030
        %v3032 = vsel %vm3029, %v3031, %v3027
        %v3033 = vmul.f32 1.0, %v3032
        %v3034 = vmul.f32 %v2928, 1.0614054
        %v3035 = vmul.f32 %v2943, 1.0614054
        %v3036 = vmul.f32 %v2958, 1.0614054
        %v3037 = vmul.f32 %v2973, 1.0614054
        %v3038 = vmul.f32 %v2988, 1.0614054
        %v3039 = vmul.f32 %v3003, 1.0614054
        %v3040 = vmul.f32 %v3018, 1.0614054
        %v3041 = vmul.f32 %v3033, 1.0614054
        %v3042 = vadd.f32 %v3034, -1.4531521
        %v3043 = vadd.f32 %v3035, -1.4531521
        %v3044 = vadd.f32 %v3036, -1.4531521
        %v3045 = vadd.f32 %v3037, -1.4531521
        %v3046 = vadd.f32 %v3038, -1.4531521
        %v3047 = vadd.f32 %v3039, -1.4531521
        %v3048 = vadd.f32 %v3040, -1.4531521
        %v3049 = vadd.f32 %v3041, -1.4531521
        %v3050 = vmul.f32 %v3042, %v2928
        %v3051 = vmul.f32 %v3043, %v2943
        %v3052 = vmul.f32 %v3044, %v2958
        %v3053 = vmul.f32 %v3045, %v2973
        %v3054 = vmul.f32 %v3046, %v2988
        %v3055 = vmul.f32 %v3047, %v3003
        %v3056 = vmul.f32 %v3048, %v3018
        %v3057 = vmul.f32 %v3049, %v3033
        %v3058 = vadd.f32 %v3050, 1.4214138
        %v3059 = vadd.f32 %v3051, 1.4214138
        %v3060 = vadd.f32 %v3052, 1.4214138
        %v3061 = vadd.f32 %v3053, 1.4214138
        %v3062 = vadd.f32 %v3054, 1.4214138
        %v3063 = vadd.f32 %v3055, 1.4214138
        %v3064 = vadd.f32 %v3056, 1.4214138
        %v3065 = vadd.f32 %v3057, 1.4214138
        %v3066 = vmul.f32 %v3058, %v2928
        %v3067 = vmul.f32 %v3059, %v2943
        %v3068 = vmul.f32 %v3060, %v2958
        %v3069 = vmul.f32 %v3061, %v2973
        %v3070 = vmul.f32 %v3062, %v2988
        %v3071 = vmul.f32 %v3063, %v3003
        %v3072 = vmul.f32 %v3064, %v3018
        %v3073 = vmul.f32 %v3065, %v3033
        %v3074 = vadd.f32 %v3066, -0.28449672
        %v3075 = vadd.f32 %v3067, -0.28449672
        %v3076 = vadd.f32 %v3068, -0.28449672
        %v3077 = vadd.f32 %v3069, -0.28449672
        %v3078 = vadd.f32 %v3070, -0.28449672
        %v3079 = vadd.f32 %v3071, -0.28449672
        %v3080 = vadd.f32 %v3072, -0.28449672
        %v3081 = vadd.f32 %v3073, -0.28449672
        %v3082 = vmul.f32 %v3074, %v2928
        %v3083 = vmul.f32 %v3075, %v2943
        %v3084 = vmul.f32 %v3076, %v2958
        %v3085 = vmul.f32 %v3077, %v2973
        %v3086 = vmul.f32 %v3078, %v2988
        %v3087 = vmul.f32 %v3079, %v3003
        %v3088 = vmul.f32 %v3080, %v3018
        %v3089 = vmul.f32 %v3081, %v3033
        %v3090 = vadd.f32 %v3082, 0.2548296
        %v3091 = vadd.f32 %v3083, 0.2548296
        %v3092 = vadd.f32 %v3084, 0.2548296
        %v3093 = vadd.f32 %v3085, 0.2548296
        %v3094 = vadd.f32 %v3086, 0.2548296
        %v3095 = vadd.f32 %v3087, 0.2548296
        %v3096 = vadd.f32 %v3088, 0.2548296
        %v3097 = vadd.f32 %v3089, 0.2548296
        %v3098 = vmul.f32 %v3090, %v2928
        %v3099 = vmul.f32 %v3091, %v2943
        %v3100 = vmul.f32 %v3092, %v2958
        %v3101 = vmul.f32 %v3093, %v2973
        %v3102 = vmul.f32 %v3094, %v2988
        %v3103 = vmul.f32 %v3095, %v3003
        %v3104 = vmul.f32 %v3096, %v3018
        %v3105 = vmul.f32 %v3097, %v3033
        %v3106 = vsub.f32 0.0, %v2890
        %v3107 = vsub.f32 0.0, %v2891
        %v3108 = vsub.f32 0.0, %v2892
        %v3109 = vsub.f32 0.0, %v2893
        %v3110 = vsub.f32 0.0, %v2894
        %v3111 = vsub.f32 0.0, %v2895
        %v3112 = vsub.f32 0.0, %v2896
        %v3113 = vsub.f32 0.0, %v2897
        %v3114 = vmul.f32 %v3106, %v2890
        %v3115 = vmul.f32 %v3107, %v2891
        %v3116 = vmul.f32 %v3108, %v2892
        %v3117 = vmul.f32 %v3109, %v2893
        %v3118 = vmul.f32 %v3110, %v2894
        %v3119 = vmul.f32 %v3111, %v2895
        %v3120 = vmul.f32 %v3112, %v2896
        %v3121 = vmul.f32 %v3113, %v2897
        %v3122 = vmul.f32 %v3114, 1.442695
        %v3123 = vpow.pop %v3122
        %v3124 = vmul.f32 %v3115, 1.442695
        %v3125 = vpow.pop %v3124
        %v3126 = vmul.f32 %v3116, 1.442695
        %v3127 = vpow.pop %v3126
        %v3128 = vmul.f32 %v3117, 1.442695
        %v3129 = vpow.pop %v3128
        %v3130 = vmul.f32 %v3118, 1.442695
        %v3131 = vpow.pop %v3130
        %v3132 = vmul.f32 %v3119, 1.442695
        %v3133 = vpow.pop %v3132
        %v3134 = vmul.f32 %v3120, 1.442695
        %v3135 = vpow.pop %v3134
        %v3136 = vmul.f32 %v3121, 1.442695
        %v3137 = vpow.pop %v3136
        %v3138 = vmul.f32 %v3098, %v3123
        %v3139 = vmul.f32 %v3099, %v3125
        %v3140 = vmul.f32 %v3100, %v3127
        %v3141 = vmul.f32 %v3101, %v3129
        %v3142 = vmul.f32 %v3102, %v3131
        %v3143 = vmul.f32 %v3103, %v3133
        %v3144 = vmul.f32 %v3104, %v3135
        %v3145 = vmul.f32 %v3105, %v3137
        %v3146 = vsub.f32 1.0, %v3138
        %v3147 = vsub.f32 1.0, %v3139
        %v3148 = vsub.f32 1.0, %v3140
        %v3149 = vsub.f32 1.0, %v3141
        %v3150 = vsub.f32 1.0, %v3142
        %v3151 = vsub.f32 1.0, %v3143
        %v3152 = vsub.f32 1.0, %v3144
        %v3153 = vsub.f32 1.0, %v3145
        %v3154 = vmul.f32 %v2882, %v3146
        %v3155 = vmul.f32 %v2883, %v3147
        %v3156 = vmul.f32 %v2884, %v3148
        %v3157 = vmul.f32 %v2885, %v3149
        %v3158 = vmul.f32 %v2886, %v3150
        %v3159 = vmul.f32 %v2887, %v3151
        %v3160 = vmul.f32 %v2888, %v3152
        %v3161 = vmul.f32 %v2889, %v3153
        %v3162 = vadd.f32 %v3154, 1.0
        %v3163 = vadd.f32 %v3155, 1.0
        %v3164 = vadd.f32 %v3156, 1.0
        %v3165 = vadd.f32 %v3157, 1.0
        %v3166 = vadd.f32 %v3158, 1.0
        %v3167 = vadd.f32 %v3159, 1.0
        %v3168 = vadd.f32 %v3160, 1.0
        %v3169 = vadd.f32 %v3161, 1.0
        %v3170 = vmul.f32 %v2858, %v3162
        %v3171 = vmul.f32 %v2859, %v3163
        %v3172 = vmul.f32 %v2860, %v3164
        %v3173 = vmul.f32 %v2861, %v3165
        %v3174 = vmul.f32 %v2862, %v3166
        %v3175 = vmul.f32 %v2863, %v3167
        %v3176 = vmul.f32 %v2864, %v3168
        %v3177 = vmul.f32 %v2865, %v3169
        %v3178 = vpack.c.bf16 %v3174, %v3170
        %v3179 = vpack.c.bf16 %v3175, %v3171
        %v3180 = vpack.c.bf16 %v3176, %v3172
        %v3181 = vpack.c.bf16 %v3177, %v3173
        %v3182 = vld [vmem:[%s959] sm:$0xf]
        %v3183 = vld [vmem:[%s959 + $0x4] sm:$0xf]
        %v3184 = vld [vmem:[%s959 + $0x8] sm:$0xf]
        %v3185 = vld [vmem:[%s959 + $0xc] sm:$0xf]
        %v3186 = vld [vmem:[%s959 + $0x10] sm:$0xf]
        %v3187 = vld [vmem:[%s959 + $0x14] sm:$0xf]
        %v3188 = vld [vmem:[%s959 + $0x18] sm:$0xf]
        %v3189 = vld [vmem:[%s959 + $0x1c] sm:$0xf]
        %v3190 = vld [vmem:[%s959 + $0x20] sm:$0xf]
        %v3191 = vld [vmem:[%s959 + $0x24] sm:$0xf]
        %v3192 = vld [vmem:[%s959 + $0x28] sm:$0xf]
        %v3193 = vld [vmem:[%s959 + $0x2c] sm:$0xf]
        %v3194 = vld [vmem:[%s959 + $0x30] sm:$0xf]
        %v3195 = vld [vmem:[%s959 + $0x34] sm:$0xf]
        %v3196 = vld [vmem:[%s959 + $0x38] sm:$0xf]
        %v3197 = vld [vmem:[%s959 + $0x3c] sm:$0xf]
        %v3198 = vld [vmem:[%s959 + $0x40] sm:$0xf]
        %v3199 = vld [vmem:[%s959 + $0x44] sm:$0xf]
        %v3200 = vld [vmem:[%s959 + $0x48] sm:$0xf]
        %v3201 = vld [vmem:[%s959 + $0x4c] sm:$0xf]
        %v3202 = vld [vmem:[%s959 + $0x50] sm:$0xf]
        %v3203 = vld [vmem:[%s959 + $0x54] sm:$0xf]
        %v3204 = vld [vmem:[%s959 + $0x58] sm:$0xf]
        %v3205 = vld [vmem:[%s959 + $0x5c] sm:$0xf]
        %v3206 = vld [vmem:[%s959 + $0x60] sm:$0xf]
        %v3207 = vld [vmem:[%s959 + $0x64] sm:$0xf]
        %v3208 = vld [vmem:[%s959 + $0x68] sm:$0xf]
        %v3209 = vld [vmem:[%s959 + $0x6c] sm:$0xf]
        %v3210 = vld [vmem:[%s959 + $0x70] sm:$0xf]
        %v3211 = vld [vmem:[%s959 + $0x74] sm:$0xf]
        %v3212 = vld [vmem:[%s959 + $0x78] sm:$0xf]
        %v3213 = vld [vmem:[%s959 + $0x7c] sm:$0xf]
        %v3214 = vld [vmem:[%s959 + $0x80] sm:$0xf]
        %v3215 = vld [vmem:[%s959 + $0x84] sm:$0xf]
        %v3216 = vld [vmem:[%s959 + $0x88] sm:$0xf]
        %v3217 = vld [vmem:[%s959 + $0x8c] sm:$0xf]
        %v3218 = vld [vmem:[%s959 + $0x90] sm:$0xf]
        %v3219 = vld [vmem:[%s959 + $0x94] sm:$0xf]
        %v3220 = vld [vmem:[%s959 + $0x98] sm:$0xf]
        %v3221 = vld [vmem:[%s959 + $0x9c] sm:$0xf]
        %v3222 = vld [vmem:[%s959 + $0xa0] sm:$0xf]
        %v3223 = vld [vmem:[%s959 + $0xa4] sm:$0xf]
        %v3224 = vld [vmem:[%s959 + $0xa8] sm:$0xf]
        %v3225 = vld [vmem:[%s959 + $0xac] sm:$0xf]
        %v3226 = vld [vmem:[%s959 + $0xb0] sm:$0xf]
        %v3227 = vld [vmem:[%s959 + $0xb4] sm:$0xf]
        %v3228 = vld [vmem:[%s959 + $0xb8] sm:$0xf]
        %v3229 = vld [vmem:[%s959 + $0xbc] sm:$0xf]
        %v3230 = vld [vmem:[%s959 + $0xc0] sm:$0xf]
        %v3231 = vld [vmem:[%s959 + $0xc4] sm:$0xf]
        %v3232 = vld [vmem:[%s959 + $0xc8] sm:$0xf]
        %v3233 = vld [vmem:[%s959 + $0xcc] sm:$0xf]
        %v3234 = vld [vmem:[%s959 + $0xd0] sm:$0xf]
        %v3235 = vld [vmem:[%s959 + $0xd4] sm:$0xf]
        %v3236 = vld [vmem:[%s959 + $0xd8] sm:$0xf]
        %v3237 = vld [vmem:[%s959 + $0xdc] sm:$0xf]
        %v3238 = vld [vmem:[%s959 + $0xe0] sm:$0xf]
        %v3239 = vld [vmem:[%s959 + $0xe4] sm:$0xf]
        %v3240 = vld [vmem:[%s959 + $0xe8] sm:$0xf]
        %v3241 = vld [vmem:[%s959 + $0xec] sm:$0xf]
        %v3242 = vld [vmem:[%s959 + $0xf0] sm:$0xf]
        %v3243 = vld [vmem:[%s959 + $0xf4] sm:$0xf]
        %v3244 = vld [vmem:[%s959 + $0xf8] sm:$0xf]
        %v3245 = vld [vmem:[%s959 + $0xfc] sm:$0xf]
        %v3310 = vunpack.c.l.b16 %v3182
        %v3311 = vunpack.c.l.b16 %v3183
        %v3312 = vunpack.c.l.b16 %v3184
        %v3313 = vunpack.c.l.b16 %v3185
        %v3314 = vunpack.c.l.b16 %v3186
        %v3315 = vunpack.c.l.b16 %v3187
        %v3316 = vunpack.c.l.b16 %v3188
        %v3317 = vunpack.c.l.b16 %v3189
        %v3318 = vunpack.c.l.b16 %v3190
        %v3319 = vunpack.c.l.b16 %v3191
        %v3320 = vunpack.c.l.b16 %v3192
        %v3321 = vunpack.c.l.b16 %v3193
        %v3322 = vunpack.c.l.b16 %v3194
        %v3323 = vunpack.c.l.b16 %v3195
        %v3324 = vunpack.c.l.b16 %v3196
        %v3325 = vunpack.c.l.b16 %v3197
        %v3326 = vunpack.c.l.b16 %v3198
        %v3327 = vunpack.c.l.b16 %v3199
        %v3328 = vunpack.c.l.b16 %v3200
        %v3329 = vunpack.c.l.b16 %v3201
        %v3330 = vunpack.c.l.b16 %v3202
        %v3331 = vunpack.c.l.b16 %v3203
        %v3332 = vunpack.c.l.b16 %v3204
        %v3333 = vunpack.c.l.b16 %v3205
        %v3334 = vunpack.c.l.b16 %v3206
        %v3335 = vunpack.c.l.b16 %v3207
        %v3336 = vunpack.c.l.b16 %v3208
        %v3337 = vunpack.c.l.b16 %v3209
        %v3338 = vunpack.c.l.b16 %v3210
        %v3339 = vunpack.c.l.b16 %v3211
        %v3340 = vunpack.c.l.b16 %v3212
        %v3341 = vunpack.c.l.b16 %v3213
        %v3342 = vunpack.c.l.b16 %v3214
        %v3343 = vunpack.c.l.b16 %v3215
        %v3344 = vunpack.c.l.b16 %v3216
        %v3345 = vunpack.c.l.b16 %v3217
        %v3346 = vunpack.c.l.b16 %v3218
        %v3347 = vunpack.c.l.b16 %v3219
        %v3348 = vunpack.c.l.b16 %v3220
        %v3349 = vunpack.c.l.b16 %v3221
        %v3350 = vunpack.c.l.b16 %v3222
        %v3351 = vunpack.c.l.b16 %v3223
        %v3352 = vunpack.c.l.b16 %v3224
        %v3353 = vunpack.c.l.b16 %v3225
        %v3354 = vunpack.c.l.b16 %v3226
        %v3355 = vunpack.c.l.b16 %v3227
        %v3356 = vunpack.c.l.b16 %v3228
        %v3357 = vunpack.c.l.b16 %v3229
        %v3358 = vunpack.c.l.b16 %v3230
        %v3359 = vunpack.c.l.b16 %v3231
        %v3360 = vunpack.c.l.b16 %v3232
        %v3361 = vunpack.c.l.b16 %v3233
        %v3362 = vunpack.c.l.b16 %v3234
        %v3363 = vunpack.c.l.b16 %v3235
        %v3364 = vunpack.c.l.b16 %v3236
        %v3365 = vunpack.c.l.b16 %v3237
        %v3366 = vunpack.c.l.b16 %v3238
        %v3367 = vunpack.c.l.b16 %v3239
        %v3368 = vunpack.c.l.b16 %v3240
        %v3369 = vunpack.c.l.b16 %v3241
        %v3370 = vunpack.c.l.b16 %v3242
        %v3371 = vunpack.c.l.b16 %v3243
        %v3372 = vunpack.c.l.b16 %v3244
        %v3373 = vunpack.c.l.b16 %v3245
        %v3374 = vpack.c.b16 %v3311, %v3310
        %v3375 = vpack.c.b16 %v3313, %v3312
        %v3376 = vpack.c.b16 %v3315, %v3314
        %v3377 = vpack.c.b16 %v3317, %v3316
        %v3378 = vpack.c.b16 %v3319, %v3318
        %v3379 = vpack.c.b16 %v3321, %v3320
        %v3380 = vpack.c.b16 %v3323, %v3322
        %v3381 = vpack.c.b16 %v3325, %v3324
        %v3382 = vpack.c.b16 %v3327, %v3326
        %v3383 = vpack.c.b16 %v3329, %v3328
        %v3384 = vpack.c.b16 %v3331, %v3330
        %v3385 = vpack.c.b16 %v3333, %v3332
        %v3386 = vpack.c.b16 %v3335, %v3334
        %v3387 = vpack.c.b16 %v3337, %v3336
        %v3388 = vpack.c.b16 %v3339, %v3338
        %v3389 = vpack.c.b16 %v3341, %v3340
        %v3390 = vpack.c.b16 %v3343, %v3342
        %v3391 = vpack.c.b16 %v3345, %v3344
        %v3392 = vpack.c.b16 %v3347, %v3346
        %v3393 = vpack.c.b16 %v3349, %v3348
        %v3394 = vpack.c.b16 %v3351, %v3350
        %v3395 = vpack.c.b16 %v3353, %v3352
        %v3396 = vpack.c.b16 %v3355, %v3354
        %v3397 = vpack.c.b16 %v3357, %v3356
        %v3398 = vpack.c.b16 %v3359, %v3358
        %v3399 = vpack.c.b16 %v3361, %v3360
        %v3400 = vpack.c.b16 %v3363, %v3362
        %v3401 = vpack.c.b16 %v3365, %v3364
        %v3402 = vpack.c.b16 %v3367, %v3366
        %v3403 = vpack.c.b16 %v3369, %v3368
        %v3404 = vpack.c.b16 %v3371, %v3370
        %v3405 = vpack.c.b16 %v3373, %v3372
        %3438 = vmatpush.bf16.msra.mxu0 %v3381
        %3439 = vmatpush.bf16.msra.mxu0 %v3380
        %3440 = vmatpush.bf16.msra.mxu0 %v3379
        %3441 = vmatpush.bf16.msra.mxu0 %v3378
        %3442 = vmatpush.bf16.msra.mxu0 %v3377
        %3443 = vmatpush.bf16.msra.mxu0 %v3376
        %3444 = vmatpush.bf16.msra.mxu0 %v3375
        %3445 = vmatpush.bf16.msra.mxu0 %v3374
        %3446 = vmatmul.bf16.gmra.mxu0 %v3178
        %v3447 = vpop.f32.mrf.mxu0
        %v3448 = vadd.f32 0.0, %v3447
        %v3449 = vpop.f32.mrf.mxu0
        %v3450 = vadd.f32 0.0, %v3449
        %3451 = vdwg.mxu0
        %3452 = vmatpush.bf16.msra.mxu0 %v3389
        %3453 = vmatpush.bf16.msra.mxu0 %v3388
        %3454 = vmatpush.bf16.msra.mxu0 %v3387
        %3455 = vmatpush.bf16.msra.mxu0 %v3386
        %3456 = vmatpush.bf16.msra.mxu0 %v3385
        %3457 = vmatpush.bf16.msra.mxu0 %v3384
        %3458 = vmatpush.bf16.msra.mxu0 %v3383
        %3459 = vmatpush.bf16.msra.mxu0 %v3382
        %3460 = vmatmul.bf16.gmra.mxu0 %v3179
        %v3461 = vpop.f32.mrf.mxu0
        %v3462 = vadd.f32 %v3448, %v3461
        %v3463 = vpop.f32.mrf.mxu0
        %v3464 = vadd.f32 %v3450, %v3463
        %3465 = vdwg.mxu0
        %3466 = vmatpush.bf16.msra.mxu0 %v3397
        %3467 = vmatpush.bf16.msra.mxu0 %v3396
        %3468 = vmatpush.bf16.msra.mxu0 %v3395
        %3469 = vmatpush.bf16.msra.mxu0 %v3394
        %3470 = vmatpush.bf16.msra.mxu0 %v3393
        %3471 = vmatpush.bf16.msra.mxu0 %v3392
        %3472 = vmatpush.bf16.msra.mxu0 %v3391
        %3473 = vmatpush.bf16.msra.mxu0 %v3390
        %3474 = vmatmul.bf16.gmra.mxu0 %v3180
        %v3475 = vpop.f32.mrf.mxu0
        %v3476 = vadd.f32 %v3462, %v3475
        %v3477 = vpop.f32.mrf.mxu0
        %v3478 = vadd.f32 %v3464, %v3477
        %3479 = vdwg.mxu0
        %3480 = vmatpush.bf16.msra.mxu0 %v3405
        %3481 = vmatpush.bf16.msra.mxu0 %v3404
        %3482 = vmatpush.bf16.msra.mxu0 %v3403
        %3483 = vmatpush.bf16.msra.mxu0 %v3402
        %3484 = vmatpush.bf16.msra.mxu0 %v3401
        %3485 = vmatpush.bf16.msra.mxu0 %v3400
        %3486 = vmatpush.bf16.msra.mxu0 %v3399
        %3487 = vmatpush.bf16.msra.mxu0 %v3398
        %3488 = vmatmul.bf16.gmra.mxu0 %v3181
        %v3489 = vpop.f32.mrf.mxu0
        %v3490 = vadd.f32 %v3476, %v3489
        %v3491 = vpop.f32.mrf.mxu0
        %v3492 = vadd.f32 %v3478, %v3491
        %3493 = vdwg.mxu0
        %v3494 = vadd.f32 %v2545, %v3490
        %v3495 = vadd.f32 %v2546, %v3492
        %v3496 = vld [vmem:[%s1075] sm:$0x1]
        %v3498 = vperm.slane %v3496, 0
        %v3500 = vadd.f32 %v3494, %v3498
        %v3501 = vadd.f32 %v3495, %v3498
        %3502 = vst [vmem:[#allocation2] sm:$0xff] %v3500
        %3503 = vst [vmem:[#allocation2 + $0x8] sm:$0xff] %v3501
        %p3504 = scmp.eq.s32.totalorder %s53, 1
        // Predicated region
        $region161: #{tpu_custom_call.1} parent=99 // pred_check
          %p3505 = pneg %p3504
        $region162: #{tpu_custom_call.1} parent=99 // pred_check_branch
          %3507 = sbr.rel (%p3505) target = $region164
        $region163: #{tpu_custom_call.1} parent=99 // pred_region
          %v3508 = vld [vmem:[%s17] sm:$0x1]
          %v3509 = vld [vmem:[%s18] sm:$0x1]
          %3510 = vadd.xlane.f32.xlu0 %v3500
          %v3511 = vpop.xlane.xlu0 %3510
          %3512 = vadd.xlane.f32.xlu0 %v3501
          %v3513 = vpop.xlane.xlu0 %3512
          %v3514 = vmul.f32 %v3511, %v1700
          %v3515 = vmul.f32 %v3513, %v1700
          %v3516 = vsub.f32 %v3500, %v3514
          %v3517 = vsub.f32 %v3501, %v3515
          %v3518 = vmul.f32 %v3516, %v3516
          %v3519 = vmul.f32 %v3517, %v3517
          %3520 = vadd.xlane.f32.xlu0 %v3518
          %v3521 = vpop.xlane.xlu0 %3520
          %3522 = vadd.xlane.f32.xlu0 %v3519
          %v3523 = vpop.xlane.xlu0 %3522
          %v3524 = vmul.f32 %v3521, %v1700
          %v3525 = vmul.f32 %v3523, %v1700
          %v3526 = vadd.f32 %v3524, 1e-06
          %v3527 = vadd.f32 %v3525, 1e-06
          %v3528 = vrsqrt.pop %v3526
          %v3529 = vmul.f32 %v3528, %v3526
          %v3530 = vmul.f32 %v3529, %v3528
          %v3531 = vmul.f32 0.5, %v3530
          %v3532 = vsub.f32 1.5, %v3531
          %v3533 = vmul.f32 %v3528, %v3532
          %vm3534 = vweird.f32 %v3526
          %vm3535 = vweird.f32 %v3528
          %vm3536 = vmor %vm3534, %vm3535
          %v3537 = vsel %vm3536, %v3528, %v3533
          %v3538 = vrsqrt.pop %v3527
          %v3539 = vmul.f32 %v3538, %v3527
          %v3540 = vmul.f32 %v3539, %v3538
          %v3541 = vmul.f32 0.5, %v3540
          %v3542 = vsub.f32 1.5, %v3541
          %v3543 = vmul.f32 %v3538, %v3542
          %vm3544 = vweird.f32 %v3527
          %vm3545 = vweird.f32 %v3538
          %vm3546 = vmor %vm3544, %vm3545
          %v3547 = vsel %vm3546, %v3538, %v3543
          %v3548 = vmul.f32 %v3516, %v3537
          %v3549 = vmul.f32 %v3517, %v3547
          %v3551 = vperm.slane %v3508, 0
          %v3553 = vmul.f32 %v3548, %v3551
          %v3554 = vmul.f32 %v3549, %v3551
          %v3556 = vperm.slane %v3509, 0
          %v3558 = vadd.f32 %v3553, %v3556
          %v3559 = vadd.f32 %v3554, %v3556
          %v3561 = vrot.slane %v3559, 7
          %vm3563 = vcmask 1040384
          %v3564 = vsel %vm3563, %v3558, %v3561
          %v3565 = vpack.c.bf16 %v3564, %v3564
          %v3566 = vld [vmem:[#allocation24] sm:$0xf]
          %v3567 = vld [vmem:[#allocation24 + $0x4] sm:$0xf]
          %v3568 = vld [vmem:[#allocation24 + $0x8] sm:$0xf]
          %v3569 = vld [vmem:[#allocation24 + $0xc] sm:$0xf]
          %v3570 = vld [vmem:[#allocation24 + $0x10] sm:$0xf]
          %v3571 = vld [vmem:[#allocation24 + $0x14] sm:$0xf]
          %v3572 = vld [vmem:[#allocation24 + $0x18] sm:$0xf]
          %v3573 = vld [vmem:[#allocation24 + $0x1c] sm:$0xf]
          %v3574 = vld [vmem:[#allocation24 + $0x20] sm:$0xf]
          %v3575 = vld [vmem:[#allocation24 + $0x24] sm:$0xf]
          %v3576 = vld [vmem:[#allocation24 + $0x28] sm:$0xf]
          %v3577 = vld [vmem:[#allocation24 + $0x2c] sm:$0xf]
          %v3578 = vld [vmem:[#allocation24 + $0x30] sm:$0xf]
          %v3579 = vld [vmem:[#allocation24 + $0x34] sm:$0xf]
          %v3580 = vld [vmem:[#allocation24 + $0x38] sm:$0xf]
          %v3581 = vld [vmem:[#allocation24 + $0x3c] sm:$0xf]
          %v3598 = vunpack.c.l.b16 %v3566
          %v3599 = vunpack.c.l.b16 %v3567
          %v3600 = vunpack.c.l.b16 %v3568
          %v3601 = vunpack.c.l.b16 %v3569
          %v3602 = vunpack.c.l.b16 %v3570
          %v3603 = vunpack.c.l.b16 %v3571
          %v3604 = vunpack.c.l.b16 %v3572
          %v3605 = vunpack.c.l.b16 %v3573
          %v3606 = vunpack.c.l.b16 %v3574
          %v3607 = vunpack.c.l.b16 %v3575
          %v3608 = vunpack.c.l.b16 %v3576
          %v3609 = vunpack.c.l.b16 %v3577
          %v3610 = vunpack.c.l.b16 %v3578
          %v3611 = vunpack.c.l.b16 %v3579
          %v3612 = vunpack.c.l.b16 %v3580
          %v3613 = vunpack.c.l.b16 %v3581
          %v3614 = vpack.c.b16 %v3599, %v3598
          %v3615 = vpack.c.b16 %v3601, %v3600
          %v3616 = vpack.c.b16 %v3603, %v3602
          %v3617 = vpack.c.b16 %v3605, %v3604
          %v3618 = vpack.c.b16 %v3607, %v3606
          %v3619 = vpack.c.b16 %v3609, %v3608
          %v3620 = vpack.c.b16 %v3611, %v3610
          %v3621 = vpack.c.b16 %v3613, %v3612
          %3630 = vmatpush.bf16.msra.mxu0 %v3621
          %3631 = vmatpush.bf16.msra.mxu0 %v3620
          %3632 = vmatpush.bf16.msra.mxu0 %v3619
          %3633 = vmatpush.bf16.msra.mxu0 %v3618
          %3634 = vmatpush.bf16.msra.mxu0 %v3617
          %3635 = vmatpush.bf16.msra.mxu0 %v3616
          %3636 = vmatpush.bf16.msra.mxu0 %v3615
          %3637 = vmatpush.bf16.msra.mxu0 %v3614
          %3638 = vmatmul.bf16.gmra.mxu0 %v3565
          %v3639 = vpop.f32.mrf.mxu0
          %v3640 = vadd.f32 0.0, %v3639
          %v3641 = vpop.f32.mrf.mxu0
          %3642 = vdwg.mxu0
          %v3643 = vmul.f32 %v3640, %v3640
          %vm3644 = vcmask 1041408
          %v3645 = vsel %vm3644, %v3643, 0.0
          %3646 = vadd.xlane.f32.xlu0 %v3645
          %v3647 = vpop.xlane.xlu0 %3646
          %v3648 = vrsqrt.pop %v3647
          %v3649 = vmul.f32 %v3648, %v3647
          %v3650 = vmul.f32 %v3649, %v3648
          %v3651 = vmul.f32 0.5, %v3650
          %v3652 = vsub.f32 1.5, %v3651
          %v3653 = vmul.f32 %v3648, %v3652
          %v3654 = vmul.f32 %v3647, %v3653
          %vm3655 = vcmp.eq.f32.partialorder %v3647, inf
          %v3656 = vsel %vm3655, %v3647, %v3654
          %vm3657 = vcmp.eq.f32.partialorder %v3647, 0.0
          %v3658 = vand.u32 %v3647, 2147483648
          %v3659 = vsel %vm3657, %v3658, %v3656
          %v3660 = vmax.f32 %v3659, 1e-12
          %v3661 = vrcp.pop %v3660
          %v3662 = vmul.f32 %v3660, %v3661
          %v3663 = vsub.f32 1.0, %v3662
          %v3664 = vmul.f32 %v3661, %v3663
          %v3665 = vadd.f32 %v3661, %v3664
          %vm3666 = vweird.f32 %v3660
          %vm3667 = vweird.f32 %v3661
          %vm3668 = vmor %vm3666, %vm3667
          %v3669 = vsel %vm3668, %v3661, %v3665
          %v3670 = vand.u32 2147483647, %v3660
          %vm3671 = vcmp.eq.f32.partialorder %v3670, 8.507059e+37
          %v3672 = vand.u32 %v3660, 2147483648
          %v3673 = vor.u32 1.1754944e-38, %v3672
          %v3674 = vsel %vm3671, %v3673, %v3669
          %v3675 = vmul.f32 %v3640, %v3674
          %3676 = vst [vmem:[#allocation26] sm:$0x3] %v3675
        $region164: #{tpu_custom_call.1} parent=99 // pred_fallthru
          _
        // Predicated region
        $region165: #{tpu_custom_call.1} parent=99 // pred_check
          %p3677 = pneg %p563
        $region166: #{tpu_custom_call.1} parent=99 // pred_check_branch
          %3679 = sbr.rel (%p3677) target = $region168
        $region167: #{tpu_custom_call.1} parent=99 // pred_region
          %3681 = vsyncadd [#allocation5], 0
          %s3682 = smul.addr %s52, 2
          %s3683 = scalar_lea.hbm %s20, %s3682
          %s3685 = sshll.u32 [#allocation26], 4
          %s3686 = int_to_ptr.vmem [resolvable:$true] %s3685
          %s3687 = sshll.u32 %s3683, 4
          %s3688 = int_to_ptr.hbm [resolvable:$true] %s3687
          %3690 = dma.vmem_to_hbm [thread:$0]  %s3686, 32, %s3688, [#allocation5]
        $region168: #{tpu_custom_call.1} parent=99 // pred_fallthru
          _
        // Predicated region
        $region169: #{tpu_custom_call.1} parent=99 // pred_check
          %p3691 = pneg %p563
        $region170: #{tpu_custom_call.1} parent=99 // pred_check_branch
          %3693 = sbr.rel (%p3691) target = $region172
        $region171: #{tpu_custom_call.1} parent=99 // pred_region
          %3695 = dma.done [#allocation5], 32
        $region172: #{tpu_custom_call.1} parent=99 // pred_fallthru
          _
      $region100: #{tpu_custom_call.1} parent=5 // pred_fallthru
        _
      %p3696 = scmp.le.s32.totalorder 2, %s43
      // Predicated region
      $region173: #{tpu_custom_call.1} parent=5 // pred_check
        %p3697 = pneg %p3696
      $region174: #{tpu_custom_call.1} parent=5 // pred_check_branch
        %3699 = sbr.rel (%p3697) target = $region176
      $region175: #{tpu_custom_call.1} parent=5 // pred_region
        %s3700 = ssub.s32 %s43, 2
      $region176: #{tpu_custom_call.1} parent=5 // pred_fallthru
        _
    $region6: #{tpu_custom_call.1} parent=1 // loop_footer
      %s47 = sadd.s32 1, %s43
    $region7: #{tpu_custom_call.1} parent=1 // loop_footer_branch
      %42 = sbr.rel target = $region3
    $region8: #{tpu_custom_call.1} parent=1 // loop_exit
      _
    %3701 = vsyncpa [#allocation4], 1
    %s3702 = scalar_lea.sflag [#allocation4], 1
    %3703 = vsyncpa %s3702, 1
    %3704 = vsyncpa [#allocation7], 1
    %3705 = vsyncpa [#allocation10], 1
    %3706 = vsyncpa [#allocation13], 1
    %s3707 = scalar_lea.sflag [#allocation13], 1
    %3708 = vsyncpa %s3707, 1
    %3709 = vsyncpa [#allocation16], 1
    %s3710 = scalar_lea.sflag [#allocation16], 1
    %3711 = vsyncpa %s3710, 1
    %3712 = vsyncpa [#allocation19], 1
    %s3713 = scalar_lea.sflag [#allocation19], 1
    %3714 = vsyncpa %s3713, 1
    %3715 = vsyncpa [#allocation22], 1
    %s3716 = scalar_lea.sflag [#allocation22], 1
    %3717 = vsyncpa %s3716, 1
    %3718 = vsyncpa [#allocation25], 1
    %3719 = vsyncpa [#allocation5], 1
    %s3720 = scalar_lea.sflag [#allocation5], 1
    %3721 = vsyncpa %s3720, 1

</llo_original>
